<compile_context>
chip_gen: v7x
topology: tpu7x:2x2x1
jax: 0.10.0
libtpu: 0.0.40
codegen_flags: <defaults>
</compile_context>

<pallas_src>
import functools

import numpy as np
import jax
import jax.numpy as jnp
from jax import lax
from jax.experimental import pallas as pl
from jax.experimental.pallas import tpu as pltpu


def _round_up(a, b):
    return (a + b - 1) // b * b


def _tensorcores_per_chip():
    """Best-effort TC-per-chip detection (v7x has 2, v5e/v6e have 1)."""
    try:
        kind = jax.devices()[0].device_kind.lower()
        if "v7" in kind:
            return 2
    except Exception:
        pass
    return 1


# ----------------------------------------------------------------------------
# Group-conv index construction (C4 on Z2 input, i.e. the (1, 4) case).
# ----------------------------------------------------------------------------
def make_c4_z2_indices(ksize):
    uu, vv = np.indices((ksize, ksize))
    base = np.stack([uu, vv], axis=-1)  # (ks, ks, 2)
    inds = np.zeros((4, 1, ksize, ksize, 3), dtype=np.int32)
    for r in range(4):
        rot = np.rot90(base, k=r, axes=(0, 1))
        inds[r, 0, :, :, 1] = rot[..., 0]
        inds[r, 0, :, :, 2] = rot[..., 1]
    return inds


# ----------------------------------------------------------------------------
# Weight assembly (pure reshape/permute/concat glue, plain JAX).
# Mirrors trans_filter + combine_weight_kernel from the PyTorch module.
# Run once per weight update (not per forward call).
# ----------------------------------------------------------------------------
def trans_filter(w, inds):
    # w: (O-1, I-1, isz, ks, ks), inds: (osz, isz, ks, ks, 3)
    s, u, v = inds[..., 0], inds[..., 1], inds[..., 2]
    w_indexed = w[:, :, s, u, v]                          # (O-1, I-1, osz, isz, ks, ks)
    return jnp.transpose(w_indexed, (0, 2, 1, 3, 4, 5))   # (O-1, osz, I-1, isz, ks, ks)


def combine_weight_kernel(tw_space, w_time_output, w_time_input):
    O1, osz, I1, isz, ks, ks2 = tw_space.shape
    K = I1 * ks * ks2
    tw_space = tw_space.reshape(O1, osz, I1, isz, ks * ks2)
    tw_space = jnp.transpose(tw_space, (1, 0, 3, 2, 4))       # (osz, O-1, isz, I-1, ks*ks)
    tw_space = tw_space.reshape(osz, O1, isz, K)
    # time-output row, repeated per input stabilizer element, rolled per rotation
    wto = jnp.repeat(w_time_output[:, :, None, :], isz, axis=2)          # (1, 1, isz, K)
    tor = jnp.repeat(wto, osz, axis=0)                                   # (osz, 1, isz, K)
    tor = jnp.stack([jnp.roll(tor[i], i, axis=1) for i in range(osz)], axis=0)
    tw_space = jnp.concatenate([tor, tw_space], axis=1)                  # (osz, O, isz, K)
    # time-input column
    wti = jnp.repeat(w_time_input[:, None, :], isz, axis=1)              # (O, isz, 1)
    tie = jnp.broadcast_to(wti[None], (osz,) + wti.shape)                # (osz, O, isz, 1)
    tw_space = jnp.concatenate([tie, tw_space], axis=-1)                 # (osz, O, isz, 1+K)
    osz_, O, isz_, rest = tw_space.shape
    return tw_space.reshape(osz_ * O, isz_ * rest)                       # (F_out, F_in)


def prepare_glfc_weights(weight_space, w_time_output, w_time_input, *, inds,
                         output_stabilizer_size, compute_dtype=jnp.bfloat16):
    """Assemble the combined (F_out, F_in) weight once, then build the
    lane-dense block-diagonal weight and the group-sum matrix G."""
    tw = combine_weight_kernel(trans_filter(weight_space, inds),
                               w_time_output, w_time_input)              # (F_out, F_in)
    Fout, Fin = tw.shape
    gs = Fout // output_stabilizer_size                                  # = out_channels
    # Lane-dense packing factor so the output tile's last dim is 128 lanes.
    pack = 128 // Fout if (Fout < 128 and 128 % Fout == 0) else 1
    Lp = pack * Fout
    wT = jnp.transpose(tw)                                               # (F_in, F_out)
    # Block-diagonal weight: `pack` copies of wT on the diagonal.
    w_block = jnp.kron(jnp.eye(pack, dtype=wT.dtype), wT).astype(compute_dtype)
    # G[a, b] = 1 iff a, b in the same Lorentz group and a is a space (non-time)
    # column, so (y*y) @ G = per-group ||space||^2 broadcast to every lane.
    a = np.arange(Lp)
    G = ((a[:, None] // gs == a[None, :] // gs) & (a[:, None] % gs != 0))
    G = jnp.asarray(G, dtype=jnp.float32)
    meta = dict(Fout=Fout, Fin=Fin, gs=gs, pack=pack, Lp=Lp,
                osz=output_stabilizer_size)
    return w_block, G, meta


# ----------------------------------------------------------------------------
# Pallas kernel: packed matmul (MXU) + group-sum matmul (MXU) + time renorm.
# ----------------------------------------------------------------------------
def glfc_kernel(x_ref, w_ref, g_ref, o_ref, *, group_size, k_curv, compute_dtype):
    # In-kernel cast (no separate XLA convert op / extra HBM round trip).
    x = x_ref[...].astype(compute_dtype)
    if jnp.dtype(compute_dtype) == jnp.dtype(jnp.float32):
        y = jnp.dot(x, w_ref[...], preferred_element_type=jnp.float32,
                    precision=lax.Precision.HIGHEST)
    else:
        y = jnp.dot(x, w_ref[...], preferred_element_type=jnp.float32)
    # Per-Lorentz-group sum of squared space coords (G zeroes the time columns),
    # rides the otherwise-idle MXU; HIGHEST precision keeps the time coordinate
    # at ~f32 accuracy regardless of the compute dtype of the main matmul.
    sums = jnp.dot(y * y, g_ref[...], preferred_element_type=jnp.float32,
                   precision=lax.Precision.HIGHEST)
    # Hoisted lane mask: (1, Lp), broadcast by the where.
    col = lax.broadcasted_iota(jnp.int32, (1, o_ref.shape[1]), 1)
    is_time = (col % group_size) == 0
    o_ref[...] = jnp.where(is_time, jnp.sqrt(k_curv + sums), y).astype(o_ref.dtype)


def _choose_tiles(mp, bm_max, cores):
    """Pick a packed-row tile size and grid step count.

    Single-TC chips: one tile as big as possible (up to bm_max).
    Multi-TC chips (v7x): step count rounded to a multiple of the core count
    so both TensorCores get equal work under dimension_semantics=('parallel',).
    """
    bm = min(bm_max, _round_up(mp, 8))
    steps = pl.cdiv(mp, bm)
    if cores > 1 and steps % cores != 0:
        steps = _round_up(max(steps, cores), cores)
        bm = min(bm, _round_up(pl.cdiv(mp, steps), 8))
        steps = _round_up(pl.cdiv(mp, bm), cores)
    return bm, steps


def group_lorentz_fully_connected(x, w_block, G, *, meta, k_curv=1.0,
                                  compute_dtype=jnp.bfloat16, out_dtype=None,
                                  bm_max=2048, transpose_output=False):
    B, P, Fin = x.shape
    Fout, gs, pack, Lp, osz = (meta['Fout'], meta['gs'], meta['pack'],
                               meta['Lp'], meta['osz'])
    assert Fin == meta['Fin']
    Fin_p = pack * Fin
    out_dtype = x.dtype if out_dtype is None else out_dtype

    M = B * P
    mp = pl.cdiv(M, pack)                      # packed rows needed
    cores = _tensorcores_per_chip()
    bm, steps = _choose_tiles(mp, bm_max, cores)
    mp_pad = steps * bm
    rows_needed = mp_pad * pack

    x_flat = x.reshape(M, Fin)
    if rows_needed != M:
        # Single fused pad covering both the pack- and the tile-rounding.
        x_flat = jnp.pad(x_flat, ((0, rows_needed - M), (0, 0)))
    x_packed = x_flat.reshape(mp_pad, Fin_p)   # free row-major reshape, native f32

    cost = pl.CostEstimate(
        flops=2 * mp_pad * Fin_p * Lp + 2 * mp_pad * Lp * Lp,
        transcendentals=mp_pad * Lp,
        bytes_accessed=(x_packed.size * x_packed.dtype.itemsize
                        + w_block.size * w_block.dtype.itemsize
                        + G.size * G.dtype.itemsize
                        + mp_pad * Lp * jnp.dtype(out_dtype).itemsize))

    y_packed = pl.pallas_call(
        functools.partial(glfc_kernel, group_size=gs, k_curv=float(k_curv),
                          compute_dtype=compute_dtype),
        out_shape=jax.ShapeDtypeStruct((mp_pad, Lp), out_dtype),
        grid=(steps,),
        in_specs=[
            pl.BlockSpec((bm, Fin_p), lambda i: (i, 0)),
            pl.BlockSpec((Fin_p, Lp), lambda i: (0, 0)),   # grid-invariant weight
            pl.BlockSpec((Lp, Lp), lambda i: (0, 0)),      # grid-invariant G
        ],
        out_specs=pl.BlockSpec((bm, Lp), lambda i: (i, 0)),
        compiler_params=pltpu.CompilerParams(
            dimension_semantics=("parallel",)),
        cost_estimate=cost,
    )(x_packed, w_block, G)

    y = y_packed.reshape(mp_pad * pack, Fout)[:M]          # free reshape + slice
    y = y.reshape(B, P, osz, gs)
    if transpose_output:
        # Matches the PyTorch module layout (B, osz, P, out_ch).  Costs an extra
        # HBM round trip of the output; default is False.
        y = jnp.transpose(y, (0, 2, 1, 3))
    return y


# ----------------------------------------------------------------------------
# Pure-JAX reference of the forward pass (f32, for correctness checks only).
# Returns the PyTorch module layout (B, osz, P, out_ch).
# ----------------------------------------------------------------------------
def reference_forward(x, weight_space, w_time_output, w_time_input,
                      *, inds, output_stabilizer_size, k_curv=1.0):
    tw = combine_weight_kernel(trans_filter(weight_space, inds),
                               w_time_output, w_time_input)
    y = jnp.einsum('bpf,of->bpo', x, tw, precision=lax.Precision.HIGHEST)
    B, P, Fout = y.shape
    gs = Fout // output_stabilizer_size
    y = y.reshape(B, P, output_stabilizer_size, gs)
    sp = y[..., 1:]
    t = jnp.sqrt(k_curv + jnp.sum(sp * sp, axis=-1, keepdims=True))
    y = jnp.concatenate([t, sp], axis=-1)
    return jnp.transpose(y, (0, 2, 1, 3))


if __name__ == "__main__":
    # Config consistent with the module's __init__:
    #   out_channels=8, in_channels=5, kernel_size=(3,3),
    #   input_stabilizer_size=1, output_stabilizer_size=4 (C4 on Z2)
    out_channels, in_channels, ks = 8, 5, 3
    isz, osz = 1, 4
    k_curv = 1.0                       # CustomLorentz default curvature
    init_std = 0.02

    B, P = 2, 256                      # small: M = 512 rows
    Fin = isz * (1 + (in_channels - 1) * ks * ks)   # = 37

    key = jax.random.PRNGKey(0)
    k1, k2, k3, k4 = jax.random.split(key, 4)
    weight_space = jax.random.uniform(
        k1, (out_channels - 1, in_channels - 1, isz, ks, ks),
        minval=-init_std, maxval=init_std, dtype=jnp.float32)
    w_time_output = jax.random.uniform(
        k2, (1, 1, (in_channels - 1) * ks * ks),
        minval=-init_std, maxval=init_std, dtype=jnp.float32)
    w_time_input = jax.random.uniform(
        k3, (out_channels, 1), minval=-init_std, maxval=init_std,
        dtype=jnp.float32)
    x = jax.random.normal(k4, (B, P, Fin), dtype=jnp.float32)

    inds = jnp.asarray(make_c4_z2_indices(ks))

    ref = reference_forward(
        x, weight_space, w_time_output, w_time_input,
        inds=inds, output_stabilizer_size=osz, k_curv=k_curv)
    ref = np.asarray(ref)                                  # (B, osz, P, out_ch)
    ref_untransposed = np.transpose(ref, (0, 2, 1, 3))     # (B, P, osz, out_ch)

    # TODO(synk): only the normalize=False path (manifold.get_time) is fused in
    # the kernel; the normalize=True (extract_time) branch is not implemented.

    # ---- f32 compute path (tight check), default (un-transposed) layout -----
    w_block32, G, meta = prepare_glfc_weights(
        weight_space, w_time_output, w_time_input, inds=inds,
        output_stabilizer_size=osz, compute_dtype=jnp.float32)
    fwd_f32 = jax.jit(lambda xx: group_lorentz_fully_connected(
        xx, w_block32, G, meta=meta, k_curv=k_curv,
        compute_dtype=jnp.float32, transpose_output=False))
    out_f32 = jax.block_until_ready(fwd_f32(x))
    assert out_f32.shape == (B, P, osz, out_channels), out_f32.shape
    np.testing.assert_allclose(np.asarray(out_f32), ref_untransposed,
                               rtol=1e-4, atol=1e-4)

    # ---- PyTorch-layout parity (transpose_output=True) ----------------------
    fwd_f32_t = jax.jit(lambda xx: group_lorentz_fully_connected(
        xx, w_block32, G, meta=meta, k_curv=k_curv,
        compute_dtype=jnp.float32, transpose_output=True))
    out_f32_t = jax.block_until_ready(fwd_f32_t(x))
    assert out_f32_t.shape == (B, osz, P, out_channels), out_f32_t.shape
    np.testing.assert_allclose(np.asarray(out_f32_t), ref, rtol=1e-4, atol=1e-4)

    # ---- bf16 fast path (in-kernel cast, f32 accumulation + f32 renorm) -----
    w_block16, G16, meta16 = prepare_glfc_weights(
        weight_space, w_time_output, w_time_input, inds=inds,
        output_stabilizer_size=osz, compute_dtype=jnp.bfloat16)
    fwd_bf16 = jax.jit(lambda xx: group_lorentz_fully_connected(
        xx, w_block16, G16, meta=meta16, k_curv=k_curv,
        compute_dtype=jnp.bfloat16, transpose_output=False))
    out_bf16 = jax.block_until_ready(fwd_bf16(x))
    np.testing.assert_allclose(np.asarray(out_bf16, dtype=np.float32),
                               ref_untransposed, rtol=5e-2, atol=1e-2)

    # ---- bf16 output store (halves the dominant HBM store term) -------------
    fwd_bf16_out = jax.jit(lambda xx: group_lorentz_fully_connected(
        xx, w_block16, G16, meta=meta16, k_curv=k_curv,
        compute_dtype=jnp.bfloat16, out_dtype=jnp.bfloat16,
        transpose_output=False))
    out_bf16o = jax.block_until_ready(fwd_bf16_out(x))
    assert out_bf16o.dtype == jnp.bfloat16
    np.testing.assert_allclose(np.asarray(out_bf16o, dtype=np.float32),
                               ref_untransposed, rtol=1e-1, atol=2e-2)

    print("KERNEL_OK")
</pallas_src>

<mosaic_0001>
module attributes {stable_mosaic.version = 11 : i64} {
  func.func @glfc_kernel(%arg0: i32, %arg1: memref<128x148xf32, #tpu.memory_space<vmem>>, %arg2: memref<148x128xf32, #tpu.memory_space<vmem>>, %arg3: memref<128x128xf32, #tpu.memory_space<vmem>>, %arg4: memref<128x128xf32, #tpu.memory_space<vmem>>) attributes {dimension_semantics = [#tpu.dimension_semantics<parallel>], iteration_bounds = array<i64: 1>, scalar_prefetch = 0 : i64, scratch_operands = 0 : i64, tpu.core_type = #tpu.core_type<tc>, window_params = [{transform_indices = @transform_0, window_bounds = array<i64: 128, 148>}, {pipeline_mode = #tpu.pipeline_mode<synchronous>, transform_indices = @transform_1, window_bounds = array<i64: 148, 128>}, {pipeline_mode = #tpu.pipeline_mode<synchronous>, transform_indices = @transform_2, window_bounds = array<i64: 128, 128>}, {transform_indices = @transform_3, window_bounds = array<i64: 128, 128>}]} {
    %c0 = arith.constant 0 : index
    %c0_0 = arith.constant 0 : index
    %0 = vector.load %arg1[%c0, %c0_0] : memref<128x148xf32, #tpu.memory_space<vmem>>, vector<128x148xf32>
    %c0_1 = arith.constant 0 : index
    %c0_2 = arith.constant 0 : index
    %1 = vector.load %arg2[%c0_1, %c0_2] : memref<148x128xf32, #tpu.memory_space<vmem>>, vector<148x128xf32>
    %cst = arith.constant dense<0.000000e+00> : vector<128x128xf32>
    %2 = tpu.matmul %0, %1, %cst {dimension_numbers = #tpu.dot_dimension_numbers<[1], [0], [0], [1], [0, 0, 1, 1], [], []>, precision = #tpu.contract_precision<fp32>} : vector<128x148xf32>, vector<148x128xf32>, vector<128x128xf32> -> vector<128x128xf32>
    %3 = arith.mulf %2, %2 : vector<128x128xf32>
    %c0_3 = arith.constant 0 : index
    %c0_4 = arith.constant 0 : index
    %4 = vector.load %arg3[%c0_3, %c0_4] : memref<128x128xf32, #tpu.memory_space<vmem>>, vector<128x128xf32>
    %cst_5 = arith.constant dense<0.000000e+00> : vector<128x128xf32>
    %5 = tpu.matmul %3, %4, %cst_5 {dimension_numbers = #tpu.dot_dimension_numbers<[1], [0], [0], [1], [0, 0, 1, 1], [], []>, precision = #tpu.contract_precision<fp32>} : vector<128x128xf32>, vector<128x128xf32>, vector<128x128xf32> -> vector<128x128xf32>
    %6 = tpu.iota {dimensions = array<i32: 1>} : vector<1x128xi32>
    %c8_i32 = arith.constant 8 : i32
    %c0_i32 = arith.constant 0 : i32
    %7 = arith.cmpi eq, %c8_i32, %c0_i32 : i32
    %c1_i32 = arith.constant 1 : i32
    %8 = arith.select %7, %c1_i32, %c8_i32 : i32
    %9 = vector.broadcast %8 : i32 to vector<1x128xi32>
    %10 = arith.remsi %6, %9 : vector<1x128xi32>
    %c0_i32_6 = arith.constant 0 : i32
    %11 = vector.broadcast %c0_i32_6 : i32 to vector<1x128xi32>
    %12 = arith.cmpi ne, %10, %11 : vector<1x128xi32>
    %c0_i32_7 = arith.constant 0 : i32
    %13 = vector.broadcast %c0_i32_7 : i32 to vector<1x128xi32>
    %14 = arith.cmpi slt, %10, %13 : vector<1x128xi32>
    %c0_i32_8 = arith.constant 0 : i32
    %15 = arith.cmpi slt, %8, %c0_i32_8 : i32
    %16 = vector.broadcast %15 : i1 to vector<1x128xi1>
    %17 = vector.broadcast %16 : vector<1x128xi1> to vector<1x128xi1>
    %18 = arith.xori %14, %17 : vector<1x128xi1>
    %19 = arith.andi %18, %12 : vector<1x128xi1>
    %20 = vector.broadcast %8 : i32 to vector<1x128xi32>
    %21 = arith.addi %10, %20 : vector<1x128xi32>
    %22 = arith.select %19, %21, %10 : vector<1x128xi1>, vector<1x128xi32>
    %c0_i32_9 = arith.constant 0 : i32
    %23 = vector.broadcast %c0_i32_9 : i32 to vector<1x128xi32>
    %24 = arith.cmpi eq, %22, %23 : vector<1x128xi32>
    %cst_10 = arith.constant 1.000000e+00 : f32
    %25 = vector.broadcast %cst_10 : f32 to vector<128x128xf32>
    %26 = arith.addf %25, %5 : vector<128x128xf32>
    %27 = math.sqrt %26 : vector<128x128xf32>
    %28 = vector.shape_cast %24 : vector<1x128xi1> to vector<1x128xi1>
    %29 = vector.broadcast %28 : vector<1x128xi1> to vector<128x128xi1>
    %30 = arith.select %29, %27, %2 : vector<128x128xi1>, vector<128x128xf32>
    %c0_11 = arith.constant 0 : index
    %c0_12 = arith.constant 0 : index
    %31 = vector.load %arg4[%c0_11, %c0_12] : memref<128x128xf32, #tpu.memory_space<vmem>>, vector<128x128xf32>
    tpu.vector_store %arg4[%c0_11, %c0_12], %30 {strides = array<i32>} : memref<128x128xf32, #tpu.memory_space<vmem>>, vector<128x128xf32>,
    return
  }
  func.func @transform_0(%arg0: i32) -> (i32, i32) {
    %c0_i32 = arith.constant 0 : i32
    %c0_i32_0 = arith.constant 0 : i32
    return %arg0, %c0_i32 : i32, i32
  }
  func.func @transform_1(%arg0: i32) -> (i32, i32) {
    %c0_i32 = arith.constant 0 : i32
    %c0_i32_0 = arith.constant 0 : i32
    %c0_i32_1 = arith.constant 0 : i32
    return %c0_i32, %c0_i32_0 : i32, i32
  }
  func.func @transform_2(%arg0: i32) -> (i32, i32) {
    %c0_i32 = arith.constant 0 : i32
    %c0_i32_0 = arith.constant 0 : i32
    %c0_i32_1 = arith.constant 0 : i32
    return %c0_i32, %c0_i32_0 : i32, i32
  }
  func.func @transform_3(%arg0: i32) -> (i32, i32) {
    %c0_i32 = arith.constant 0 : i32
    %c0_i32_0 = arith.constant 0 : i32
    return %arg0, %c0_i32 : i32, i32
  }
}

</mosaic_0001>

<llo_original>
// kernel: _lambda_.1
$region0: #{_lambda_.1}
  #allocation0 [shape = 'u32[]', space=smem, size = 0x4, offset = 0x4, fixed_abs, tag = 'smem constant byte address 0x4 - core index']
  #allocation1 [shape = 'u32[144,128]{1,0:T(1,128)}', space=vmem, size = 0x12000, scoped, tag = 'internal scratch']
  %s0 = inlined_call_operand.vmem [shape: f32[128,148], index: 0, kind: input, shape index: {}]
  %s1 = inlined_call_operand.vmem [shape: f32[148,128], index: 1, kind: input, shape index: {}]
  %s2 = inlined_call_operand.vmem [shape: f32[128,128], index: 2, kind: input, shape index: {}]
  %s3 = inlined_call_operand.vmem [shape: f32[128,128], index: 3, kind: output, shape index: {}]
  %s4 = sld [smem:[#allocation0]]
  $region22: #{_lambda_.1} parent=0
    _
  %s6 = ssub.s32 1, %s4
  %s7 = scalar_select 0, %s6, %s4
  // Predicated region
  $region2: #{_lambda_.1} parent=0 // pred_check
    _
  $region3: #{_lambda_.1} parent=0 // pred_check_branch
    %9 = sbr.rel (0) target = $region5
  $region4: #{_lambda_.1} parent=0 // pred_region
    _
  $region5: #{_lambda_.1} parent=0 // pred_fallthru
    _
  // Predicated region
  $region6: #{_lambda_.1} parent=0 // pred_check
    _
  $region7: #{_lambda_.1} parent=0 // pred_check_branch
    %11 = sbr.rel (0) target = $region9
  $region8: #{_lambda_.1} parent=0 // pred_region
    _
  $region9: #{_lambda_.1} parent=0 // pred_fallthru
    _
  // Predicated region
  $region10: #{_lambda_.1} parent=0 // pred_check
    _
  $region11: #{_lambda_.1} parent=0 // pred_check_branch
    %13 = sbr.rel (0) target = $region13
  $region12: #{_lambda_.1} parent=0 // pred_region
    _
  $region13: #{_lambda_.1} parent=0 // pred_fallthru
    _
  %v14 = vld [vmem:[%s0] sm:$0xff]
  %v15 = vld [vmem:[%s0 + $0x8] sm:$0xff]
  %v16 = vld [vmem:[%s0 + $0x10] sm:$0xff]
  %v17 = vld [vmem:[%s0 + $0x18] sm:$0xff]
  %v18 = vld [vmem:[%s0 + $0x20] sm:$0xff]
  %v19 = vld [vmem:[%s0 + $0x28] sm:$0xff]
  %v20 = vld [vmem:[%s0 + $0x30] sm:$0xff]
  %v21 = vld [vmem:[%s0 + $0x38] sm:$0xff]
  %v22 = vld [vmem:[%s0 + $0x40] sm:$0xff]
  %v23 = vld [vmem:[%s0 + $0x48] sm:$0xff]
  %v24 = vld [vmem:[%s0 + $0x50] sm:$0xff]
  %v25 = vld [vmem:[%s0 + $0x58] sm:$0xff]
  %v26 = vld [vmem:[%s0 + $0x60] sm:$0xff]
  %v27 = vld [vmem:[%s0 + $0x68] sm:$0xff]
  %v28 = vld [vmem:[%s0 + $0x70] sm:$0xff]
  %v29 = vld [vmem:[%s0 + $0x78] sm:$0xff]
  %v30 = vld [vmem:[%s0 + $0x80] sm:$0xff]
  %v31 = vld [vmem:[%s0 + $0x88] sm:$0xff]
  %v32 = vld [vmem:[%s0 + $0x90] sm:$0xff]
  %v33 = vld [vmem:[%s0 + $0x98] sm:$0xff]
  %v34 = vld [vmem:[%s0 + $0xa0] sm:$0xff]
  %v35 = vld [vmem:[%s0 + $0xa8] sm:$0xff]
  %v36 = vld [vmem:[%s0 + $0xb0] sm:$0xff]
  %v37 = vld [vmem:[%s0 + $0xb8] sm:$0xff]
  %v38 = vld [vmem:[%s0 + $0xc0] sm:$0xff]
  %v39 = vld [vmem:[%s0 + $0xc8] sm:$0xff]
  %v40 = vld [vmem:[%s0 + $0xd0] sm:$0xff]
  %v41 = vld [vmem:[%s0 + $0xd8] sm:$0xff]
  %v42 = vld [vmem:[%s0 + $0xe0] sm:$0xff]
  %v43 = vld [vmem:[%s0 + $0xe8] sm:$0xff]
  %v44 = vld [vmem:[%s0 + $0xf0] sm:$0xff]
  %v45 = vld [vmem:[%s0 + $0xf8] sm:$0xff]
  %v46 = vld [vmem:[%s1] sm:$0xff]
  %v47 = vld [vmem:[%s1 + $0x8] sm:$0xff]
  %v48 = vld [vmem:[%s1 + $0x10] sm:$0xff]
  %v49 = vld [vmem:[%s1 + $0x18] sm:$0xff]
  %v50 = vld [vmem:[%s1 + $0x20] sm:$0xff]
  %v51 = vld [vmem:[%s1 + $0x28] sm:$0xff]
  %v52 = vld [vmem:[%s1 + $0x30] sm:$0xff]
  %v53 = vld [vmem:[%s1 + $0x38] sm:$0xff]
  %v54 = vld [vmem:[%s1 + $0x40] sm:$0xff]
  %v55 = vld [vmem:[%s1 + $0x48] sm:$0xff]
  %v56 = vld [vmem:[%s1 + $0x50] sm:$0xff]
  %v57 = vld [vmem:[%s1 + $0x58] sm:$0xff]
  %v58 = vld [vmem:[%s1 + $0x60] sm:$0xff]
  %v59 = vld [vmem:[%s1 + $0x68] sm:$0xff]
  %v60 = vld [vmem:[%s1 + $0x70] sm:$0xff]
  %v61 = vld [vmem:[%s1 + $0x78] sm:$0xff]
  %v62 = vld [vmem:[%s1 + $0x80] sm:$0xff]
  %v63 = vld [vmem:[%s1 + $0x88] sm:$0xff]
  %v64 = vld [vmem:[%s1 + $0x90] sm:$0xf]
  %vm65 = vcmask 162816
  %v67 = vsel %vm65, %v15, 0
  %v70 = vsel %vm65, %v17, 0
  %v73 = vsel %vm65, %v19, 0
  %v76 = vsel %vm65, %v21, 0
  %v79 = vsel %vm65, %v23, 0
  %v82 = vsel %vm65, %v25, 0
  %v85 = vsel %vm65, %v27, 0
  %v88 = vsel %vm65, %v29, 0
  %v91 = vsel %vm65, %v31, 0
  %v94 = vsel %vm65, %v33, 0
  %v97 = vsel %vm65, %v35, 0
  %v100 = vsel %vm65, %v37, 0
  %v103 = vsel %vm65, %v39, 0
  %v106 = vsel %vm65, %v41, 0
  %v109 = vsel %vm65, %v43, 0
  %v112 = vsel %vm65, %v45, 0
  %vm114 = vcmask 1043456
  %v116 = vsel %vm114, %v64, 0
  %118 = vmatprep.subr.mxu0 0.0
  %v119 = vand.u32 %v46, 4294901760
  %120 = vmatpush1.msra.mxu0 %v119
  %121 = vmatprep.subr.mxu0 0.0
  %v122 = vand.u32 %v47, 4294901760
  %123 = vmatpush1.msra.mxu0 %v122
  %124 = vmatprep.subr.mxu0 0.0
  %v125 = vand.u32 %v48, 4294901760
  %126 = vmatpush1.msra.mxu0 %v125
  %127 = vmatprep.subr.mxu0 0.0
  %v128 = vand.u32 %v49, 4294901760
  %129 = vmatpush1.msra.mxu0 %v128
  %130 = vmatprep.subr.mxu0 0.0
  %v131 = vand.u32 %v50, 4294901760
  %132 = vmatpush1.msra.mxu0 %v131
  %133 = vmatprep.subr.mxu0 0.0
  %v134 = vand.u32 %v51, 4294901760
  %135 = vmatpush1.msra.mxu0 %v134
  %136 = vmatprep.subr.mxu0 0.0
  %v137 = vand.u32 %v52, 4294901760
  %138 = vmatpush1.msra.mxu0 %v137
  %139 = vmatprep.subr.mxu0 0.0
  %v140 = vand.u32 %v53, 4294901760
  %141 = vmatpush1.msra.mxu0 %v140
  %142 = vmatprep.subr.mxu0 0.0
  %v143 = vand.u32 %v54, 4294901760
  %144 = vmatpush1.msra.mxu0 %v143
  %145 = vmatprep.subr.mxu0 0.0
  %v146 = vand.u32 %v55, 4294901760
  %147 = vmatpush1.msra.mxu0 %v146
  %148 = vmatprep.subr.mxu0 0.0
  %v149 = vand.u32 %v56, 4294901760
  %150 = vmatpush1.msra.mxu0 %v149
  %151 = vmatprep.subr.mxu0 0.0
  %v152 = vand.u32 %v57, 4294901760
  %153 = vmatpush1.msra.mxu0 %v152
  %154 = vmatprep.subr.mxu0 0.0
  %v155 = vand.u32 %v58, 4294901760
  %156 = vmatpush1.msra.mxu0 %v155
  %157 = vmatprep.subr.mxu0 0.0
  %v158 = vand.u32 %v59, 4294901760
  %159 = vmatpush1.msra.mxu0 %v158
  %160 = vmatprep.subr.mxu0 0.0
  %v161 = vand.u32 %v60, 4294901760
  %162 = vmatpush1.msra.mxu0 %v161
  %163 = vmatprep.subr.mxu0 0.0
  %v164 = vand.u32 %v61, 4294901760
  %165 = vmatpush1.msra.mxu0 %v164
  %166 = vmatprep.subr.mxu0 0.0
  %v167 = vand.u32 %v62, 4294901760
  %168 = vmatpush1.msra.mxu0 %v167
  %169 = vmatprep.subr.mxu0 0.0
  %v170 = vand.u32 %v63, 4294901760
  %171 = vmatpush1.msra.mxu0 %v170
  %172 = vmatprep.subr.mxu0 0.0
  %v173 = vand.u32 %v116, 4294901760
  %174 = vmatpush1.msra.mxu0 %v173
  %175 = vmatprep.subr.mxu0 0.0
  %176 = vmatpush1.msra.mxu0 0.0
  %177 = vmatprep.subr.mxu0 0.0
  %178 = vmatpush1.msra.mxu0 0.0
  %179 = vmatprep.subr.mxu0 0.0
  %180 = vmatpush1.msra.mxu0 0.0
  %181 = vmatprep.subr.mxu0 0.0
  %182 = vmatpush1.msra.mxu0 0.0
  %183 = vmatprep.subr.mxu0 0.0
  %184 = vmatpush1.msra.mxu0 0.0
  %185 = vmatprep.subr.mxu0 0.0
  %186 = vmatpush1.msra.mxu0 0.0
  %187 = vmatprep.subr.mxu0 0.0
  %188 = vmatpush1.msra.mxu0 0.0
  %189 = vmatprep.subr.mxu0 0.0
  %190 = vmatpush1.msra.mxu0 0.0
  %191 = vmatprep.subr.mxu0 0.0
  %192 = vmatpush1.msra.mxu0 0.0
  %193 = vmatprep.subr.mxu0 0.0
  %194 = vmatpush1.msra.mxu0 0.0
  %195 = vmatprep.subr.mxu0 0.0
  %196 = vmatpush1.msra.mxu0 0.0
  %197 = vmatprep.subr.mxu0 0.0
  %198 = vmatpush1.msra.mxu0 0.0
  %199 = vmatprep.subr.mxu0 0.0
  %200 = vmatpush1.msra.mxu0 0.0
  %v201 = vand.u32 %v67, 4294901760
  %v202 = vsub.f32 %v67, %v201
  %v203 = vand.u32 %v202, 4294901760
  %v204 = vsub.f32 %v202, %v203
  %v205 = vand.u32 %v204, 4294901760
  %206 = vmatprep.mubr.f32.mxu0 %v205
  %v207 = vand.u32 %v14, 4294901760
  %v208 = vsub.f32 %v14, %v207
  %v209 = vand.u32 %v208, 4294901760
  %v210 = vsub.f32 %v208, %v209
  %v211 = vand.u32 %v210, 4294901760
  %212 = vmatmul.mubr.f32.gmra.mrb[0].mxu0 %v211
  %v213 = vpop.f32.mrb[0].mxu0
  %v214 = vadd.f32 0.0, %v213
  %v215 = vpop.f32.mrb[0].mxu0
  %v216 = vand.u32 %v70, 4294901760
  %v217 = vsub.f32 %v70, %v216
  %v218 = vand.u32 %v217, 4294901760
  %v219 = vsub.f32 %v217, %v218
  %v220 = vand.u32 %v219, 4294901760
  %221 = vmatprep.mubr.f32.mxu0 %v220
  %v222 = vand.u32 %v16, 4294901760
  %v223 = vsub.f32 %v16, %v222
  %v224 = vand.u32 %v223, 4294901760
  %v225 = vsub.f32 %v223, %v224
  %v226 = vand.u32 %v225, 4294901760
  %227 = vmatmul.mubr.f32.gmra.mrb[0].mxu0 %v226
  %v228 = vpop.f32.mrb[0].mxu0
  %v229 = vadd.f32 0.0, %v228
  %v230 = vpop.f32.mrb[0].mxu0
  %v231 = vand.u32 %v73, 4294901760
  %v232 = vsub.f32 %v73, %v231
  %v233 = vand.u32 %v232, 4294901760
  %v234 = vsub.f32 %v232, %v233
  %v235 = vand.u32 %v234, 4294901760
  %236 = vmatprep.mubr.f32.mxu0 %v235
  %v237 = vand.u32 %v18, 4294901760
  %v238 = vsub.f32 %v18, %v237
  %v239 = vand.u32 %v238, 4294901760
  %v240 = vsub.f32 %v238, %v239
  %v241 = vand.u32 %v240, 4294901760
  %242 = vmatmul.mubr.f32.gmra.mrb[0].mxu0 %v241
  %v243 = vpop.f32.mrb[0].mxu0
  %v244 = vadd.f32 0.0, %v243
  %v245 = vpop.f32.mrb[0].mxu0
  %v246 = vand.u32 %v76, 4294901760
  %v247 = vsub.f32 %v76, %v246
  %v248 = vand.u32 %v247, 4294901760
  %v249 = vsub.f32 %v247, %v248
  %v250 = vand.u32 %v249, 4294901760
  %251 = vmatprep.mubr.f32.mxu0 %v250
  %v252 = vand.u32 %v20, 4294901760
  %v253 = vsub.f32 %v20, %v252
  %v254 = vand.u32 %v253, 4294901760
  %v255 = vsub.f32 %v253, %v254
  %v256 = vand.u32 %v255, 4294901760
  %257 = vmatmul.mubr.f32.gmra.mrb[0].mxu0 %v256
  %v258 = vpop.f32.mrb[0].mxu0
  %v259 = vadd.f32 0.0, %v258
  %v260 = vpop.f32.mrb[0].mxu0
  %v261 = vand.u32 %v79, 4294901760
  %v262 = vsub.f32 %v79, %v261
  %v263 = vand.u32 %v262, 4294901760
  %v264 = vsub.f32 %v262, %v263
  %v265 = vand.u32 %v264, 4294901760
  %266 = vmatprep.mubr.f32.mxu0 %v265
  %v267 = vand.u32 %v22, 4294901760
  %v268 = vsub.f32 %v22, %v267
  %v269 = vand.u32 %v268, 4294901760
  %v270 = vsub.f32 %v268, %v269
  %v271 = vand.u32 %v270, 4294901760
  %272 = vmatmul.mubr.f32.gmra.mrb[0].mxu0 %v271
  %v273 = vpop.f32.mrb[0].mxu0
  %v274 = vadd.f32 0.0, %v273
  %v275 = vpop.f32.mrb[0].mxu0
  %v276 = vand.u32 %v82, 4294901760
  %v277 = vsub.f32 %v82, %v276
  %v278 = vand.u32 %v277, 4294901760
  %v279 = vsub.f32 %v277, %v278
  %v280 = vand.u32 %v279, 4294901760
  %281 = vmatprep.mubr.f32.mxu0 %v280
  %v282 = vand.u32 %v24, 4294901760
  %v283 = vsub.f32 %v24, %v282
  %v284 = vand.u32 %v283, 4294901760
  %v285 = vsub.f32 %v283, %v284
  %v286 = vand.u32 %v285, 4294901760
  %287 = vmatmul.mubr.f32.gmra.mrb[0].mxu0 %v286
  %v288 = vpop.f32.mrb[0].mxu0
  %v289 = vadd.f32 0.0, %v288
  %v290 = vpop.f32.mrb[0].mxu0
  %v291 = vand.u32 %v85, 4294901760
  %v292 = vsub.f32 %v85, %v291
  %v293 = vand.u32 %v292, 4294901760
  %v294 = vsub.f32 %v292, %v293
  %v295 = vand.u32 %v294, 4294901760
  %296 = vmatprep.mubr.f32.mxu0 %v295
  %v297 = vand.u32 %v26, 4294901760
  %v298 = vsub.f32 %v26, %v297
  %v299 = vand.u32 %v298, 4294901760
  %v300 = vsub.f32 %v298, %v299
  %v301 = vand.u32 %v300, 4294901760
  %302 = vmatmul.mubr.f32.gmra.mrb[0].mxu0 %v301
  %v303 = vpop.f32.mrb[0].mxu0
  %v304 = vadd.f32 0.0, %v303
  %v305 = vpop.f32.mrb[0].mxu0
  %v306 = vand.u32 %v88, 4294901760
  %v307 = vsub.f32 %v88, %v306
  %v308 = vand.u32 %v307, 4294901760
  %v309 = vsub.f32 %v307, %v308
  %v310 = vand.u32 %v309, 4294901760
  %311 = vmatprep.mubr.f32.mxu0 %v310
  %v312 = vand.u32 %v28, 4294901760
  %v313 = vsub.f32 %v28, %v312
  %v314 = vand.u32 %v313, 4294901760
  %v315 = vsub.f32 %v313, %v314
  %v316 = vand.u32 %v315, 4294901760
  %317 = vmatmul.mubr.f32.gmra.mrb[0].mxu0 %v316
  %v318 = vpop.f32.mrb[0].mxu0
  %v319 = vadd.f32 0.0, %v318
  %v320 = vpop.f32.mrb[0].mxu0
  %v321 = vand.u32 %v91, 4294901760
  %v322 = vsub.f32 %v91, %v321
  %v323 = vand.u32 %v322, 4294901760
  %v324 = vsub.f32 %v322, %v323
  %v325 = vand.u32 %v324, 4294901760
  %326 = vmatprep.mubr.f32.mxu0 %v325
  %v327 = vand.u32 %v30, 4294901760
  %v328 = vsub.f32 %v30, %v327
  %v329 = vand.u32 %v328, 4294901760
  %v330 = vsub.f32 %v328, %v329
  %v331 = vand.u32 %v330, 4294901760
  %332 = vmatmul.mubr.f32.gmra.mrb[0].mxu0 %v331
  %v333 = vpop.f32.mrb[0].mxu0
  %v334 = vadd.f32 0.0, %v333
  %v335 = vpop.f32.mrb[0].mxu0
  %v336 = vand.u32 %v94, 4294901760
  %v337 = vsub.f32 %v94, %v336
  %v338 = vand.u32 %v337, 4294901760
  %v339 = vsub.f32 %v337, %v338
  %v340 = vand.u32 %v339, 4294901760
  %341 = vmatprep.mubr.f32.mxu0 %v340
  %v342 = vand.u32 %v32, 4294901760
  %v343 = vsub.f32 %v32, %v342
  %v344 = vand.u32 %v343, 4294901760
  %v345 = vsub.f32 %v343, %v344
  %v346 = vand.u32 %v345, 4294901760
  %347 = vmatmul.mubr.f32.gmra.mrb[0].mxu0 %v346
  %v348 = vpop.f32.mrb[0].mxu0
  %v349 = vadd.f32 0.0, %v348
  %v350 = vpop.f32.mrb[0].mxu0
  %v351 = vand.u32 %v97, 4294901760
  %v352 = vsub.f32 %v97, %v351
  %v353 = vand.u32 %v352, 4294901760
  %v354 = vsub.f32 %v352, %v353
  %v355 = vand.u32 %v354, 4294901760
  %356 = vmatprep.mubr.f32.mxu0 %v355
  %v357 = vand.u32 %v34, 4294901760
  %v358 = vsub.f32 %v34, %v357
  %v359 = vand.u32 %v358, 4294901760
  %v360 = vsub.f32 %v358, %v359
  %v361 = vand.u32 %v360, 4294901760
  %362 = vmatmul.mubr.f32.gmra.mrb[0].mxu0 %v361
  %v363 = vpop.f32.mrb[0].mxu0
  %v364 = vadd.f32 0.0, %v363
  %v365 = vpop.f32.mrb[0].mxu0
  %v366 = vand.u32 %v100, 4294901760
  %v367 = vsub.f32 %v100, %v366
  %v368 = vand.u32 %v367, 4294901760
  %v369 = vsub.f32 %v367, %v368
  %v370 = vand.u32 %v369, 4294901760
  %371 = vmatprep.mubr.f32.mxu0 %v370
  %v372 = vand.u32 %v36, 4294901760
  %v373 = vsub.f32 %v36, %v372
  %v374 = vand.u32 %v373, 4294901760
  %v375 = vsub.f32 %v373, %v374
  %v376 = vand.u32 %v375, 4294901760
  %377 = vmatmul.mubr.f32.gmra.mrb[0].mxu0 %v376
  %v378 = vpop.f32.mrb[0].mxu0
  %v379 = vadd.f32 0.0, %v378
  %v380 = vpop.f32.mrb[0].mxu0
  %v381 = vand.u32 %v103, 4294901760
  %v382 = vsub.f32 %v103, %v381
  %v383 = vand.u32 %v382, 4294901760
  %v384 = vsub.f32 %v382, %v383
  %v385 = vand.u32 %v384, 4294901760
  %386 = vmatprep.mubr.f32.mxu0 %v385
  %v387 = vand.u32 %v38, 4294901760
  %v388 = vsub.f32 %v38, %v387
  %v389 = vand.u32 %v388, 4294901760
  %v390 = vsub.f32 %v388, %v389
  %v391 = vand.u32 %v390, 4294901760
  %392 = vmatmul.mubr.f32.gmra.mrb[0].mxu0 %v391
  %v393 = vpop.f32.mrb[0].mxu0
  %v394 = vadd.f32 0.0, %v393
  %v395 = vpop.f32.mrb[0].mxu0
  %v396 = vand.u32 %v106, 4294901760
  %v397 = vsub.f32 %v106, %v396
  %v398 = vand.u32 %v397, 4294901760
  %v399 = vsub.f32 %v397, %v398
  %v400 = vand.u32 %v399, 4294901760
  %401 = vmatprep.mubr.f32.mxu0 %v400
  %v402 = vand.u32 %v40, 4294901760
  %v403 = vsub.f32 %v40, %v402
  %v404 = vand.u32 %v403, 4294901760
  %v405 = vsub.f32 %v403, %v404
  %v406 = vand.u32 %v405, 4294901760
  %407 = vmatmul.mubr.f32.gmra.mrb[0].mxu0 %v406
  %v408 = vpop.f32.mrb[0].mxu0
  %v409 = vadd.f32 0.0, %v408
  %v410 = vpop.f32.mrb[0].mxu0
  %v411 = vand.u32 %v109, 4294901760
  %v412 = vsub.f32 %v109, %v411
  %v413 = vand.u32 %v412, 4294901760
  %v414 = vsub.f32 %v412, %v413
  %v415 = vand.u32 %v414, 4294901760
  %416 = vmatprep.mubr.f32.mxu0 %v415
  %v417 = vand.u32 %v42, 4294901760
  %v418 = vsub.f32 %v42, %v417
  %v419 = vand.u32 %v418, 4294901760
  %v420 = vsub.f32 %v418, %v419
  %v421 = vand.u32 %v420, 4294901760
  %422 = vmatmul.mubr.f32.gmra.mrb[0].mxu0 %v421
  %v423 = vpop.f32.mrb[0].mxu0
  %v424 = vadd.f32 0.0, %v423
  %v425 = vpop.f32.mrb[0].mxu0
  %v426 = vand.u32 %v112, 4294901760
  %v427 = vsub.f32 %v112, %v426
  %v428 = vand.u32 %v427, 4294901760
  %v429 = vsub.f32 %v427, %v428
  %v430 = vand.u32 %v429, 4294901760
  %431 = vmatprep.mubr.f32.mxu0 %v430
  %v432 = vand.u32 %v44, 4294901760
  %v433 = vsub.f32 %v44, %v432
  %v434 = vand.u32 %v433, 4294901760
  %v435 = vsub.f32 %v433, %v434
  %v436 = vand.u32 %v435, 4294901760
  %437 = vmatmul.mubr.f32.gmra.mrb[0].mxu0 %v436
  %v438 = vpop.f32.mrb[0].mxu0
  %v439 = vadd.f32 0.0, %v438
  %v440 = vpop.f32.mrb[0].mxu0
  %441 = vdwg.mxu0
  %442 = vmatprep.subr.mxu0 0.0
  %v443 = vand.u32 %v46, 4294901760
  %v444 = vsub.f32 %v46, %v443
  %v445 = vand.u32 %v444, 4294901760
  %v446 = vsub.f32 %v444, %v445
  %v447 = vand.u32 %v446, 4294901760
  %448 = vmatpush1.msra.mxu0 %v447
  %449 = vmatprep.subr.mxu0 0.0
  %v450 = vand.u32 %v47, 4294901760
  %v451 = vsub.f32 %v47, %v450
  %v452 = vand.u32 %v451, 4294901760
  %v453 = vsub.f32 %v451, %v452
  %v454 = vand.u32 %v453, 4294901760
  %455 = vmatpush1.msra.mxu0 %v454
  %456 = vmatprep.subr.mxu0 0.0
  %v457 = vand.u32 %v48, 4294901760
  %v458 = vsub.f32 %v48, %v457
  %v459 = vand.u32 %v458, 4294901760
  %v460 = vsub.f32 %v458, %v459
  %v461 = vand.u32 %v460, 4294901760
  %462 = vmatpush1.msra.mxu0 %v461
  %463 = vmatprep.subr.mxu0 0.0
  %v464 = vand.u32 %v49, 4294901760
  %v465 = vsub.f32 %v49, %v464
  %v466 = vand.u32 %v465, 4294901760
  %v467 = vsub.f32 %v465, %v466
  %v468 = vand.u32 %v467, 4294901760
  %469 = vmatpush1.msra.mxu0 %v468
  %470 = vmatprep.subr.mxu0 0.0
  %v471 = vand.u32 %v50, 4294901760
  %v472 = vsub.f32 %v50, %v471
  %v473 = vand.u32 %v472, 4294901760
  %v474 = vsub.f32 %v472, %v473
  %v475 = vand.u32 %v474, 4294901760
  %476 = vmatpush1.msra.mxu0 %v475
  %477 = vmatprep.subr.mxu0 0.0
  %v478 = vand.u32 %v51, 4294901760
  %v479 = vsub.f32 %v51, %v478
  %v480 = vand.u32 %v479, 4294901760
  %v481 = vsub.f32 %v479, %v480
  %v482 = vand.u32 %v481, 4294901760
  %483 = vmatpush1.msra.mxu0 %v482
  %484 = vmatprep.subr.mxu0 0.0
  %v485 = vand.u32 %v52, 4294901760
  %v486 = vsub.f32 %v52, %v485
  %v487 = vand.u32 %v486, 4294901760
  %v488 = vsub.f32 %v486, %v487
  %v489 = vand.u32 %v488, 4294901760
  %490 = vmatpush1.msra.mxu0 %v489
  %491 = vmatprep.subr.mxu0 0.0
  %v492 = vand.u32 %v53, 4294901760
  %v493 = vsub.f32 %v53, %v492
  %v494 = vand.u32 %v493, 4294901760
  %v495 = vsub.f32 %v493, %v494
  %v496 = vand.u32 %v495, 4294901760
  %497 = vmatpush1.msra.mxu0 %v496
  %498 = vmatprep.subr.mxu0 0.0
  %v499 = vand.u32 %v54, 4294901760
  %v500 = vsub.f32 %v54, %v499
  %v501 = vand.u32 %v500, 4294901760
  %v502 = vsub.f32 %v500, %v501
  %v503 = vand.u32 %v502, 4294901760
  %504 = vmatpush1.msra.mxu0 %v503
  %505 = vmatprep.subr.mxu0 0.0
  %v506 = vand.u32 %v55, 4294901760
  %v507 = vsub.f32 %v55, %v506
  %v508 = vand.u32 %v507, 4294901760
  %v509 = vsub.f32 %v507, %v508
  %v510 = vand.u32 %v509, 4294901760
  %511 = vmatpush1.msra.mxu0 %v510
  %512 = vmatprep.subr.mxu0 0.0
  %v513 = vand.u32 %v56, 4294901760
  %v514 = vsub.f32 %v56, %v513
  %v515 = vand.u32 %v514, 4294901760
  %v516 = vsub.f32 %v514, %v515
  %v517 = vand.u32 %v516, 4294901760
  %518 = vmatpush1.msra.mxu0 %v517
  %519 = vmatprep.subr.mxu0 0.0
  %v520 = vand.u32 %v57, 4294901760
  %v521 = vsub.f32 %v57, %v520
  %v522 = vand.u32 %v521, 4294901760
  %v523 = vsub.f32 %v521, %v522
  %v524 = vand.u32 %v523, 4294901760
  %525 = vmatpush1.msra.mxu0 %v524
  %526 = vmatprep.subr.mxu0 0.0
  %v527 = vand.u32 %v58, 4294901760
  %v528 = vsub.f32 %v58, %v527
  %v529 = vand.u32 %v528, 4294901760
  %v530 = vsub.f32 %v528, %v529
  %v531 = vand.u32 %v530, 4294901760
  %532 = vmatpush1.msra.mxu0 %v531
  %533 = vmatprep.subr.mxu0 0.0
  %v534 = vand.u32 %v59, 4294901760
  %v535 = vsub.f32 %v59, %v534
  %v536 = vand.u32 %v535, 4294901760
  %v537 = vsub.f32 %v535, %v536
  %v538 = vand.u32 %v537, 4294901760
  %539 = vmatpush1.msra.mxu0 %v538
  %540 = vmatprep.subr.mxu0 0.0
  %v541 = vand.u32 %v60, 4294901760
  %v542 = vsub.f32 %v60, %v541
  %v543 = vand.u32 %v542, 4294901760
  %v544 = vsub.f32 %v542, %v543
  %v545 = vand.u32 %v544, 4294901760
  %546 = vmatpush1.msra.mxu0 %v545
  %547 = vmatprep.subr.mxu0 0.0
  %v548 = vand.u32 %v61, 4294901760
  %v549 = vsub.f32 %v61, %v548
  %v550 = vand.u32 %v549, 4294901760
  %v551 = vsub.f32 %v549, %v550
  %v552 = vand.u32 %v551, 4294901760
  %553 = vmatpush1.msra.mxu0 %v552
  %554 = vmatprep.subr.mxu0 0.0
  %v555 = vand.u32 %v62, 4294901760
  %v556 = vsub.f32 %v62, %v555
  %v557 = vand.u32 %v556, 4294901760
  %v558 = vsub.f32 %v556, %v557
  %v559 = vand.u32 %v558, 4294901760
  %560 = vmatpush1.msra.mxu0 %v559
  %561 = vmatprep.subr.mxu0 0.0
  %v562 = vand.u32 %v63, 4294901760
  %v563 = vsub.f32 %v63, %v562
  %v564 = vand.u32 %v563, 4294901760
  %v565 = vsub.f32 %v563, %v564
  %v566 = vand.u32 %v565, 4294901760
  %567 = vmatpush1.msra.mxu0 %v566
  %568 = vmatprep.subr.mxu0 0.0
  %v569 = vand.u32 %v116, 4294901760
  %v570 = vsub.f32 %v116, %v569
  %v571 = vand.u32 %v570, 4294901760
  %v572 = vsub.f32 %v570, %v571
  %v573 = vand.u32 %v572, 4294901760
  %574 = vmatpush1.msra.mxu0 %v573
  %575 = vmatprep.subr.mxu0 0.0
  %576 = vmatpush1.msra.mxu0 0.0
  %577 = vmatprep.subr.mxu0 0.0
  %578 = vmatpush1.msra.mxu0 0.0
  %579 = vmatprep.subr.mxu0 0.0
  %580 = vmatpush1.msra.mxu0 0.0
  %581 = vmatprep.subr.mxu0 0.0
  %582 = vmatpush1.msra.mxu0 0.0
  %583 = vmatprep.subr.mxu0 0.0
  %584 = vmatpush1.msra.mxu0 0.0
  %585 = vmatprep.subr.mxu0 0.0
  %586 = vmatpush1.msra.mxu0 0.0
  %587 = vmatprep.subr.mxu0 0.0
  %588 = vmatpush1.msra.mxu0 0.0
  %589 = vmatprep.subr.mxu0 0.0
  %590 = vmatpush1.msra.mxu0 0.0
  %591 = vmatprep.subr.mxu0 0.0
  %592 = vmatpush1.msra.mxu0 0.0
  %593 = vmatprep.subr.mxu0 0.0
  %594 = vmatpush1.msra.mxu0 0.0
  %595 = vmatprep.subr.mxu0 0.0
  %596 = vmatpush1.msra.mxu0 0.0
  %597 = vmatprep.subr.mxu0 0.0
  %598 = vmatpush1.msra.mxu0 0.0
  %599 = vmatprep.subr.mxu0 0.0
  %600 = vmatpush1.msra.mxu0 0.0
  %v601 = vand.u32 %v67, 4294901760
  %602 = vmatprep.mubr.f32.mxu0 %v601
  %v603 = vand.u32 %v14, 4294901760
  %604 = vmatmul.mubr.f32.gmra.mrb[0].mxu0 %v603
  %v605 = vpop.f32.mrb[0].mxu0
  %v606 = vadd.f32 %v214, %v605
  %v607 = vpop.f32.mrb[0].mxu0
  %v608 = vand.u32 %v70, 4294901760
  %609 = vmatprep.mubr.f32.mxu0 %v608
  %v610 = vand.u32 %v16, 4294901760
  %611 = vmatmul.mubr.f32.gmra.mrb[0].mxu0 %v610
  %v612 = vpop.f32.mrb[0].mxu0
  %v613 = vadd.f32 %v229, %v612
  %v614 = vpop.f32.mrb[0].mxu0
  %v615 = vand.u32 %v73, 4294901760
  %616 = vmatprep.mubr.f32.mxu0 %v615
  %v617 = vand.u32 %v18, 4294901760
  %618 = vmatmul.mubr.f32.gmra.mrb[0].mxu0 %v617
  %v619 = vpop.f32.mrb[0].mxu0
  %v620 = vadd.f32 %v244, %v619
  %v621 = vpop.f32.mrb[0].mxu0
  %v622 = vand.u32 %v76, 4294901760
  %623 = vmatprep.mubr.f32.mxu0 %v622
  %v624 = vand.u32 %v20, 4294901760
  %625 = vmatmul.mubr.f32.gmra.mrb[0].mxu0 %v624
  %v626 = vpop.f32.mrb[0].mxu0
  %v627 = vadd.f32 %v259, %v626
  %v628 = vpop.f32.mrb[0].mxu0
  %v629 = vand.u32 %v79, 4294901760
  %630 = vmatprep.mubr.f32.mxu0 %v629
  %v631 = vand.u32 %v22, 4294901760
  %632 = vmatmul.mubr.f32.gmra.mrb[0].mxu0 %v631
  %v633 = vpop.f32.mrb[0].mxu0
  %v634 = vadd.f32 %v274, %v633
  %v635 = vpop.f32.mrb[0].mxu0
  %v636 = vand.u32 %v82, 4294901760
  %637 = vmatprep.mubr.f32.mxu0 %v636
  %v638 = vand.u32 %v24, 4294901760
  %639 = vmatmul.mubr.f32.gmra.mrb[0].mxu0 %v638
  %v640 = vpop.f32.mrb[0].mxu0
  %v641 = vadd.f32 %v289, %v640
  %v642 = vpop.f32.mrb[0].mxu0
  %v643 = vand.u32 %v85, 4294901760
  %644 = vmatprep.mubr.f32.mxu0 %v643
  %v645 = vand.u32 %v26, 4294901760
  %646 = vmatmul.mubr.f32.gmra.mrb[0].mxu0 %v645
  %v647 = vpop.f32.mrb[0].mxu0
  %v648 = vadd.f32 %v304, %v647
  %v649 = vpop.f32.mrb[0].mxu0
  %v650 = vand.u32 %v88, 4294901760
  %651 = vmatprep.mubr.f32.mxu0 %v650
  %v652 = vand.u32 %v28, 4294901760
  %653 = vmatmul.mubr.f32.gmra.mrb[0].mxu0 %v652
  %v654 = vpop.f32.mrb[0].mxu0
  %v655 = vadd.f32 %v319, %v654
  %v656 = vpop.f32.mrb[0].mxu0
  %v657 = vand.u32 %v91, 4294901760
  %658 = vmatprep.mubr.f32.mxu0 %v657
  %v659 = vand.u32 %v30, 4294901760
  %660 = vmatmul.mubr.f32.gmra.mrb[0].mxu0 %v659
  %v661 = vpop.f32.mrb[0].mxu0
  %v662 = vadd.f32 %v334, %v661
  %v663 = vpop.f32.mrb[0].mxu0
  %v664 = vand.u32 %v94, 4294901760
  %665 = vmatprep.mubr.f32.mxu0 %v664
  %v666 = vand.u32 %v32, 4294901760
  %667 = vmatmul.mubr.f32.gmra.mrb[0].mxu0 %v666
  %v668 = vpop.f32.mrb[0].mxu0
  %v669 = vadd.f32 %v349, %v668
  %v670 = vpop.f32.mrb[0].mxu0
  %v671 = vand.u32 %v97, 4294901760
  %672 = vmatprep.mubr.f32.mxu0 %v671
  %v673 = vand.u32 %v34, 4294901760
  %674 = vmatmul.mubr.f32.gmra.mrb[0].mxu0 %v673
  %v675 = vpop.f32.mrb[0].mxu0
  %v676 = vadd.f32 %v364, %v675
  %v677 = vpop.f32.mrb[0].mxu0
  %v678 = vand.u32 %v100, 4294901760
  %679 = vmatprep.mubr.f32.mxu0 %v678
  %v680 = vand.u32 %v36, 4294901760
  %681 = vmatmul.mubr.f32.gmra.mrb[0].mxu0 %v680
  %v682 = vpop.f32.mrb[0].mxu0
  %v683 = vadd.f32 %v379, %v682
  %v684 = vpop.f32.mrb[0].mxu0
  %v685 = vand.u32 %v103, 4294901760
  %686 = vmatprep.mubr.f32.mxu0 %v685
  %v687 = vand.u32 %v38, 4294901760
  %688 = vmatmul.mubr.f32.gmra.mrb[0].mxu0 %v687
  %v689 = vpop.f32.mrb[0].mxu0
  %v690 = vadd.f32 %v394, %v689
  %v691 = vpop.f32.mrb[0].mxu0
  %v692 = vand.u32 %v106, 4294901760
  %693 = vmatprep.mubr.f32.mxu0 %v692
  %v694 = vand.u32 %v40, 4294901760
  %695 = vmatmul.mubr.f32.gmra.mrb[0].mxu0 %v694
  %v696 = vpop.f32.mrb[0].mxu0
  %v697 = vadd.f32 %v409, %v696
  %v698 = vpop.f32.mrb[0].mxu0
  %v699 = vand.u32 %v109, 4294901760
  %700 = vmatprep.mubr.f32.mxu0 %v699
  %v701 = vand.u32 %v42, 4294901760
  %702 = vmatmul.mubr.f32.gmra.mrb[0].mxu0 %v701
  %v703 = vpop.f32.mrb[0].mxu0
  %v704 = vadd.f32 %v424, %v703
  %v705 = vpop.f32.mrb[0].mxu0
  %v706 = vand.u32 %v112, 4294901760
  %707 = vmatprep.mubr.f32.mxu0 %v706
  %v708 = vand.u32 %v44, 4294901760
  %709 = vmatmul.mubr.f32.gmra.mrb[0].mxu0 %v708
  %v710 = vpop.f32.mrb[0].mxu0
  %v711 = vadd.f32 %v439, %v710
  %v712 = vpop.f32.mrb[0].mxu0
  %713 = vdwg.mxu0
  %714 = vmatprep.subr.mxu0 0.0
  %v715 = vand.u32 %v46, 4294901760
  %v716 = vsub.f32 %v46, %v715
  %717 = vmatpush1.msra.mxu0 %v716
  %718 = vmatprep.subr.mxu0 0.0
  %v719 = vand.u32 %v47, 4294901760
  %v720 = vsub.f32 %v47, %v719
  %721 = vmatpush1.msra.mxu0 %v720
  %722 = vmatprep.subr.mxu0 0.0
  %v723 = vand.u32 %v48, 4294901760
  %v724 = vsub.f32 %v48, %v723
  %725 = vmatpush1.msra.mxu0 %v724
  %726 = vmatprep.subr.mxu0 0.0
  %v727 = vand.u32 %v49, 4294901760
  %v728 = vsub.f32 %v49, %v727
  %729 = vmatpush1.msra.mxu0 %v728
  %730 = vmatprep.subr.mxu0 0.0
  %v731 = vand.u32 %v50, 4294901760
  %v732 = vsub.f32 %v50, %v731
  %733 = vmatpush1.msra.mxu0 %v732
  %734 = vmatprep.subr.mxu0 0.0
  %v735 = vand.u32 %v51, 4294901760
  %v736 = vsub.f32 %v51, %v735
  %737 = vmatpush1.msra.mxu0 %v736
  %738 = vmatprep.subr.mxu0 0.0
  %v739 = vand.u32 %v52, 4294901760
  %v740 = vsub.f32 %v52, %v739
  %741 = vmatpush1.msra.mxu0 %v740
  %742 = vmatprep.subr.mxu0 0.0
  %v743 = vand.u32 %v53, 4294901760
  %v744 = vsub.f32 %v53, %v743
  %745 = vmatpush1.msra.mxu0 %v744
  %746 = vmatprep.subr.mxu0 0.0
  %v747 = vand.u32 %v54, 4294901760
  %v748 = vsub.f32 %v54, %v747
  %749 = vmatpush1.msra.mxu0 %v748
  %750 = vmatprep.subr.mxu0 0.0
  %v751 = vand.u32 %v55, 4294901760
  %v752 = vsub.f32 %v55, %v751
  %753 = vmatpush1.msra.mxu0 %v752
  %754 = vmatprep.subr.mxu0 0.0
  %v755 = vand.u32 %v56, 4294901760
  %v756 = vsub.f32 %v56, %v755
  %757 = vmatpush1.msra.mxu0 %v756
  %758 = vmatprep.subr.mxu0 0.0
  %v759 = vand.u32 %v57, 4294901760
  %v760 = vsub.f32 %v57, %v759
  %761 = vmatpush1.msra.mxu0 %v760
  %762 = vmatprep.subr.mxu0 0.0
  %v763 = vand.u32 %v58, 4294901760
  %v764 = vsub.f32 %v58, %v763
  %765 = vmatpush1.msra.mxu0 %v764
  %766 = vmatprep.subr.mxu0 0.0
  %v767 = vand.u32 %v59, 4294901760
  %v768 = vsub.f32 %v59, %v767
  %769 = vmatpush1.msra.mxu0 %v768
  %770 = vmatprep.subr.mxu0 0.0
  %v771 = vand.u32 %v60, 4294901760
  %v772 = vsub.f32 %v60, %v771
  %773 = vmatpush1.msra.mxu0 %v772
  %774 = vmatprep.subr.mxu0 0.0
  %v775 = vand.u32 %v61, 4294901760
  %v776 = vsub.f32 %v61, %v775
  %777 = vmatpush1.msra.mxu0 %v776
  %778 = vmatprep.subr.mxu0 0.0
  %v779 = vand.u32 %v62, 4294901760
  %v780 = vsub.f32 %v62, %v779
  %781 = vmatpush1.msra.mxu0 %v780
  %782 = vmatprep.subr.mxu0 0.0
  %v783 = vand.u32 %v63, 4294901760
  %v784 = vsub.f32 %v63, %v783
  %785 = vmatpush1.msra.mxu0 %v784
  %786 = vmatprep.subr.mxu0 0.0
  %v787 = vand.u32 %v116, 4294901760
  %v788 = vsub.f32 %v116, %v787
  %789 = vmatpush1.msra.mxu0 %v788
  %790 = vmatprep.subr.mxu0 0.0
  %791 = vmatpush1.msra.mxu0 0.0
  %792 = vmatprep.subr.mxu0 0.0
  %793 = vmatpush1.msra.mxu0 0.0
  %794 = vmatprep.subr.mxu0 0.0
  %795 = vmatpush1.msra.mxu0 0.0
  %796 = vmatprep.subr.mxu0 0.0
  %797 = vmatpush1.msra.mxu0 0.0
  %798 = vmatprep.subr.mxu0 0.0
  %799 = vmatpush1.msra.mxu0 0.0
  %800 = vmatprep.subr.mxu0 0.0
  %801 = vmatpush1.msra.mxu0 0.0
  %802 = vmatprep.subr.mxu0 0.0
  %803 = vmatpush1.msra.mxu0 0.0
  %804 = vmatprep.subr.mxu0 0.0
  %805 = vmatpush1.msra.mxu0 0.0
  %806 = vmatprep.subr.mxu0 0.0
  %807 = vmatpush1.msra.mxu0 0.0
  %808 = vmatprep.subr.mxu0 0.0
  %809 = vmatpush1.msra.mxu0 0.0
  %810 = vmatprep.subr.mxu0 0.0
  %811 = vmatpush1.msra.mxu0 0.0
  %812 = vmatprep.subr.mxu0 0.0
  %813 = vmatpush1.msra.mxu0 0.0
  %814 = vmatprep.subr.mxu0 0.0
  %815 = vmatpush1.msra.mxu0 0.0
  %v816 = vand.u32 %v67, 4294901760
  %v817 = vsub.f32 %v67, %v816
  %818 = vmatprep.mubr.f32.mxu0 %v817
  %v819 = vand.u32 %v14, 4294901760
  %v820 = vsub.f32 %v14, %v819
  %821 = vmatmul.mubr.f32.gmra.mrb[0].mxu0 %v820
  %v822 = vpop.f32.mrb[0].mxu0
  %v823 = vadd.f32 %v606, %v822
  %v824 = vpop.f32.mrb[0].mxu0
  %v825 = vand.u32 %v70, 4294901760
  %v826 = vsub.f32 %v70, %v825
  %827 = vmatprep.mubr.f32.mxu0 %v826
  %v828 = vand.u32 %v16, 4294901760
  %v829 = vsub.f32 %v16, %v828
  %830 = vmatmul.mubr.f32.gmra.mrb[0].mxu0 %v829
  %v831 = vpop.f32.mrb[0].mxu0
  %v832 = vadd.f32 %v613, %v831
  %v833 = vpop.f32.mrb[0].mxu0
  %v834 = vand.u32 %v73, 4294901760
  %v835 = vsub.f32 %v73, %v834
  %836 = vmatprep.mubr.f32.mxu0 %v835
  %v837 = vand.u32 %v18, 4294901760
  %v838 = vsub.f32 %v18, %v837
  %839 = vmatmul.mubr.f32.gmra.mrb[0].mxu0 %v838
  %v840 = vpop.f32.mrb[0].mxu0
  %v841 = vadd.f32 %v620, %v840
  %v842 = vpop.f32.mrb[0].mxu0
  %v843 = vand.u32 %v76, 4294901760
  %v844 = vsub.f32 %v76, %v843
  %845 = vmatprep.mubr.f32.mxu0 %v844
  %v846 = vand.u32 %v20, 4294901760
  %v847 = vsub.f32 %v20, %v846
  %848 = vmatmul.mubr.f32.gmra.mrb[0].mxu0 %v847
  %v849 = vpop.f32.mrb[0].mxu0
  %v850 = vadd.f32 %v627, %v849
  %v851 = vpop.f32.mrb[0].mxu0
  %v852 = vand.u32 %v79, 4294901760
  %v853 = vsub.f32 %v79, %v852
  %854 = vmatprep.mubr.f32.mxu0 %v853
  %v855 = vand.u32 %v22, 4294901760
  %v856 = vsub.f32 %v22, %v855
  %857 = vmatmul.mubr.f32.gmra.mrb[0].mxu0 %v856
  %v858 = vpop.f32.mrb[0].mxu0
  %v859 = vadd.f32 %v634, %v858
  %v860 = vpop.f32.mrb[0].mxu0
  %v861 = vand.u32 %v82, 4294901760
  %v862 = vsub.f32 %v82, %v861
  %863 = vmatprep.mubr.f32.mxu0 %v862
  %v864 = vand.u32 %v24, 4294901760
  %v865 = vsub.f32 %v24, %v864
  %866 = vmatmul.mubr.f32.gmra.mrb[0].mxu0 %v865
  %v867 = vpop.f32.mrb[0].mxu0
  %v868 = vadd.f32 %v641, %v867
  %v869 = vpop.f32.mrb[0].mxu0
  %v870 = vand.u32 %v85, 4294901760
  %v871 = vsub.f32 %v85, %v870
  %872 = vmatprep.mubr.f32.mxu0 %v871
  %v873 = vand.u32 %v26, 4294901760
  %v874 = vsub.f32 %v26, %v873
  %875 = vmatmul.mubr.f32.gmra.mrb[0].mxu0 %v874
  %v876 = vpop.f32.mrb[0].mxu0
  %v877 = vadd.f32 %v648, %v876
  %v878 = vpop.f32.mrb[0].mxu0
  %v879 = vand.u32 %v88, 4294901760
  %v880 = vsub.f32 %v88, %v879
  %881 = vmatprep.mubr.f32.mxu0 %v880
  %v882 = vand.u32 %v28, 4294901760
  %v883 = vsub.f32 %v28, %v882
  %884 = vmatmul.mubr.f32.gmra.mrb[0].mxu0 %v883
  %v885 = vpop.f32.mrb[0].mxu0
  %v886 = vadd.f32 %v655, %v885
  %v887 = vpop.f32.mrb[0].mxu0
  %v888 = vand.u32 %v91, 4294901760
  %v889 = vsub.f32 %v91, %v888
  %890 = vmatprep.mubr.f32.mxu0 %v889
  %v891 = vand.u32 %v30, 4294901760
  %v892 = vsub.f32 %v30, %v891
  %893 = vmatmul.mubr.f32.gmra.mrb[0].mxu0 %v892
  %v894 = vpop.f32.mrb[0].mxu0
  %v895 = vadd.f32 %v662, %v894
  %v896 = vpop.f32.mrb[0].mxu0
  %v897 = vand.u32 %v94, 4294901760
  %v898 = vsub.f32 %v94, %v897
  %899 = vmatprep.mubr.f32.mxu0 %v898
  %v900 = vand.u32 %v32, 4294901760
  %v901 = vsub.f32 %v32, %v900
  %902 = vmatmul.mubr.f32.gmra.mrb[0].mxu0 %v901
  %v903 = vpop.f32.mrb[0].mxu0
  %v904 = vadd.f32 %v669, %v903
  %v905 = vpop.f32.mrb[0].mxu0
  %v906 = vand.u32 %v97, 4294901760
  %v907 = vsub.f32 %v97, %v906
  %908 = vmatprep.mubr.f32.mxu0 %v907
  %v909 = vand.u32 %v34, 4294901760
  %v910 = vsub.f32 %v34, %v909
  %911 = vmatmul.mubr.f32.gmra.mrb[0].mxu0 %v910
  %v912 = vpop.f32.mrb[0].mxu0
  %v913 = vadd.f32 %v676, %v912
  %v914 = vpop.f32.mrb[0].mxu0
  %v915 = vand.u32 %v100, 4294901760
  %v916 = vsub.f32 %v100, %v915
  %917 = vmatprep.mubr.f32.mxu0 %v916
  %v918 = vand.u32 %v36, 4294901760
  %v919 = vsub.f32 %v36, %v918
  %920 = vmatmul.mubr.f32.gmra.mrb[0].mxu0 %v919
  %v921 = vpop.f32.mrb[0].mxu0
  %v922 = vadd.f32 %v683, %v921
  %v923 = vpop.f32.mrb[0].mxu0
  %v924 = vand.u32 %v103, 4294901760
  %v925 = vsub.f32 %v103, %v924
  %926 = vmatprep.mubr.f32.mxu0 %v925
  %v927 = vand.u32 %v38, 4294901760
  %v928 = vsub.f32 %v38, %v927
  %929 = vmatmul.mubr.f32.gmra.mrb[0].mxu0 %v928
  %v930 = vpop.f32.mrb[0].mxu0
  %v931 = vadd.f32 %v690, %v930
  %v932 = vpop.f32.mrb[0].mxu0
  %v933 = vand.u32 %v106, 4294901760
  %v934 = vsub.f32 %v106, %v933
  %935 = vmatprep.mubr.f32.mxu0 %v934
  %v936 = vand.u32 %v40, 4294901760
  %v937 = vsub.f32 %v40, %v936
  %938 = vmatmul.mubr.f32.gmra.mrb[0].mxu0 %v937
  %v939 = vpop.f32.mrb[0].mxu0
  %v940 = vadd.f32 %v697, %v939
  %v941 = vpop.f32.mrb[0].mxu0
  %v942 = vand.u32 %v109, 4294901760
  %v943 = vsub.f32 %v109, %v942
  %944 = vmatprep.mubr.f32.mxu0 %v943
  %v945 = vand.u32 %v42, 4294901760
  %v946 = vsub.f32 %v42, %v945
  %947 = vmatmul.mubr.f32.gmra.mrb[0].mxu0 %v946
  %v948 = vpop.f32.mrb[0].mxu0
  %v949 = vadd.f32 %v704, %v948
  %v950 = vpop.f32.mrb[0].mxu0
  %v951 = vand.u32 %v112, 4294901760
  %v952 = vsub.f32 %v112, %v951
  %953 = vmatprep.mubr.f32.mxu0 %v952
  %v954 = vand.u32 %v44, 4294901760
  %v955 = vsub.f32 %v44, %v954
  %956 = vmatmul.mubr.f32.gmra.mrb[0].mxu0 %v955
  %v957 = vpop.f32.mrb[0].mxu0
  %v958 = vadd.f32 %v711, %v957
  %v959 = vpop.f32.mrb[0].mxu0
  %960 = vdwg.mxu0
  %961 = vmatprep.subr.mxu0 0.0
  %v962 = vand.u32 %v46, 4294901760
  %963 = vmatpush1.msra.mxu0 %v962
  %964 = vmatprep.subr.mxu0 0.0
  %v965 = vand.u32 %v47, 4294901760
  %966 = vmatpush1.msra.mxu0 %v965
  %967 = vmatprep.subr.mxu0 0.0
  %v968 = vand.u32 %v48, 4294901760
  %969 = vmatpush1.msra.mxu0 %v968
  %970 = vmatprep.subr.mxu0 0.0
  %v971 = vand.u32 %v49, 4294901760
  %972 = vmatpush1.msra.mxu0 %v971
  %973 = vmatprep.subr.mxu0 0.0
  %v974 = vand.u32 %v50, 4294901760
  %975 = vmatpush1.msra.mxu0 %v974
  %976 = vmatprep.subr.mxu0 0.0
  %v977 = vand.u32 %v51, 4294901760
  %978 = vmatpush1.msra.mxu0 %v977
  %979 = vmatprep.subr.mxu0 0.0
  %v980 = vand.u32 %v52, 4294901760
  %981 = vmatpush1.msra.mxu0 %v980
  %982 = vmatprep.subr.mxu0 0.0
  %v983 = vand.u32 %v53, 4294901760
  %984 = vmatpush1.msra.mxu0 %v983
  %985 = vmatprep.subr.mxu0 0.0
  %v986 = vand.u32 %v54, 4294901760
  %987 = vmatpush1.msra.mxu0 %v986
  %988 = vmatprep.subr.mxu0 0.0
  %v989 = vand.u32 %v55, 4294901760
  %990 = vmatpush1.msra.mxu0 %v989
  %991 = vmatprep.subr.mxu0 0.0
  %v992 = vand.u32 %v56, 4294901760
  %993 = vmatpush1.msra.mxu0 %v992
  %994 = vmatprep.subr.mxu0 0.0
  %v995 = vand.u32 %v57, 4294901760
  %996 = vmatpush1.msra.mxu0 %v995
  %997 = vmatprep.subr.mxu0 0.0
  %v998 = vand.u32 %v58, 4294901760
  %999 = vmatpush1.msra.mxu0 %v998
  %1000 = vmatprep.subr.mxu0 0.0
  %v1001 = vand.u32 %v59, 4294901760
  %1002 = vmatpush1.msra.mxu0 %v1001
  %1003 = vmatprep.subr.mxu0 0.0
  %v1004 = vand.u32 %v60, 4294901760
  %1005 = vmatpush1.msra.mxu0 %v1004
  %1006 = vmatprep.subr.mxu0 0.0
  %v1007 = vand.u32 %v61, 4294901760
  %1008 = vmatpush1.msra.mxu0 %v1007
  %1009 = vmatprep.subr.mxu0 0.0
  %v1010 = vand.u32 %v62, 4294901760
  %1011 = vmatpush1.msra.mxu0 %v1010
  %1012 = vmatprep.subr.mxu0 0.0
  %v1013 = vand.u32 %v63, 4294901760
  %1014 = vmatpush1.msra.mxu0 %v1013
  %1015 = vmatprep.subr.mxu0 0.0
  %v1016 = vand.u32 %v116, 4294901760
  %1017 = vmatpush1.msra.mxu0 %v1016
  %1018 = vmatprep.subr.mxu0 0.0
  %1019 = vmatpush1.msra.mxu0 0.0
  %1020 = vmatprep.subr.mxu0 0.0
  %1021 = vmatpush1.msra.mxu0 0.0
  %1022 = vmatprep.subr.mxu0 0.0
  %1023 = vmatpush1.msra.mxu0 0.0
  %1024 = vmatprep.subr.mxu0 0.0
  %1025 = vmatpush1.msra.mxu0 0.0
  %1026 = vmatprep.subr.mxu0 0.0
  %1027 = vmatpush1.msra.mxu0 0.0
  %1028 = vmatprep.subr.mxu0 0.0
  %1029 = vmatpush1.msra.mxu0 0.0
  %1030 = vmatprep.subr.mxu0 0.0
  %1031 = vmatpush1.msra.mxu0 0.0
  %1032 = vmatprep.subr.mxu0 0.0
  %1033 = vmatpush1.msra.mxu0 0.0
  %1034 = vmatprep.subr.mxu0 0.0
  %1035 = vmatpush1.msra.mxu0 0.0
  %1036 = vmatprep.subr.mxu0 0.0
  %1037 = vmatpush1.msra.mxu0 0.0
  %1038 = vmatprep.subr.mxu0 0.0
  %1039 = vmatpush1.msra.mxu0 0.0
  %1040 = vmatprep.subr.mxu0 0.0
  %1041 = vmatpush1.msra.mxu0 0.0
  %1042 = vmatprep.subr.mxu0 0.0
  %1043 = vmatpush1.msra.mxu0 0.0
  %v1044 = vand.u32 %v67, 4294901760
  %v1045 = vsub.f32 %v67, %v1044
  %v1046 = vand.u32 %v1045, 4294901760
  %1047 = vmatprep.mubr.f32.mxu0 %v1046
  %v1048 = vand.u32 %v14, 4294901760
  %v1049 = vsub.f32 %v14, %v1048
  %v1050 = vand.u32 %v1049, 4294901760
  %1051 = vmatmul.mubr.f32.gmra.mrb[0].mxu0 %v1050
  %v1052 = vpop.f32.mrb[0].mxu0
  %v1053 = vadd.f32 %v823, %v1052
  %v1054 = vpop.f32.mrb[0].mxu0
  %v1055 = vand.u32 %v70, 4294901760
  %v1056 = vsub.f32 %v70, %v1055
  %v1057 = vand.u32 %v1056, 4294901760
  %1058 = vmatprep.mubr.f32.mxu0 %v1057
  %v1059 = vand.u32 %v16, 4294901760
  %v1060 = vsub.f32 %v16, %v1059
  %v1061 = vand.u32 %v1060, 4294901760
  %1062 = vmatmul.mubr.f32.gmra.mrb[0].mxu0 %v1061
  %v1063 = vpop.f32.mrb[0].mxu0
  %v1064 = vadd.f32 %v832, %v1063
  %v1065 = vpop.f32.mrb[0].mxu0
  %v1066 = vand.u32 %v73, 4294901760
  %v1067 = vsub.f32 %v73, %v1066
  %v1068 = vand.u32 %v1067, 4294901760
  %1069 = vmatprep.mubr.f32.mxu0 %v1068
  %v1070 = vand.u32 %v18, 4294901760
  %v1071 = vsub.f32 %v18, %v1070
  %v1072 = vand.u32 %v1071, 4294901760
  %1073 = vmatmul.mubr.f32.gmra.mrb[0].mxu0 %v1072
  %v1074 = vpop.f32.mrb[0].mxu0
  %v1075 = vadd.f32 %v841, %v1074
  %v1076 = vpop.f32.mrb[0].mxu0
  %v1077 = vand.u32 %v76, 4294901760
  %v1078 = vsub.f32 %v76, %v1077
  %v1079 = vand.u32 %v1078, 4294901760
  %1080 = vmatprep.mubr.f32.mxu0 %v1079
  %v1081 = vand.u32 %v20, 4294901760
  %v1082 = vsub.f32 %v20, %v1081
  %v1083 = vand.u32 %v1082, 4294901760
  %1084 = vmatmul.mubr.f32.gmra.mrb[0].mxu0 %v1083
  %v1085 = vpop.f32.mrb[0].mxu0
  %v1086 = vadd.f32 %v850, %v1085
  %v1087 = vpop.f32.mrb[0].mxu0
  %v1088 = vand.u32 %v79, 4294901760
  %v1089 = vsub.f32 %v79, %v1088
  %v1090 = vand.u32 %v1089, 4294901760
  %1091 = vmatprep.mubr.f32.mxu0 %v1090
  %v1092 = vand.u32 %v22, 4294901760
  %v1093 = vsub.f32 %v22, %v1092
  %v1094 = vand.u32 %v1093, 4294901760
  %1095 = vmatmul.mubr.f32.gmra.mrb[0].mxu0 %v1094
  %v1096 = vpop.f32.mrb[0].mxu0
  %v1097 = vadd.f32 %v859, %v1096
  %v1098 = vpop.f32.mrb[0].mxu0
  %v1099 = vand.u32 %v82, 4294901760
  %v1100 = vsub.f32 %v82, %v1099
  %v1101 = vand.u32 %v1100, 4294901760
  %1102 = vmatprep.mubr.f32.mxu0 %v1101
  %v1103 = vand.u32 %v24, 4294901760
  %v1104 = vsub.f32 %v24, %v1103
  %v1105 = vand.u32 %v1104, 4294901760
  %1106 = vmatmul.mubr.f32.gmra.mrb[0].mxu0 %v1105
  %v1107 = vpop.f32.mrb[0].mxu0
  %v1108 = vadd.f32 %v868, %v1107
  %v1109 = vpop.f32.mrb[0].mxu0
  %v1110 = vand.u32 %v85, 4294901760
  %v1111 = vsub.f32 %v85, %v1110
  %v1112 = vand.u32 %v1111, 4294901760
  %1113 = vmatprep.mubr.f32.mxu0 %v1112
  %v1114 = vand.u32 %v26, 4294901760
  %v1115 = vsub.f32 %v26, %v1114
  %v1116 = vand.u32 %v1115, 4294901760
  %1117 = vmatmul.mubr.f32.gmra.mrb[0].mxu0 %v1116
  %v1118 = vpop.f32.mrb[0].mxu0
  %v1119 = vadd.f32 %v877, %v1118
  %v1120 = vpop.f32.mrb[0].mxu0
  %v1121 = vand.u32 %v88, 4294901760
  %v1122 = vsub.f32 %v88, %v1121
  %v1123 = vand.u32 %v1122, 4294901760
  %1124 = vmatprep.mubr.f32.mxu0 %v1123
  %v1125 = vand.u32 %v28, 4294901760
  %v1126 = vsub.f32 %v28, %v1125
  %v1127 = vand.u32 %v1126, 4294901760
  %1128 = vmatmul.mubr.f32.gmra.mrb[0].mxu0 %v1127
  %v1129 = vpop.f32.mrb[0].mxu0
  %v1130 = vadd.f32 %v886, %v1129
  %v1131 = vpop.f32.mrb[0].mxu0
  %v1132 = vand.u32 %v91, 4294901760
  %v1133 = vsub.f32 %v91, %v1132
  %v1134 = vand.u32 %v1133, 4294901760
  %1135 = vmatprep.mubr.f32.mxu0 %v1134
  %v1136 = vand.u32 %v30, 4294901760
  %v1137 = vsub.f32 %v30, %v1136
  %v1138 = vand.u32 %v1137, 4294901760
  %1139 = vmatmul.mubr.f32.gmra.mrb[0].mxu0 %v1138
  %v1140 = vpop.f32.mrb[0].mxu0
  %v1141 = vadd.f32 %v895, %v1140
  %v1142 = vpop.f32.mrb[0].mxu0
  %v1143 = vand.u32 %v94, 4294901760
  %v1144 = vsub.f32 %v94, %v1143
  %v1145 = vand.u32 %v1144, 4294901760
  %1146 = vmatprep.mubr.f32.mxu0 %v1145
  %v1147 = vand.u32 %v32, 4294901760
  %v1148 = vsub.f32 %v32, %v1147
  %v1149 = vand.u32 %v1148, 4294901760
  %1150 = vmatmul.mubr.f32.gmra.mrb[0].mxu0 %v1149
  %v1151 = vpop.f32.mrb[0].mxu0
  %v1152 = vadd.f32 %v904, %v1151
  %v1153 = vpop.f32.mrb[0].mxu0
  %v1154 = vand.u32 %v97, 4294901760
  %v1155 = vsub.f32 %v97, %v1154
  %v1156 = vand.u32 %v1155, 4294901760
  %1157 = vmatprep.mubr.f32.mxu0 %v1156
  %v1158 = vand.u32 %v34, 4294901760
  %v1159 = vsub.f32 %v34, %v1158
  %v1160 = vand.u32 %v1159, 4294901760
  %1161 = vmatmul.mubr.f32.gmra.mrb[0].mxu0 %v1160
  %v1162 = vpop.f32.mrb[0].mxu0
  %v1163 = vadd.f32 %v913, %v1162
  %v1164 = vpop.f32.mrb[0].mxu0
  %v1165 = vand.u32 %v100, 4294901760
  %v1166 = vsub.f32 %v100, %v1165
  %v1167 = vand.u32 %v1166, 4294901760
  %1168 = vmatprep.mubr.f32.mxu0 %v1167
  %v1169 = vand.u32 %v36, 4294901760
  %v1170 = vsub.f32 %v36, %v1169
  %v1171 = vand.u32 %v1170, 4294901760
  %1172 = vmatmul.mubr.f32.gmra.mrb[0].mxu0 %v1171
  %v1173 = vpop.f32.mrb[0].mxu0
  %v1174 = vadd.f32 %v922, %v1173
  %v1175 = vpop.f32.mrb[0].mxu0
  %v1176 = vand.u32 %v103, 4294901760
  %v1177 = vsub.f32 %v103, %v1176
  %v1178 = vand.u32 %v1177, 4294901760
  %1179 = vmatprep.mubr.f32.mxu0 %v1178
  %v1180 = vand.u32 %v38, 4294901760
  %v1181 = vsub.f32 %v38, %v1180
  %v1182 = vand.u32 %v1181, 4294901760
  %1183 = vmatmul.mubr.f32.gmra.mrb[0].mxu0 %v1182
  %v1184 = vpop.f32.mrb[0].mxu0
  %v1185 = vadd.f32 %v931, %v1184
  %v1186 = vpop.f32.mrb[0].mxu0
  %v1187 = vand.u32 %v106, 4294901760
  %v1188 = vsub.f32 %v106, %v1187
  %v1189 = vand.u32 %v1188, 4294901760
  %1190 = vmatprep.mubr.f32.mxu0 %v1189
  %v1191 = vand.u32 %v40, 4294901760
  %v1192 = vsub.f32 %v40, %v1191
  %v1193 = vand.u32 %v1192, 4294901760
  %1194 = vmatmul.mubr.f32.gmra.mrb[0].mxu0 %v1193
  %v1195 = vpop.f32.mrb[0].mxu0
  %v1196 = vadd.f32 %v940, %v1195
  %v1197 = vpop.f32.mrb[0].mxu0
  %v1198 = vand.u32 %v109, 4294901760
  %v1199 = vsub.f32 %v109, %v1198
  %v1200 = vand.u32 %v1199, 4294901760
  %1201 = vmatprep.mubr.f32.mxu0 %v1200
  %v1202 = vand.u32 %v42, 4294901760
  %v1203 = vsub.f32 %v42, %v1202
  %v1204 = vand.u32 %v1203, 4294901760
  %1205 = vmatmul.mubr.f32.gmra.mrb[0].mxu0 %v1204
  %v1206 = vpop.f32.mrb[0].mxu0
  %v1207 = vadd.f32 %v949, %v1206
  %v1208 = vpop.f32.mrb[0].mxu0
  %v1209 = vand.u32 %v112, 4294901760
  %v1210 = vsub.f32 %v112, %v1209
  %v1211 = vand.u32 %v1210, 4294901760
  %1212 = vmatprep.mubr.f32.mxu0 %v1211
  %v1213 = vand.u32 %v44, 4294901760
  %v1214 = vsub.f32 %v44, %v1213
  %v1215 = vand.u32 %v1214, 4294901760
  %1216 = vmatmul.mubr.f32.gmra.mrb[0].mxu0 %v1215
  %v1217 = vpop.f32.mrb[0].mxu0
  %v1218 = vadd.f32 %v958, %v1217
  %v1219 = vpop.f32.mrb[0].mxu0
  %1220 = vdwg.mxu0
  %1221 = vmatprep.subr.mxu0 0.0
  %v1222 = vand.u32 %v46, 4294901760
  %v1223 = vsub.f32 %v46, %v1222
  %v1224 = vand.u32 %v1223, 4294901760
  %1225 = vmatpush1.msra.mxu0 %v1224
  %1226 = vmatprep.subr.mxu0 0.0
  %v1227 = vand.u32 %v47, 4294901760
  %v1228 = vsub.f32 %v47, %v1227
  %v1229 = vand.u32 %v1228, 4294901760
  %1230 = vmatpush1.msra.mxu0 %v1229
  %1231 = vmatprep.subr.mxu0 0.0
  %v1232 = vand.u32 %v48, 4294901760
  %v1233 = vsub.f32 %v48, %v1232
  %v1234 = vand.u32 %v1233, 4294901760
  %1235 = vmatpush1.msra.mxu0 %v1234
  %1236 = vmatprep.subr.mxu0 0.0
  %v1237 = vand.u32 %v49, 4294901760
  %v1238 = vsub.f32 %v49, %v1237
  %v1239 = vand.u32 %v1238, 4294901760
  %1240 = vmatpush1.msra.mxu0 %v1239
  %1241 = vmatprep.subr.mxu0 0.0
  %v1242 = vand.u32 %v50, 4294901760
  %v1243 = vsub.f32 %v50, %v1242
  %v1244 = vand.u32 %v1243, 4294901760
  %1245 = vmatpush1.msra.mxu0 %v1244
  %1246 = vmatprep.subr.mxu0 0.0
  %v1247 = vand.u32 %v51, 4294901760
  %v1248 = vsub.f32 %v51, %v1247
  %v1249 = vand.u32 %v1248, 4294901760
  %1250 = vmatpush1.msra.mxu0 %v1249
  %1251 = vmatprep.subr.mxu0 0.0
  %v1252 = vand.u32 %v52, 4294901760
  %v1253 = vsub.f32 %v52, %v1252
  %v1254 = vand.u32 %v1253, 4294901760
  %1255 = vmatpush1.msra.mxu0 %v1254
  %1256 = vmatprep.subr.mxu0 0.0
  %v1257 = vand.u32 %v53, 4294901760
  %v1258 = vsub.f32 %v53, %v1257
  %v1259 = vand.u32 %v1258, 4294901760
  %1260 = vmatpush1.msra.mxu0 %v1259
  %1261 = vmatprep.subr.mxu0 0.0
  %v1262 = vand.u32 %v54, 4294901760
  %v1263 = vsub.f32 %v54, %v1262
  %v1264 = vand.u32 %v1263, 4294901760
  %1265 = vmatpush1.msra.mxu0 %v1264
  %1266 = vmatprep.subr.mxu0 0.0
  %v1267 = vand.u32 %v55, 4294901760
  %v1268 = vsub.f32 %v55, %v1267
  %v1269 = vand.u32 %v1268, 4294901760
  %1270 = vmatpush1.msra.mxu0 %v1269
  %1271 = vmatprep.subr.mxu0 0.0
  %v1272 = vand.u32 %v56, 4294901760
  %v1273 = vsub.f32 %v56, %v1272
  %v1274 = vand.u32 %v1273, 4294901760
  %1275 = vmatpush1.msra.mxu0 %v1274
  %1276 = vmatprep.subr.mxu0 0.0
  %v1277 = vand.u32 %v57, 4294901760
  %v1278 = vsub.f32 %v57, %v1277
  %v1279 = vand.u32 %v1278, 4294901760
  %1280 = vmatpush1.msra.mxu0 %v1279
  %1281 = vmatprep.subr.mxu0 0.0
  %v1282 = vand.u32 %v58, 4294901760
  %v1283 = vsub.f32 %v58, %v1282
  %v1284 = vand.u32 %v1283, 4294901760
  %1285 = vmatpush1.msra.mxu0 %v1284
  %1286 = vmatprep.subr.mxu0 0.0
  %v1287 = vand.u32 %v59, 4294901760
  %v1288 = vsub.f32 %v59, %v1287
  %v1289 = vand.u32 %v1288, 4294901760
  %1290 = vmatpush1.msra.mxu0 %v1289
  %1291 = vmatprep.subr.mxu0 0.0
  %v1292 = vand.u32 %v60, 4294901760
  %v1293 = vsub.f32 %v60, %v1292
  %v1294 = vand.u32 %v1293, 4294901760
  %1295 = vmatpush1.msra.mxu0 %v1294
  %1296 = vmatprep.subr.mxu0 0.0
  %v1297 = vand.u32 %v61, 4294901760
  %v1298 = vsub.f32 %v61, %v1297
  %v1299 = vand.u32 %v1298, 4294901760
  %1300 = vmatpush1.msra.mxu0 %v1299
  %1301 = vmatprep.subr.mxu0 0.0
  %v1302 = vand.u32 %v62, 4294901760
  %v1303 = vsub.f32 %v62, %v1302
  %v1304 = vand.u32 %v1303, 4294901760
  %1305 = vmatpush1.msra.mxu0 %v1304
  %1306 = vmatprep.subr.mxu0 0.0
  %v1307 = vand.u32 %v63, 4294901760
  %v1308 = vsub.f32 %v63, %v1307
  %v1309 = vand.u32 %v1308, 4294901760
  %1310 = vmatpush1.msra.mxu0 %v1309
  %1311 = vmatprep.subr.mxu0 0.0
  %v1312 = vand.u32 %v116, 4294901760
  %v1313 = vsub.f32 %v116, %v1312
  %v1314 = vand.u32 %v1313, 4294901760
  %1315 = vmatpush1.msra.mxu0 %v1314
  %1316 = vmatprep.subr.mxu0 0.0
  %1317 = vmatpush1.msra.mxu0 0.0
  %1318 = vmatprep.subr.mxu0 0.0
  %1319 = vmatpush1.msra.mxu0 0.0
  %1320 = vmatprep.subr.mxu0 0.0
  %1321 = vmatpush1.msra.mxu0 0.0
  %1322 = vmatprep.subr.mxu0 0.0
  %1323 = vmatpush1.msra.mxu0 0.0
  %1324 = vmatprep.subr.mxu0 0.0
  %1325 = vmatpush1.msra.mxu0 0.0
  %1326 = vmatprep.subr.mxu0 0.0
  %1327 = vmatpush1.msra.mxu0 0.0
  %1328 = vmatprep.subr.mxu0 0.0
  %1329 = vmatpush1.msra.mxu0 0.0
  %1330 = vmatprep.subr.mxu0 0.0
  %1331 = vmatpush1.msra.mxu0 0.0
  %1332 = vmatprep.subr.mxu0 0.0
  %1333 = vmatpush1.msra.mxu0 0.0
  %1334 = vmatprep.subr.mxu0 0.0
  %1335 = vmatpush1.msra.mxu0 0.0
  %1336 = vmatprep.subr.mxu0 0.0
  %1337 = vmatpush1.msra.mxu0 0.0
  %1338 = vmatprep.subr.mxu0 0.0
  %1339 = vmatpush1.msra.mxu0 0.0
  %1340 = vmatprep.subr.mxu0 0.0
  %1341 = vmatpush1.msra.mxu0 0.0
  %v1342 = vand.u32 %v67, 4294901760
  %1343 = vmatprep.mubr.f32.mxu0 %v1342
  %v1344 = vand.u32 %v14, 4294901760
  %1345 = vmatmul.mubr.f32.gmra.mrb[0].mxu0 %v1344
  %v1346 = vpop.f32.mrb[0].mxu0
  %v1347 = vadd.f32 %v1053, %v1346
  %v1348 = vpop.f32.mrb[0].mxu0
  %v1349 = vand.u32 %v70, 4294901760
  %1350 = vmatprep.mubr.f32.mxu0 %v1349
  %v1351 = vand.u32 %v16, 4294901760
  %1352 = vmatmul.mubr.f32.gmra.mrb[0].mxu0 %v1351
  %v1353 = vpop.f32.mrb[0].mxu0
  %v1354 = vadd.f32 %v1064, %v1353
  %v1355 = vpop.f32.mrb[0].mxu0
  %v1356 = vand.u32 %v73, 4294901760
  %1357 = vmatprep.mubr.f32.mxu0 %v1356
  %v1358 = vand.u32 %v18, 4294901760
  %1359 = vmatmul.mubr.f32.gmra.mrb[0].mxu0 %v1358
  %v1360 = vpop.f32.mrb[0].mxu0
  %v1361 = vadd.f32 %v1075, %v1360
  %v1362 = vpop.f32.mrb[0].mxu0
  %v1363 = vand.u32 %v76, 4294901760
  %1364 = vmatprep.mubr.f32.mxu0 %v1363
  %v1365 = vand.u32 %v20, 4294901760
  %1366 = vmatmul.mubr.f32.gmra.mrb[0].mxu0 %v1365
  %v1367 = vpop.f32.mrb[0].mxu0
  %v1368 = vadd.f32 %v1086, %v1367
  %v1369 = vpop.f32.mrb[0].mxu0
  %v1370 = vand.u32 %v79, 4294901760
  %1371 = vmatprep.mubr.f32.mxu0 %v1370
  %v1372 = vand.u32 %v22, 4294901760
  %1373 = vmatmul.mubr.f32.gmra.mrb[0].mxu0 %v1372
  %v1374 = vpop.f32.mrb[0].mxu0
  %v1375 = vadd.f32 %v1097, %v1374
  %v1376 = vpop.f32.mrb[0].mxu0
  %v1377 = vand.u32 %v82, 4294901760
  %1378 = vmatprep.mubr.f32.mxu0 %v1377
  %v1379 = vand.u32 %v24, 4294901760
  %1380 = vmatmul.mubr.f32.gmra.mrb[0].mxu0 %v1379
  %v1381 = vpop.f32.mrb[0].mxu0
  %v1382 = vadd.f32 %v1108, %v1381
  %v1383 = vpop.f32.mrb[0].mxu0
  %v1384 = vand.u32 %v85, 4294901760
  %1385 = vmatprep.mubr.f32.mxu0 %v1384
  %v1386 = vand.u32 %v26, 4294901760
  %1387 = vmatmul.mubr.f32.gmra.mrb[0].mxu0 %v1386
  %v1388 = vpop.f32.mrb[0].mxu0
  %v1389 = vadd.f32 %v1119, %v1388
  %v1390 = vpop.f32.mrb[0].mxu0
  %v1391 = vand.u32 %v88, 4294901760
  %1392 = vmatprep.mubr.f32.mxu0 %v1391
  %v1393 = vand.u32 %v28, 4294901760
  %1394 = vmatmul.mubr.f32.gmra.mrb[0].mxu0 %v1393
  %v1395 = vpop.f32.mrb[0].mxu0
  %v1396 = vadd.f32 %v1130, %v1395
  %v1397 = vpop.f32.mrb[0].mxu0
  %v1398 = vand.u32 %v91, 4294901760
  %1399 = vmatprep.mubr.f32.mxu0 %v1398
  %v1400 = vand.u32 %v30, 4294901760
  %1401 = vmatmul.mubr.f32.gmra.mrb[0].mxu0 %v1400
  %v1402 = vpop.f32.mrb[0].mxu0
  %v1403 = vadd.f32 %v1141, %v1402
  %v1404 = vpop.f32.mrb[0].mxu0
  %v1405 = vand.u32 %v94, 4294901760
  %1406 = vmatprep.mubr.f32.mxu0 %v1405
  %v1407 = vand.u32 %v32, 4294901760
  %1408 = vmatmul.mubr.f32.gmra.mrb[0].mxu0 %v1407
  %v1409 = vpop.f32.mrb[0].mxu0
  %v1410 = vadd.f32 %v1152, %v1409
  %v1411 = vpop.f32.mrb[0].mxu0
  %v1412 = vand.u32 %v97, 4294901760
  %1413 = vmatprep.mubr.f32.mxu0 %v1412
  %v1414 = vand.u32 %v34, 4294901760
  %1415 = vmatmul.mubr.f32.gmra.mrb[0].mxu0 %v1414
  %v1416 = vpop.f32.mrb[0].mxu0
  %v1417 = vadd.f32 %v1163, %v1416
  %v1418 = vpop.f32.mrb[0].mxu0
  %v1419 = vand.u32 %v100, 4294901760
  %1420 = vmatprep.mubr.f32.mxu0 %v1419
  %v1421 = vand.u32 %v36, 4294901760
  %1422 = vmatmul.mubr.f32.gmra.mrb[0].mxu0 %v1421
  %v1423 = vpop.f32.mrb[0].mxu0
  %v1424 = vadd.f32 %v1174, %v1423
  %v1425 = vpop.f32.mrb[0].mxu0
  %v1426 = vand.u32 %v103, 4294901760
  %1427 = vmatprep.mubr.f32.mxu0 %v1426
  %v1428 = vand.u32 %v38, 4294901760
  %1429 = vmatmul.mubr.f32.gmra.mrb[0].mxu0 %v1428
  %v1430 = vpop.f32.mrb[0].mxu0
  %v1431 = vadd.f32 %v1185, %v1430
  %v1432 = vpop.f32.mrb[0].mxu0
  %v1433 = vand.u32 %v106, 4294901760
  %1434 = vmatprep.mubr.f32.mxu0 %v1433
  %v1435 = vand.u32 %v40, 4294901760
  %1436 = vmatmul.mubr.f32.gmra.mrb[0].mxu0 %v1435
  %v1437 = vpop.f32.mrb[0].mxu0
  %v1438 = vadd.f32 %v1196, %v1437
  %v1439 = vpop.f32.mrb[0].mxu0
  %v1440 = vand.u32 %v109, 4294901760
  %1441 = vmatprep.mubr.f32.mxu0 %v1440
  %v1442 = vand.u32 %v42, 4294901760
  %1443 = vmatmul.mubr.f32.gmra.mrb[0].mxu0 %v1442
  %v1444 = vpop.f32.mrb[0].mxu0
  %v1445 = vadd.f32 %v1207, %v1444
  %v1446 = vpop.f32.mrb[0].mxu0
  %v1447 = vand.u32 %v112, 4294901760
  %1448 = vmatprep.mubr.f32.mxu0 %v1447
  %v1449 = vand.u32 %v44, 4294901760
  %1450 = vmatmul.mubr.f32.gmra.mrb[0].mxu0 %v1449
  %v1451 = vpop.f32.mrb[0].mxu0
  %v1452 = vadd.f32 %v1218, %v1451
  %v1453 = vpop.f32.mrb[0].mxu0
  %1454 = vdwg.mxu0
  %1455 = vmatprep.subr.mxu0 0.0
  %v1456 = vand.u32 %v46, 4294901760
  %1457 = vmatpush1.msra.mxu0 %v1456
  %1458 = vmatprep.subr.mxu0 0.0
  %v1459 = vand.u32 %v47, 4294901760
  %1460 = vmatpush1.msra.mxu0 %v1459
  %1461 = vmatprep.subr.mxu0 0.0
  %v1462 = vand.u32 %v48, 4294901760
  %1463 = vmatpush1.msra.mxu0 %v1462
  %1464 = vmatprep.subr.mxu0 0.0
  %v1465 = vand.u32 %v49, 4294901760
  %1466 = vmatpush1.msra.mxu0 %v1465
  %1467 = vmatprep.subr.mxu0 0.0
  %v1468 = vand.u32 %v50, 4294901760
  %1469 = vmatpush1.msra.mxu0 %v1468
  %1470 = vmatprep.subr.mxu0 0.0
  %v1471 = vand.u32 %v51, 4294901760
  %1472 = vmatpush1.msra.mxu0 %v1471
  %1473 = vmatprep.subr.mxu0 0.0
  %v1474 = vand.u32 %v52, 4294901760
  %1475 = vmatpush1.msra.mxu0 %v1474
  %1476 = vmatprep.subr.mxu0 0.0
  %v1477 = vand.u32 %v53, 4294901760
  %1478 = vmatpush1.msra.mxu0 %v1477
  %1479 = vmatprep.subr.mxu0 0.0
  %v1480 = vand.u32 %v54, 4294901760
  %1481 = vmatpush1.msra.mxu0 %v1480
  %1482 = vmatprep.subr.mxu0 0.0
  %v1483 = vand.u32 %v55, 4294901760
  %1484 = vmatpush1.msra.mxu0 %v1483
  %1485 = vmatprep.subr.mxu0 0.0
  %v1486 = vand.u32 %v56, 4294901760
  %1487 = vmatpush1.msra.mxu0 %v1486
  %1488 = vmatprep.subr.mxu0 0.0
  %v1489 = vand.u32 %v57, 4294901760
  %1490 = vmatpush1.msra.mxu0 %v1489
  %1491 = vmatprep.subr.mxu0 0.0
  %v1492 = vand.u32 %v58, 4294901760
  %1493 = vmatpush1.msra.mxu0 %v1492
  %1494 = vmatprep.subr.mxu0 0.0
  %v1495 = vand.u32 %v59, 4294901760
  %1496 = vmatpush1.msra.mxu0 %v1495
  %1497 = vmatprep.subr.mxu0 0.0
  %v1498 = vand.u32 %v60, 4294901760
  %1499 = vmatpush1.msra.mxu0 %v1498
  %1500 = vmatprep.subr.mxu0 0.0
  %v1501 = vand.u32 %v61, 4294901760
  %1502 = vmatpush1.msra.mxu0 %v1501
  %1503 = vmatprep.subr.mxu0 0.0
  %v1504 = vand.u32 %v62, 4294901760
  %1505 = vmatpush1.msra.mxu0 %v1504
  %1506 = vmatprep.subr.mxu0 0.0
  %v1507 = vand.u32 %v63, 4294901760
  %1508 = vmatpush1.msra.mxu0 %v1507
  %1509 = vmatprep.subr.mxu0 0.0
  %v1510 = vand.u32 %v116, 4294901760
  %1511 = vmatpush1.msra.mxu0 %v1510
  %1512 = vmatprep.subr.mxu0 0.0
  %1513 = vmatpush1.msra.mxu0 0.0
  %1514 = vmatprep.subr.mxu0 0.0
  %1515 = vmatpush1.msra.mxu0 0.0
  %1516 = vmatprep.subr.mxu0 0.0
  %1517 = vmatpush1.msra.mxu0 0.0
  %1518 = vmatprep.subr.mxu0 0.0
  %1519 = vmatpush1.msra.mxu0 0.0
  %1520 = vmatprep.subr.mxu0 0.0
  %1521 = vmatpush1.msra.mxu0 0.0
  %1522 = vmatprep.subr.mxu0 0.0
  %1523 = vmatpush1.msra.mxu0 0.0
  %1524 = vmatprep.subr.mxu0 0.0
  %1525 = vmatpush1.msra.mxu0 0.0
  %1526 = vmatprep.subr.mxu0 0.0
  %1527 = vmatpush1.msra.mxu0 0.0
  %1528 = vmatprep.subr.mxu0 0.0
  %1529 = vmatpush1.msra.mxu0 0.0
  %1530 = vmatprep.subr.mxu0 0.0
  %1531 = vmatpush1.msra.mxu0 0.0
  %1532 = vmatprep.subr.mxu0 0.0
  %1533 = vmatpush1.msra.mxu0 0.0
  %1534 = vmatprep.subr.mxu0 0.0
  %1535 = vmatpush1.msra.mxu0 0.0
  %1536 = vmatprep.subr.mxu0 0.0
  %1537 = vmatpush1.msra.mxu0 0.0
  %v1538 = vand.u32 %v67, 4294901760
  %1539 = vmatprep.mubr.f32.mxu0 %v1538
  %v1540 = vand.u32 %v14, 4294901760
  %1541 = vmatmul.mubr.f32.gmra.mrb[0].mxu0 %v1540
  %v1542 = vpop.f32.mrb[0].mxu0
  %v1543 = vadd.f32 %v1347, %v1542
  %v1544 = vpop.f32.mrb[0].mxu0
  %v1545 = vand.u32 %v70, 4294901760
  %1546 = vmatprep.mubr.f32.mxu0 %v1545
  %v1547 = vand.u32 %v16, 4294901760
  %1548 = vmatmul.mubr.f32.gmra.mrb[0].mxu0 %v1547
  %v1549 = vpop.f32.mrb[0].mxu0
  %v1550 = vadd.f32 %v1354, %v1549
  %v1551 = vpop.f32.mrb[0].mxu0
  %v1552 = vand.u32 %v73, 4294901760
  %1553 = vmatprep.mubr.f32.mxu0 %v1552
  %v1554 = vand.u32 %v18, 4294901760
  %1555 = vmatmul.mubr.f32.gmra.mrb[0].mxu0 %v1554
  %v1556 = vpop.f32.mrb[0].mxu0
  %v1557 = vadd.f32 %v1361, %v1556
  %v1558 = vpop.f32.mrb[0].mxu0
  %v1559 = vand.u32 %v76, 4294901760
  %1560 = vmatprep.mubr.f32.mxu0 %v1559
  %v1561 = vand.u32 %v20, 4294901760
  %1562 = vmatmul.mubr.f32.gmra.mrb[0].mxu0 %v1561
  %v1563 = vpop.f32.mrb[0].mxu0
  %v1564 = vadd.f32 %v1368, %v1563
  %v1565 = vpop.f32.mrb[0].mxu0
  %v1566 = vand.u32 %v79, 4294901760
  %1567 = vmatprep.mubr.f32.mxu0 %v1566
  %v1568 = vand.u32 %v22, 4294901760
  %1569 = vmatmul.mubr.f32.gmra.mrb[0].mxu0 %v1568
  %v1570 = vpop.f32.mrb[0].mxu0
  %v1571 = vadd.f32 %v1375, %v1570
  %v1572 = vpop.f32.mrb[0].mxu0
  %v1573 = vand.u32 %v82, 4294901760
  %1574 = vmatprep.mubr.f32.mxu0 %v1573
  %v1575 = vand.u32 %v24, 4294901760
  %1576 = vmatmul.mubr.f32.gmra.mrb[0].mxu0 %v1575
  %v1577 = vpop.f32.mrb[0].mxu0
  %v1578 = vadd.f32 %v1382, %v1577
  %v1579 = vpop.f32.mrb[0].mxu0
  %v1580 = vand.u32 %v85, 4294901760
  %1581 = vmatprep.mubr.f32.mxu0 %v1580
  %v1582 = vand.u32 %v26, 4294901760
  %1583 = vmatmul.mubr.f32.gmra.mrb[0].mxu0 %v1582
  %v1584 = vpop.f32.mrb[0].mxu0
  %v1585 = vadd.f32 %v1389, %v1584
  %v1586 = vpop.f32.mrb[0].mxu0
  %v1587 = vand.u32 %v88, 4294901760
  %1588 = vmatprep.mubr.f32.mxu0 %v1587
  %v1589 = vand.u32 %v28, 4294901760
  %1590 = vmatmul.mubr.f32.gmra.mrb[0].mxu0 %v1589
  %v1591 = vpop.f32.mrb[0].mxu0
  %v1592 = vadd.f32 %v1396, %v1591
  %v1593 = vpop.f32.mrb[0].mxu0
  %v1594 = vand.u32 %v91, 4294901760
  %1595 = vmatprep.mubr.f32.mxu0 %v1594
  %v1596 = vand.u32 %v30, 4294901760
  %1597 = vmatmul.mubr.f32.gmra.mrb[0].mxu0 %v1596
  %v1598 = vpop.f32.mrb[0].mxu0
  %v1599 = vadd.f32 %v1403, %v1598
  %v1600 = vpop.f32.mrb[0].mxu0
  %v1601 = vand.u32 %v94, 4294901760
  %1602 = vmatprep.mubr.f32.mxu0 %v1601
  %v1603 = vand.u32 %v32, 4294901760
  %1604 = vmatmul.mubr.f32.gmra.mrb[0].mxu0 %v1603
  %v1605 = vpop.f32.mrb[0].mxu0
  %v1606 = vadd.f32 %v1410, %v1605
  %v1607 = vpop.f32.mrb[0].mxu0
  %v1608 = vand.u32 %v97, 4294901760
  %1609 = vmatprep.mubr.f32.mxu0 %v1608
  %v1610 = vand.u32 %v34, 4294901760
  %1611 = vmatmul.mubr.f32.gmra.mrb[0].mxu0 %v1610
  %v1612 = vpop.f32.mrb[0].mxu0
  %v1613 = vadd.f32 %v1417, %v1612
  %v1614 = vpop.f32.mrb[0].mxu0
  %v1615 = vand.u32 %v100, 4294901760
  %1616 = vmatprep.mubr.f32.mxu0 %v1615
  %v1617 = vand.u32 %v36, 4294901760
  %1618 = vmatmul.mubr.f32.gmra.mrb[0].mxu0 %v1617
  %v1619 = vpop.f32.mrb[0].mxu0
  %v1620 = vadd.f32 %v1424, %v1619
  %v1621 = vpop.f32.mrb[0].mxu0
  %v1622 = vand.u32 %v103, 4294901760
  %1623 = vmatprep.mubr.f32.mxu0 %v1622
  %v1624 = vand.u32 %v38, 4294901760
  %1625 = vmatmul.mubr.f32.gmra.mrb[0].mxu0 %v1624
  %v1626 = vpop.f32.mrb[0].mxu0
  %v1627 = vadd.f32 %v1431, %v1626
  %v1628 = vpop.f32.mrb[0].mxu0
  %v1629 = vand.u32 %v106, 4294901760
  %1630 = vmatprep.mubr.f32.mxu0 %v1629
  %v1631 = vand.u32 %v40, 4294901760
  %1632 = vmatmul.mubr.f32.gmra.mrb[0].mxu0 %v1631
  %v1633 = vpop.f32.mrb[0].mxu0
  %v1634 = vadd.f32 %v1438, %v1633
  %v1635 = vpop.f32.mrb[0].mxu0
  %v1636 = vand.u32 %v109, 4294901760
  %1637 = vmatprep.mubr.f32.mxu0 %v1636
  %v1638 = vand.u32 %v42, 4294901760
  %1639 = vmatmul.mubr.f32.gmra.mrb[0].mxu0 %v1638
  %v1640 = vpop.f32.mrb[0].mxu0
  %v1641 = vadd.f32 %v1445, %v1640
  %v1642 = vpop.f32.mrb[0].mxu0
  %v1643 = vand.u32 %v112, 4294901760
  %1644 = vmatprep.mubr.f32.mxu0 %v1643
  %v1645 = vand.u32 %v44, 4294901760
  %1646 = vmatmul.mubr.f32.gmra.mrb[0].mxu0 %v1645
  %v1647 = vpop.f32.mrb[0].mxu0
  %v1648 = vadd.f32 %v1452, %v1647
  %v1649 = vpop.f32.mrb[0].mxu0
  %1650 = vdwg.mxu0
  %v1651 = vmul.f32 %v1543, %v1543
  %v1652 = vmul.f32 %v1550, %v1550
  %v1653 = vmul.f32 %v1557, %v1557
  %v1654 = vmul.f32 %v1564, %v1564
  %v1655 = vmul.f32 %v1571, %v1571
  %v1656 = vmul.f32 %v1578, %v1578
  %v1657 = vmul.f32 %v1585, %v1585
  %v1658 = vmul.f32 %v1592, %v1592
  %v1659 = vmul.f32 %v1599, %v1599
  %v1660 = vmul.f32 %v1606, %v1606
  %v1661 = vmul.f32 %v1613, %v1613
  %v1662 = vmul.f32 %v1620, %v1620
  %v1663 = vmul.f32 %v1627, %v1627
  %v1664 = vmul.f32 %v1634, %v1634
  %v1665 = vmul.f32 %v1641, %v1641
  %v1666 = vmul.f32 %v1648, %v1648
  %v1667 = vld [vmem:[%s2] sm:$0xff]
  %v1668 = vld [vmem:[%s2 + $0x8] sm:$0xff]
  %v1669 = vld [vmem:[%s2 + $0x10] sm:$0xff]
  %v1670 = vld [vmem:[%s2 + $0x18] sm:$0xff]
  %v1671 = vld [vmem:[%s2 + $0x20] sm:$0xff]
  %v1672 = vld [vmem:[%s2 + $0x28] sm:$0xff]
  %v1673 = vld [vmem:[%s2 + $0x30] sm:$0xff]
  %v1674 = vld [vmem:[%s2 + $0x38] sm:$0xff]
  %v1675 = vld [vmem:[%s2 + $0x40] sm:$0xff]
  %v1676 = vld [vmem:[%s2 + $0x48] sm:$0xff]
  %v1677 = vld [vmem:[%s2 + $0x50] sm:$0xff]
  %v1678 = vld [vmem:[%s2 + $0x58] sm:$0xff]
  %v1679 = vld [vmem:[%s2 + $0x60] sm:$0xff]
  %v1680 = vld [vmem:[%s2 + $0x68] sm:$0xff]
  %v1681 = vld [vmem:[%s2 + $0x70] sm:$0xff]
  %v1682 = vld [vmem:[%s2 + $0x78] sm:$0xff]
  %v1683 = vlaneseq
  %v1684 = vand.u32 %v1683, 127
  %vm1685 = vcmp.lt.s32.totalorder %v1684, 0
  %v1686 = vsub.s32 0, %v1684
  %v1687 = vsel %vm1685, %v1686, %v1684
  %v1688 = vshrl.u32 %v1687, 3
  %v1689 = vand.u32 %v1687, 7
  %v1690 = vsub.s32 0, %v1689
  %v1691 = vsel %vm1685, %v1690, %v1689
  %vm1692 = vcmp.ne.s32.totalorder %v1691, 0
  %vm1693 = vcmp.lt.s32.totalorder %v1691, 0
  %vm1694 = vmand %vm1693, %vm1692
  %v1695 = vadd.s32 %v1691, 8
  %v1696 = vsel %vm1694, %v1695, %v1691
  %vm1697 = vcmp.eq.s32.totalorder %v1696, 0
  %1698 = vmatprep.subr.mxu0 0.0
  %v1699 = vand.u32 %v1667, 4294901760
  %1700 = vmatpush1.msra.mxu0 %v1699
  %1701 = vmatprep.subr.mxu0 0.0
  %v1702 = vand.u32 %v1668, 4294901760
  %1703 = vmatpush1.msra.mxu0 %v1702
  %1704 = vmatprep.subr.mxu0 0.0
  %v1705 = vand.u32 %v1669, 4294901760
  %1706 = vmatpush1.msra.mxu0 %v1705
  %1707 = vmatprep.subr.mxu0 0.0
  %v1708 = vand.u32 %v1670, 4294901760
  %1709 = vmatpush1.msra.mxu0 %v1708
  %1710 = vmatprep.subr.mxu0 0.0
  %v1711 = vand.u32 %v1671, 4294901760
  %1712 = vmatpush1.msra.mxu0 %v1711
  %1713 = vmatprep.subr.mxu0 0.0
  %v1714 = vand.u32 %v1672, 4294901760
  %1715 = vmatpush1.msra.mxu0 %v1714
  %1716 = vmatprep.subr.mxu0 0.0
  %v1717 = vand.u32 %v1673, 4294901760
  %1718 = vmatpush1.msra.mxu0 %v1717
  %1719 = vmatprep.subr.mxu0 0.0
  %v1720 = vand.u32 %v1674, 4294901760
  %1721 = vmatpush1.msra.mxu0 %v1720
  %1722 = vmatprep.subr.mxu0 0.0
  %v1723 = vand.u32 %v1675, 4294901760
  %1724 = vmatpush1.msra.mxu0 %v1723
  %1725 = vmatprep.subr.mxu0 0.0
  %v1726 = vand.u32 %v1676, 4294901760
  %1727 = vmatpush1.msra.mxu0 %v1726
  %1728 = vmatprep.subr.mxu0 0.0
  %v1729 = vand.u32 %v1677, 4294901760
  %1730 = vmatpush1.msra.mxu0 %v1729
  %1731 = vmatprep.subr.mxu0 0.0
  %v1732 = vand.u32 %v1678, 4294901760
  %1733 = vmatpush1.msra.mxu0 %v1732
  %1734 = vmatprep.subr.mxu0 0.0
  %v1735 = vand.u32 %v1679, 4294901760
  %1736 = vmatpush1.msra.mxu0 %v1735
  %1737 = vmatprep.subr.mxu0 0.0
  %v1738 = vand.u32 %v1680, 4294901760
  %1739 = vmatpush1.msra.mxu0 %v1738
  %1740 = vmatprep.subr.mxu0 0.0
  %v1741 = vand.u32 %v1681, 4294901760
  %1742 = vmatpush1.msra.mxu0 %v1741
  %1743 = vmatprep.subr.mxu0 0.0
  %v1744 = vand.u32 %v1682, 4294901760
  %1745 = vmatpush1.msra.mxu0 %v1744
  %1746 = vmatprep.subr.mxu0 0.0
  %1747 = vmatpush1.msra.mxu0 0.0
  %1748 = vmatprep.subr.mxu0 0.0
  %1749 = vmatpush1.msra.mxu0 0.0
  %1750 = vmatprep.subr.mxu0 0.0
  %1751 = vmatpush1.msra.mxu0 0.0
  %1752 = vmatprep.subr.mxu0 0.0
  %1753 = vmatpush1.msra.mxu0 0.0
  %1754 = vmatprep.subr.mxu0 0.0
  %1755 = vmatpush1.msra.mxu0 0.0
  %1756 = vmatprep.subr.mxu0 0.0
  %1757 = vmatpush1.msra.mxu0 0.0
  %1758 = vmatprep.subr.mxu0 0.0
  %1759 = vmatpush1.msra.mxu0 0.0
  %1760 = vmatprep.subr.mxu0 0.0
  %1761 = vmatpush1.msra.mxu0 0.0
  %1762 = vmatprep.subr.mxu0 0.0
  %1763 = vmatpush1.msra.mxu0 0.0
  %1764 = vmatprep.subr.mxu0 0.0
  %1765 = vmatpush1.msra.mxu0 0.0
  %1766 = vmatprep.subr.mxu0 0.0
  %1767 = vmatpush1.msra.mxu0 0.0
  %1768 = vmatprep.subr.mxu0 0.0
  %1769 = vmatpush1.msra.mxu0 0.0
  %1770 = vmatprep.subr.mxu0 0.0
  %1771 = vmatpush1.msra.mxu0 0.0
  %1772 = vmatprep.subr.mxu0 0.0
  %1773 = vmatpush1.msra.mxu0 0.0
  %1774 = vmatprep.subr.mxu0 0.0
  %1775 = vmatpush1.msra.mxu0 0.0
  %1776 = vmatprep.subr.mxu0 0.0
  %1777 = vmatpush1.msra.mxu0 0.0
  %1778 = vmatprep.mubr.f32.mxu0 0.0
  %v1779 = vand.u32 %v1651, 4294901760
  %v1780 = vsub.f32 %v1651, %v1779
  %v1781 = vand.u32 %v1780, 4294901760
  %v1782 = vsub.f32 %v1780, %v1781
  %v1783 = vand.u32 %v1782, 4294901760
  %1784 = vmatmul.mubr.f32.gmra.mrb[0].mxu0 %v1783
  %v1785 = vpop.f32.mrb[0].mxu0
  %v1786 = vadd.f32 1.0, %v1785
  %v1787 = vpop.f32.mrb[0].mxu0
  %1788 = vmatprep.mubr.f32.mxu0 0.0
  %v1789 = vand.u32 %v1652, 4294901760
  %v1790 = vsub.f32 %v1652, %v1789
  %v1791 = vand.u32 %v1790, 4294901760
  %v1792 = vsub.f32 %v1790, %v1791
  %v1793 = vand.u32 %v1792, 4294901760
  %1794 = vmatmul.mubr.f32.gmra.mrb[0].mxu0 %v1793
  %v1795 = vpop.f32.mrb[0].mxu0
  %v1796 = vadd.f32 1.0, %v1795
  %v1797 = vpop.f32.mrb[0].mxu0
  %1798 = vmatprep.mubr.f32.mxu0 0.0
  %v1799 = vand.u32 %v1653, 4294901760
  %v1800 = vsub.f32 %v1653, %v1799
  %v1801 = vand.u32 %v1800, 4294901760
  %v1802 = vsub.f32 %v1800, %v1801
  %v1803 = vand.u32 %v1802, 4294901760
  %1804 = vmatmul.mubr.f32.gmra.mrb[0].mxu0 %v1803
  %v1805 = vpop.f32.mrb[0].mxu0
  %v1806 = vadd.f32 1.0, %v1805
  %v1807 = vpop.f32.mrb[0].mxu0
  %1808 = vmatprep.mubr.f32.mxu0 0.0
  %v1809 = vand.u32 %v1654, 4294901760
  %v1810 = vsub.f32 %v1654, %v1809
  %v1811 = vand.u32 %v1810, 4294901760
  %v1812 = vsub.f32 %v1810, %v1811
  %v1813 = vand.u32 %v1812, 4294901760
  %1814 = vmatmul.mubr.f32.gmra.mrb[0].mxu0 %v1813
  %v1815 = vpop.f32.mrb[0].mxu0
  %v1816 = vadd.f32 1.0, %v1815
  %v1817 = vpop.f32.mrb[0].mxu0
  %1818 = vmatprep.mubr.f32.mxu0 0.0
  %v1819 = vand.u32 %v1655, 4294901760
  %v1820 = vsub.f32 %v1655, %v1819
  %v1821 = vand.u32 %v1820, 4294901760
  %v1822 = vsub.f32 %v1820, %v1821
  %v1823 = vand.u32 %v1822, 4294901760
  %1824 = vmatmul.mubr.f32.gmra.mrb[0].mxu0 %v1823
  %v1825 = vpop.f32.mrb[0].mxu0
  %v1826 = vadd.f32 1.0, %v1825
  %v1827 = vpop.f32.mrb[0].mxu0
  %1828 = vmatprep.mubr.f32.mxu0 0.0
  %v1829 = vand.u32 %v1656, 4294901760
  %v1830 = vsub.f32 %v1656, %v1829
  %v1831 = vand.u32 %v1830, 4294901760
  %v1832 = vsub.f32 %v1830, %v1831
  %v1833 = vand.u32 %v1832, 4294901760
  %1834 = vmatmul.mubr.f32.gmra.mrb[0].mxu0 %v1833
  %v1835 = vpop.f32.mrb[0].mxu0
  %v1836 = vadd.f32 1.0, %v1835
  %v1837 = vpop.f32.mrb[0].mxu0
  %1838 = vmatprep.mubr.f32.mxu0 0.0
  %v1839 = vand.u32 %v1657, 4294901760
  %v1840 = vsub.f32 %v1657, %v1839
  %v1841 = vand.u32 %v1840, 4294901760
  %v1842 = vsub.f32 %v1840, %v1841
  %v1843 = vand.u32 %v1842, 4294901760
  %1844 = vmatmul.mubr.f32.gmra.mrb[0].mxu0 %v1843
  %v1845 = vpop.f32.mrb[0].mxu0
  %v1846 = vadd.f32 1.0, %v1845
  %v1847 = vpop.f32.mrb[0].mxu0
  %1848 = vmatprep.mubr.f32.mxu0 0.0
  %v1849 = vand.u32 %v1658, 4294901760
  %v1850 = vsub.f32 %v1658, %v1849
  %v1851 = vand.u32 %v1850, 4294901760
  %v1852 = vsub.f32 %v1850, %v1851
  %v1853 = vand.u32 %v1852, 4294901760
  %1854 = vmatmul.mubr.f32.gmra.mrb[0].mxu0 %v1853
  %v1855 = vpop.f32.mrb[0].mxu0
  %v1856 = vadd.f32 1.0, %v1855
  %v1857 = vpop.f32.mrb[0].mxu0
  %1858 = vmatprep.mubr.f32.mxu0 0.0
  %v1859 = vand.u32 %v1659, 4294901760
  %v1860 = vsub.f32 %v1659, %v1859
  %v1861 = vand.u32 %v1860, 4294901760
  %v1862 = vsub.f32 %v1860, %v1861
  %v1863 = vand.u32 %v1862, 4294901760
  %1864 = vmatmul.mubr.f32.gmra.mrb[0].mxu0 %v1863
  %v1865 = vpop.f32.mrb[0].mxu0
  %v1866 = vadd.f32 1.0, %v1865
  %v1867 = vpop.f32.mrb[0].mxu0
  %1868 = vmatprep.mubr.f32.mxu0 0.0
  %v1869 = vand.u32 %v1660, 4294901760
  %v1870 = vsub.f32 %v1660, %v1869
  %v1871 = vand.u32 %v1870, 4294901760
  %v1872 = vsub.f32 %v1870, %v1871
  %v1873 = vand.u32 %v1872, 4294901760
  %1874 = vmatmul.mubr.f32.gmra.mrb[0].mxu0 %v1873
  %v1875 = vpop.f32.mrb[0].mxu0
  %v1876 = vadd.f32 1.0, %v1875
  %v1877 = vpop.f32.mrb[0].mxu0
  %1878 = vmatprep.mubr.f32.mxu0 0.0
  %v1879 = vand.u32 %v1661, 4294901760
  %v1880 = vsub.f32 %v1661, %v1879
  %v1881 = vand.u32 %v1880, 4294901760
  %v1882 = vsub.f32 %v1880, %v1881
  %v1883 = vand.u32 %v1882, 4294901760
  %1884 = vmatmul.mubr.f32.gmra.mrb[0].mxu0 %v1883
  %v1885 = vpop.f32.mrb[0].mxu0
  %v1886 = vadd.f32 1.0, %v1885
  %v1887 = vpop.f32.mrb[0].mxu0
  %1888 = vmatprep.mubr.f32.mxu0 0.0
  %v1889 = vand.u32 %v1662, 4294901760
  %v1890 = vsub.f32 %v1662, %v1889
  %v1891 = vand.u32 %v1890, 4294901760
  %v1892 = vsub.f32 %v1890, %v1891
  %v1893 = vand.u32 %v1892, 4294901760
  %1894 = vmatmul.mubr.f32.gmra.mrb[0].mxu0 %v1893
  %v1895 = vpop.f32.mrb[0].mxu0
  %v1896 = vadd.f32 1.0, %v1895
  %v1897 = vpop.f32.mrb[0].mxu0
  %1898 = vmatprep.mubr.f32.mxu0 0.0
  %v1899 = vand.u32 %v1663, 4294901760
  %v1900 = vsub.f32 %v1663, %v1899
  %v1901 = vand.u32 %v1900, 4294901760
  %v1902 = vsub.f32 %v1900, %v1901
  %v1903 = vand.u32 %v1902, 4294901760
  %1904 = vmatmul.mubr.f32.gmra.mrb[0].mxu0 %v1903
  %v1905 = vpop.f32.mrb[0].mxu0
  %v1906 = vadd.f32 1.0, %v1905
  %v1907 = vpop.f32.mrb[0].mxu0
  %1908 = vmatprep.mubr.f32.mxu0 0.0
  %v1909 = vand.u32 %v1664, 4294901760
  %v1910 = vsub.f32 %v1664, %v1909
  %v1911 = vand.u32 %v1910, 4294901760
  %v1912 = vsub.f32 %v1910, %v1911
  %v1913 = vand.u32 %v1912, 4294901760
  %1914 = vmatmul.mubr.f32.gmra.mrb[0].mxu0 %v1913
  %v1915 = vpop.f32.mrb[0].mxu0
  %v1916 = vadd.f32 1.0, %v1915
  %v1917 = vpop.f32.mrb[0].mxu0
  %1918 = vmatprep.mubr.f32.mxu0 0.0
  %v1919 = vand.u32 %v1665, 4294901760
  %v1920 = vsub.f32 %v1665, %v1919
  %v1921 = vand.u32 %v1920, 4294901760
  %v1922 = vsub.f32 %v1920, %v1921
  %v1923 = vand.u32 %v1922, 4294901760
  %1924 = vmatmul.mubr.f32.gmra.mrb[0].mxu0 %v1923
  %v1925 = vpop.f32.mrb[0].mxu0
  %v1926 = vadd.f32 1.0, %v1925
  %v1927 = vpop.f32.mrb[0].mxu0
  %1928 = vmatprep.mubr.f32.mxu0 0.0
  %v1929 = vand.u32 %v1666, 4294901760
  %v1930 = vsub.f32 %v1666, %v1929
  %v1931 = vand.u32 %v1930, 4294901760
  %v1932 = vsub.f32 %v1930, %v1931
  %v1933 = vand.u32 %v1932, 4294901760
  %1934 = vmatmul.mubr.f32.gmra.mrb[0].mxu0 %v1933
  %v1935 = vpop.f32.mrb[0].mxu0
  %v1936 = vadd.f32 1.0, %v1935
  %v1937 = vpop.f32.mrb[0].mxu0
  %1938 = vdwg.mxu0
  %1939 = vmatprep.subr.mxu0 0.0
  %v1940 = vand.u32 %v1667, 4294901760
  %v1941 = vsub.f32 %v1667, %v1940
  %v1942 = vand.u32 %v1941, 4294901760
  %v1943 = vsub.f32 %v1941, %v1942
  %v1944 = vand.u32 %v1943, 4294901760
  %1945 = vmatpush1.msra.mxu0 %v1944
  %1946 = vmatprep.subr.mxu0 0.0
  %v1947 = vand.u32 %v1668, 4294901760
  %v1948 = vsub.f32 %v1668, %v1947
  %v1949 = vand.u32 %v1948, 4294901760
  %v1950 = vsub.f32 %v1948, %v1949
  %v1951 = vand.u32 %v1950, 4294901760
  %1952 = vmatpush1.msra.mxu0 %v1951
  %1953 = vmatprep.subr.mxu0 0.0
  %v1954 = vand.u32 %v1669, 4294901760
  %v1955 = vsub.f32 %v1669, %v1954
  %v1956 = vand.u32 %v1955, 4294901760
  %v1957 = vsub.f32 %v1955, %v1956
  %v1958 = vand.u32 %v1957, 4294901760
  %1959 = vmatpush1.msra.mxu0 %v1958
  %1960 = vmatprep.subr.mxu0 0.0
  %v1961 = vand.u32 %v1670, 4294901760
  %v1962 = vsub.f32 %v1670, %v1961
  %v1963 = vand.u32 %v1962, 4294901760
  %v1964 = vsub.f32 %v1962, %v1963
  %v1965 = vand.u32 %v1964, 4294901760
  %1966 = vmatpush1.msra.mxu0 %v1965
  %1967 = vmatprep.subr.mxu0 0.0
  %v1968 = vand.u32 %v1671, 4294901760
  %v1969 = vsub.f32 %v1671, %v1968
  %v1970 = vand.u32 %v1969, 4294901760
  %v1971 = vsub.f32 %v1969, %v1970
  %v1972 = vand.u32 %v1971, 4294901760
  %1973 = vmatpush1.msra.mxu0 %v1972
  %1974 = vmatprep.subr.mxu0 0.0
  %v1975 = vand.u32 %v1672, 4294901760
  %v1976 = vsub.f32 %v1672, %v1975
  %v1977 = vand.u32 %v1976, 4294901760
  %v1978 = vsub.f32 %v1976, %v1977
  %v1979 = vand.u32 %v1978, 4294901760
  %1980 = vmatpush1.msra.mxu0 %v1979
  %1981 = vmatprep.subr.mxu0 0.0
  %v1982 = vand.u32 %v1673, 4294901760
  %v1983 = vsub.f32 %v1673, %v1982
  %v1984 = vand.u32 %v1983, 4294901760
  %v1985 = vsub.f32 %v1983, %v1984
  %v1986 = vand.u32 %v1985, 4294901760
  %1987 = vmatpush1.msra.mxu0 %v1986
  %1988 = vmatprep.subr.mxu0 0.0
  %v1989 = vand.u32 %v1674, 4294901760
  %v1990 = vsub.f32 %v1674, %v1989
  %v1991 = vand.u32 %v1990, 4294901760
  %v1992 = vsub.f32 %v1990, %v1991
  %v1993 = vand.u32 %v1992, 4294901760
  %1994 = vmatpush1.msra.mxu0 %v1993
  %1995 = vmatprep.subr.mxu0 0.0
  %v1996 = vand.u32 %v1675, 4294901760
  %v1997 = vsub.f32 %v1675, %v1996
  %v1998 = vand.u32 %v1997, 4294901760
  %v1999 = vsub.f32 %v1997, %v1998
  %v2000 = vand.u32 %v1999, 4294901760
  %2001 = vmatpush1.msra.mxu0 %v2000
  %2002 = vmatprep.subr.mxu0 0.0
  %v2003 = vand.u32 %v1676, 4294901760
  %v2004 = vsub.f32 %v1676, %v2003
  %v2005 = vand.u32 %v2004, 4294901760
  %v2006 = vsub.f32 %v2004, %v2005
  %v2007 = vand.u32 %v2006, 4294901760
  %2008 = vmatpush1.msra.mxu0 %v2007
  %2009 = vmatprep.subr.mxu0 0.0
  %v2010 = vand.u32 %v1677, 4294901760
  %v2011 = vsub.f32 %v1677, %v2010
  %v2012 = vand.u32 %v2011, 4294901760
  %v2013 = vsub.f32 %v2011, %v2012
  %v2014 = vand.u32 %v2013, 4294901760
  %2015 = vmatpush1.msra.mxu0 %v2014
  %2016 = vmatprep.subr.mxu0 0.0
  %v2017 = vand.u32 %v1678, 4294901760
  %v2018 = vsub.f32 %v1678, %v2017
  %v2019 = vand.u32 %v2018, 4294901760
  %v2020 = vsub.f32 %v2018, %v2019
  %v2021 = vand.u32 %v2020, 4294901760
  %2022 = vmatpush1.msra.mxu0 %v2021
  %2023 = vmatprep.subr.mxu0 0.0
  %v2024 = vand.u32 %v1679, 4294901760
  %v2025 = vsub.f32 %v1679, %v2024
  %v2026 = vand.u32 %v2025, 4294901760
  %v2027 = vsub.f32 %v2025, %v2026
  %v2028 = vand.u32 %v2027, 4294901760
  %2029 = vmatpush1.msra.mxu0 %v2028
  %2030 = vmatprep.subr.mxu0 0.0
  %v2031 = vand.u32 %v1680, 4294901760
  %v2032 = vsub.f32 %v1680, %v2031
  %v2033 = vand.u32 %v2032, 4294901760
  %v2034 = vsub.f32 %v2032, %v2033
  %v2035 = vand.u32 %v2034, 4294901760
  %2036 = vmatpush1.msra.mxu0 %v2035
  %2037 = vmatprep.subr.mxu0 0.0
  %v2038 = vand.u32 %v1681, 4294901760
  %v2039 = vsub.f32 %v1681, %v2038
  %v2040 = vand.u32 %v2039, 4294901760
  %v2041 = vsub.f32 %v2039, %v2040
  %v2042 = vand.u32 %v2041, 4294901760
  %2043 = vmatpush1.msra.mxu0 %v2042
  %2044 = vmatprep.subr.mxu0 0.0
  %v2045 = vand.u32 %v1682, 4294901760
  %v2046 = vsub.f32 %v1682, %v2045
  %v2047 = vand.u32 %v2046, 4294901760
  %v2048 = vsub.f32 %v2046, %v2047
  %v2049 = vand.u32 %v2048, 4294901760
  %2050 = vmatpush1.msra.mxu0 %v2049
  %2051 = vmatprep.subr.mxu0 0.0
  %2052 = vmatpush1.msra.mxu0 0.0
  %2053 = vmatprep.subr.mxu0 0.0
  %2054 = vmatpush1.msra.mxu0 0.0
  %2055 = vmatprep.subr.mxu0 0.0
  %2056 = vmatpush1.msra.mxu0 0.0
  %2057 = vmatprep.subr.mxu0 0.0
  %2058 = vmatpush1.msra.mxu0 0.0
  %2059 = vmatprep.subr.mxu0 0.0
  %2060 = vmatpush1.msra.mxu0 0.0
  %2061 = vmatprep.subr.mxu0 0.0
  %2062 = vmatpush1.msra.mxu0 0.0
  %2063 = vmatprep.subr.mxu0 0.0
  %2064 = vmatpush1.msra.mxu0 0.0
  %2065 = vmatprep.subr.mxu0 0.0
  %2066 = vmatpush1.msra.mxu0 0.0
  %2067 = vmatprep.subr.mxu0 0.0
  %2068 = vmatpush1.msra.mxu0 0.0
  %2069 = vmatprep.subr.mxu0 0.0
  %2070 = vmatpush1.msra.mxu0 0.0
  %2071 = vmatprep.subr.mxu0 0.0
  %2072 = vmatpush1.msra.mxu0 0.0
  %2073 = vmatprep.subr.mxu0 0.0
  %2074 = vmatpush1.msra.mxu0 0.0
  %2075 = vmatprep.subr.mxu0 0.0
  %2076 = vmatpush1.msra.mxu0 0.0
  %2077 = vmatprep.subr.mxu0 0.0
  %2078 = vmatpush1.msra.mxu0 0.0
  %2079 = vmatprep.subr.mxu0 0.0
  %2080 = vmatpush1.msra.mxu0 0.0
  %2081 = vmatprep.subr.mxu0 0.0
  %2082 = vmatpush1.msra.mxu0 0.0
  %2083 = vmatprep.mubr.f32.mxu0 0.0
  %v2084 = vand.u32 %v1651, 4294901760
  %2085 = vmatmul.mubr.f32.gmra.mrb[0].mxu0 %v2084
  %v2086 = vpop.f32.mrb[0].mxu0
  %v2087 = vadd.f32 %v1786, %v2086
  %v2088 = vpop.f32.mrb[0].mxu0
  %2089 = vmatprep.mubr.f32.mxu0 0.0
  %v2090 = vand.u32 %v1652, 4294901760
  %2091 = vmatmul.mubr.f32.gmra.mrb[0].mxu0 %v2090
  %v2092 = vpop.f32.mrb[0].mxu0
  %v2093 = vadd.f32 %v1796, %v2092
  %v2094 = vpop.f32.mrb[0].mxu0
  %2095 = vmatprep.mubr.f32.mxu0 0.0
  %v2096 = vand.u32 %v1653, 4294901760
  %2097 = vmatmul.mubr.f32.gmra.mrb[0].mxu0 %v2096
  %v2098 = vpop.f32.mrb[0].mxu0
  %v2099 = vadd.f32 %v1806, %v2098
  %v2100 = vpop.f32.mrb[0].mxu0
  %2101 = vmatprep.mubr.f32.mxu0 0.0
  %v2102 = vand.u32 %v1654, 4294901760
  %2103 = vmatmul.mubr.f32.gmra.mrb[0].mxu0 %v2102
  %v2104 = vpop.f32.mrb[0].mxu0
  %v2105 = vadd.f32 %v1816, %v2104
  %v2106 = vpop.f32.mrb[0].mxu0
  %2107 = vmatprep.mubr.f32.mxu0 0.0
  %v2108 = vand.u32 %v1655, 4294901760
  %2109 = vmatmul.mubr.f32.gmra.mrb[0].mxu0 %v2108
  %v2110 = vpop.f32.mrb[0].mxu0
  %v2111 = vadd.f32 %v1826, %v2110
  %v2112 = vpop.f32.mrb[0].mxu0
  %2113 = vmatprep.mubr.f32.mxu0 0.0
  %v2114 = vand.u32 %v1656, 4294901760
  %2115 = vmatmul.mubr.f32.gmra.mrb[0].mxu0 %v2114
  %v2116 = vpop.f32.mrb[0].mxu0
  %v2117 = vadd.f32 %v1836, %v2116
  %v2118 = vpop.f32.mrb[0].mxu0
  %2119 = vmatprep.mubr.f32.mxu0 0.0
  %v2120 = vand.u32 %v1657, 4294901760
  %2121 = vmatmul.mubr.f32.gmra.mrb[0].mxu0 %v2120
  %v2122 = vpop.f32.mrb[0].mxu0
  %v2123 = vadd.f32 %v1846, %v2122
  %v2124 = vpop.f32.mrb[0].mxu0
  %2125 = vmatprep.mubr.f32.mxu0 0.0
  %v2126 = vand.u32 %v1658, 4294901760
  %2127 = vmatmul.mubr.f32.gmra.mrb[0].mxu0 %v2126
  %v2128 = vpop.f32.mrb[0].mxu0
  %v2129 = vadd.f32 %v1856, %v2128
  %v2130 = vpop.f32.mrb[0].mxu0
  %2131 = vmatprep.mubr.f32.mxu0 0.0
  %v2132 = vand.u32 %v1659, 4294901760
  %2133 = vmatmul.mubr.f32.gmra.mrb[0].mxu0 %v2132
  %v2134 = vpop.f32.mrb[0].mxu0
  %v2135 = vadd.f32 %v1866, %v2134
  %v2136 = vpop.f32.mrb[0].mxu0
  %2137 = vmatprep.mubr.f32.mxu0 0.0
  %v2138 = vand.u32 %v1660, 4294901760
  %2139 = vmatmul.mubr.f32.gmra.mrb[0].mxu0 %v2138
  %v2140 = vpop.f32.mrb[0].mxu0
  %v2141 = vadd.f32 %v1876, %v2140
  %v2142 = vpop.f32.mrb[0].mxu0
  %2143 = vmatprep.mubr.f32.mxu0 0.0
  %v2144 = vand.u32 %v1661, 4294901760
  %2145 = vmatmul.mubr.f32.gmra.mrb[0].mxu0 %v2144
  %v2146 = vpop.f32.mrb[0].mxu0
  %v2147 = vadd.f32 %v1886, %v2146
  %v2148 = vpop.f32.mrb[0].mxu0
  %2149 = vmatprep.mubr.f32.mxu0 0.0
  %v2150 = vand.u32 %v1662, 4294901760
  %2151 = vmatmul.mubr.f32.gmra.mrb[0].mxu0 %v2150
  %v2152 = vpop.f32.mrb[0].mxu0
  %v2153 = vadd.f32 %v1896, %v2152
  %v2154 = vpop.f32.mrb[0].mxu0
  %2155 = vmatprep.mubr.f32.mxu0 0.0
  %v2156 = vand.u32 %v1663, 4294901760
  %2157 = vmatmul.mubr.f32.gmra.mrb[0].mxu0 %v2156
  %v2158 = vpop.f32.mrb[0].mxu0
  %v2159 = vadd.f32 %v1906, %v2158
  %v2160 = vpop.f32.mrb[0].mxu0
  %2161 = vmatprep.mubr.f32.mxu0 0.0
  %v2162 = vand.u32 %v1664, 4294901760
  %2163 = vmatmul.mubr.f32.gmra.mrb[0].mxu0 %v2162
  %v2164 = vpop.f32.mrb[0].mxu0
  %v2165 = vadd.f32 %v1916, %v2164
  %v2166 = vpop.f32.mrb[0].mxu0
  %2167 = vmatprep.mubr.f32.mxu0 0.0
  %v2168 = vand.u32 %v1665, 4294901760
  %2169 = vmatmul.mubr.f32.gmra.mrb[0].mxu0 %v2168
  %v2170 = vpop.f32.mrb[0].mxu0
  %v2171 = vadd.f32 %v1926, %v2170
  %v2172 = vpop.f32.mrb[0].mxu0
  %2173 = vmatprep.mubr.f32.mxu0 0.0
  %v2174 = vand.u32 %v1666, 4294901760
  %2175 = vmatmul.mubr.f32.gmra.mrb[0].mxu0 %v2174
  %v2176 = vpop.f32.mrb[0].mxu0
  %v2177 = vadd.f32 %v1936, %v2176
  %v2178 = vpop.f32.mrb[0].mxu0
  %2179 = vdwg.mxu0
  %2180 = vmatprep.subr.mxu0 0.0
  %v2181 = vand.u32 %v1667, 4294901760
  %v2182 = vsub.f32 %v1667, %v2181
  %2183 = vmatpush1.msra.mxu0 %v2182
  %2184 = vmatprep.subr.mxu0 0.0
  %v2185 = vand.u32 %v1668, 4294901760
  %v2186 = vsub.f32 %v1668, %v2185
  %2187 = vmatpush1.msra.mxu0 %v2186
  %2188 = vmatprep.subr.mxu0 0.0
  %v2189 = vand.u32 %v1669, 4294901760
  %v2190 = vsub.f32 %v1669, %v2189
  %2191 = vmatpush1.msra.mxu0 %v2190
  %2192 = vmatprep.subr.mxu0 0.0
  %v2193 = vand.u32 %v1670, 4294901760
  %v2194 = vsub.f32 %v1670, %v2193
  %2195 = vmatpush1.msra.mxu0 %v2194
  %2196 = vmatprep.subr.mxu0 0.0
  %v2197 = vand.u32 %v1671, 4294901760
  %v2198 = vsub.f32 %v1671, %v2197
  %2199 = vmatpush1.msra.mxu0 %v2198
  %2200 = vmatprep.subr.mxu0 0.0
  %v2201 = vand.u32 %v1672, 4294901760
  %v2202 = vsub.f32 %v1672, %v2201
  %2203 = vmatpush1.msra.mxu0 %v2202
  %2204 = vmatprep.subr.mxu0 0.0
  %v2205 = vand.u32 %v1673, 4294901760
  %v2206 = vsub.f32 %v1673, %v2205
  %2207 = vmatpush1.msra.mxu0 %v2206
  %2208 = vmatprep.subr.mxu0 0.0
  %v2209 = vand.u32 %v1674, 4294901760
  %v2210 = vsub.f32 %v1674, %v2209
  %2211 = vmatpush1.msra.mxu0 %v2210
  %2212 = vmatprep.subr.mxu0 0.0
  %v2213 = vand.u32 %v1675, 4294901760
  %v2214 = vsub.f32 %v1675, %v2213
  %2215 = vmatpush1.msra.mxu0 %v2214
  %2216 = vmatprep.subr.mxu0 0.0
  %v2217 = vand.u32 %v1676, 4294901760
  %v2218 = vsub.f32 %v1676, %v2217
  %2219 = vmatpush1.msra.mxu0 %v2218
  %2220 = vmatprep.subr.mxu0 0.0
  %v2221 = vand.u32 %v1677, 4294901760
  %v2222 = vsub.f32 %v1677, %v2221
  %2223 = vmatpush1.msra.mxu0 %v2222
  %2224 = vmatprep.subr.mxu0 0.0
  %v2225 = vand.u32 %v1678, 4294901760
  %v2226 = vsub.f32 %v1678, %v2225
  %2227 = vmatpush1.msra.mxu0 %v2226
  %2228 = vmatprep.subr.mxu0 0.0
  %v2229 = vand.u32 %v1679, 4294901760
  %v2230 = vsub.f32 %v1679, %v2229
  %2231 = vmatpush1.msra.mxu0 %v2230
  %2232 = vmatprep.subr.mxu0 0.0
  %v2233 = vand.u32 %v1680, 4294901760
  %v2234 = vsub.f32 %v1680, %v2233
  %2235 = vmatpush1.msra.mxu0 %v2234
  %2236 = vmatprep.subr.mxu0 0.0
  %v2237 = vand.u32 %v1681, 4294901760
  %v2238 = vsub.f32 %v1681, %v2237
  %2239 = vmatpush1.msra.mxu0 %v2238
  %2240 = vmatprep.subr.mxu0 0.0
  %v2241 = vand.u32 %v1682, 4294901760
  %v2242 = vsub.f32 %v1682, %v2241
  %2243 = vmatpush1.msra.mxu0 %v2242
  %2244 = vmatprep.subr.mxu0 0.0
  %2245 = vmatpush1.msra.mxu0 0.0
  %2246 = vmatprep.subr.mxu0 0.0
  %2247 = vmatpush1.msra.mxu0 0.0
  %2248 = vmatprep.subr.mxu0 0.0
  %2249 = vmatpush1.msra.mxu0 0.0
  %2250 = vmatprep.subr.mxu0 0.0
  %2251 = vmatpush1.msra.mxu0 0.0
  %2252 = vmatprep.subr.mxu0 0.0
  %2253 = vmatpush1.msra.mxu0 0.0
  %2254 = vmatprep.subr.mxu0 0.0
  %2255 = vmatpush1.msra.mxu0 0.0
  %2256 = vmatprep.subr.mxu0 0.0
  %2257 = vmatpush1.msra.mxu0 0.0
  %2258 = vmatprep.subr.mxu0 0.0
  %2259 = vmatpush1.msra.mxu0 0.0
  %2260 = vmatprep.subr.mxu0 0.0
  %2261 = vmatpush1.msra.mxu0 0.0
  %2262 = vmatprep.subr.mxu0 0.0
  %2263 = vmatpush1.msra.mxu0 0.0
  %2264 = vmatprep.subr.mxu0 0.0
  %2265 = vmatpush1.msra.mxu0 0.0
  %2266 = vmatprep.subr.mxu0 0.0
  %2267 = vmatpush1.msra.mxu0 0.0
  %2268 = vmatprep.subr.mxu0 0.0
  %2269 = vmatpush1.msra.mxu0 0.0
  %2270 = vmatprep.subr.mxu0 0.0
  %2271 = vmatpush1.msra.mxu0 0.0
  %2272 = vmatprep.subr.mxu0 0.0
  %2273 = vmatpush1.msra.mxu0 0.0
  %2274 = vmatprep.subr.mxu0 0.0
  %2275 = vmatpush1.msra.mxu0 0.0
  %2276 = vmatprep.mubr.f32.mxu0 0.0
  %v2277 = vand.u32 %v1651, 4294901760
  %v2278 = vsub.f32 %v1651, %v2277
  %2279 = vmatmul.mubr.f32.gmra.mrb[0].mxu0 %v2278
  %v2280 = vpop.f32.mrb[0].mxu0
  %v2281 = vadd.f32 %v2087, %v2280
  %v2282 = vpop.f32.mrb[0].mxu0
  %2283 = vmatprep.mubr.f32.mxu0 0.0
  %v2284 = vand.u32 %v1652, 4294901760
  %v2285 = vsub.f32 %v1652, %v2284
  %2286 = vmatmul.mubr.f32.gmra.mrb[0].mxu0 %v2285
  %v2287 = vpop.f32.mrb[0].mxu0
  %v2288 = vadd.f32 %v2093, %v2287
  %v2289 = vpop.f32.mrb[0].mxu0
  %2290 = vmatprep.mubr.f32.mxu0 0.0
  %v2291 = vand.u32 %v1653, 4294901760
  %v2292 = vsub.f32 %v1653, %v2291
  %2293 = vmatmul.mubr.f32.gmra.mrb[0].mxu0 %v2292
  %v2294 = vpop.f32.mrb[0].mxu0
  %v2295 = vadd.f32 %v2099, %v2294
  %v2296 = vpop.f32.mrb[0].mxu0
  %2297 = vmatprep.mubr.f32.mxu0 0.0
  %v2298 = vand.u32 %v1654, 4294901760
  %v2299 = vsub.f32 %v1654, %v2298
  %2300 = vmatmul.mubr.f32.gmra.mrb[0].mxu0 %v2299
  %v2301 = vpop.f32.mrb[0].mxu0
  %v2302 = vadd.f32 %v2105, %v2301
  %v2303 = vpop.f32.mrb[0].mxu0
  %2304 = vmatprep.mubr.f32.mxu0 0.0
  %v2305 = vand.u32 %v1655, 4294901760
  %v2306 = vsub.f32 %v1655, %v2305
  %2307 = vmatmul.mubr.f32.gmra.mrb[0].mxu0 %v2306
  %v2308 = vpop.f32.mrb[0].mxu0
  %v2309 = vadd.f32 %v2111, %v2308
  %v2310 = vpop.f32.mrb[0].mxu0
  %2311 = vmatprep.mubr.f32.mxu0 0.0
  %v2312 = vand.u32 %v1656, 4294901760
  %v2313 = vsub.f32 %v1656, %v2312
  %2314 = vmatmul.mubr.f32.gmra.mrb[0].mxu0 %v2313
  %v2315 = vpop.f32.mrb[0].mxu0
  %v2316 = vadd.f32 %v2117, %v2315
  %v2317 = vpop.f32.mrb[0].mxu0
  %2318 = vmatprep.mubr.f32.mxu0 0.0
  %v2319 = vand.u32 %v1657, 4294901760
  %v2320 = vsub.f32 %v1657, %v2319
  %2321 = vmatmul.mubr.f32.gmra.mrb[0].mxu0 %v2320
  %v2322 = vpop.f32.mrb[0].mxu0
  %v2323 = vadd.f32 %v2123, %v2322
  %v2324 = vpop.f32.mrb[0].mxu0
  %2325 = vmatprep.mubr.f32.mxu0 0.0
  %v2326 = vand.u32 %v1658, 4294901760
  %v2327 = vsub.f32 %v1658, %v2326
  %2328 = vmatmul.mubr.f32.gmra.mrb[0].mxu0 %v2327
  %v2329 = vpop.f32.mrb[0].mxu0
  %v2330 = vadd.f32 %v2129, %v2329
  %v2331 = vpop.f32.mrb[0].mxu0
  %2332 = vmatprep.mubr.f32.mxu0 0.0
  %v2333 = vand.u32 %v1659, 4294901760
  %v2334 = vsub.f32 %v1659, %v2333
  %2335 = vmatmul.mubr.f32.gmra.mrb[0].mxu0 %v2334
  %v2336 = vpop.f32.mrb[0].mxu0
  %v2337 = vadd.f32 %v2135, %v2336
  %v2338 = vpop.f32.mrb[0].mxu0
  %2339 = vmatprep.mubr.f32.mxu0 0.0
  %v2340 = vand.u32 %v1660, 4294901760
  %v2341 = vsub.f32 %v1660, %v2340
  %2342 = vmatmul.mubr.f32.gmra.mrb[0].mxu0 %v2341
  %v2343 = vpop.f32.mrb[0].mxu0
  %v2344 = vadd.f32 %v2141, %v2343
  %v2345 = vpop.f32.mrb[0].mxu0
  %2346 = vmatprep.mubr.f32.mxu0 0.0
  %v2347 = vand.u32 %v1661, 4294901760
  %v2348 = vsub.f32 %v1661, %v2347
  %2349 = vmatmul.mubr.f32.gmra.mrb[0].mxu0 %v2348
  %v2350 = vpop.f32.mrb[0].mxu0
  %v2351 = vadd.f32 %v2147, %v2350
  %v2352 = vpop.f32.mrb[0].mxu0
  %2353 = vmatprep.mubr.f32.mxu0 0.0
  %v2354 = vand.u32 %v1662, 4294901760
  %v2355 = vsub.f32 %v1662, %v2354
  %2356 = vmatmul.mubr.f32.gmra.mrb[0].mxu0 %v2355
  %v2357 = vpop.f32.mrb[0].mxu0
  %v2358 = vadd.f32 %v2153, %v2357
  %v2359 = vpop.f32.mrb[0].mxu0
  %2360 = vmatprep.mubr.f32.mxu0 0.0
  %v2361 = vand.u32 %v1663, 4294901760
  %v2362 = vsub.f32 %v1663, %v2361
  %2363 = vmatmul.mubr.f32.gmra.mrb[0].mxu0 %v2362
  %v2364 = vpop.f32.mrb[0].mxu0
  %v2365 = vadd.f32 %v2159, %v2364
  %v2366 = vpop.f32.mrb[0].mxu0
  %2367 = vmatprep.mubr.f32.mxu0 0.0
  %v2368 = vand.u32 %v1664, 4294901760
  %v2369 = vsub.f32 %v1664, %v2368
  %2370 = vmatmul.mubr.f32.gmra.mrb[0].mxu0 %v2369
  %v2371 = vpop.f32.mrb[0].mxu0
  %v2372 = vadd.f32 %v2165, %v2371
  %v2373 = vpop.f32.mrb[0].mxu0
  %2374 = vmatprep.mubr.f32.mxu0 0.0
  %v2375 = vand.u32 %v1665, 4294901760
  %v2376 = vsub.f32 %v1665, %v2375
  %2377 = vmatmul.mubr.f32.gmra.mrb[0].mxu0 %v2376
  %v2378 = vpop.f32.mrb[0].mxu0
  %v2379 = vadd.f32 %v2171, %v2378
  %v2380 = vpop.f32.mrb[0].mxu0
  %2381 = vmatprep.mubr.f32.mxu0 0.0
  %v2382 = vand.u32 %v1666, 4294901760
  %v2383 = vsub.f32 %v1666, %v2382
  %2384 = vmatmul.mubr.f32.gmra.mrb[0].mxu0 %v2383
  %v2385 = vpop.f32.mrb[0].mxu0
  %v2386 = vadd.f32 %v2177, %v2385
  %v2387 = vpop.f32.mrb[0].mxu0
  %2388 = vdwg.mxu0
  %2389 = vmatprep.subr.mxu0 0.0
  %v2390 = vand.u32 %v1667, 4294901760
  %2391 = vmatpush1.msra.mxu0 %v2390
  %2392 = vmatprep.subr.mxu0 0.0
  %v2393 = vand.u32 %v1668, 4294901760
  %2394 = vmatpush1.msra.mxu0 %v2393
  %2395 = vmatprep.subr.mxu0 0.0
  %v2396 = vand.u32 %v1669, 4294901760
  %2397 = vmatpush1.msra.mxu0 %v2396
  %2398 = vmatprep.subr.mxu0 0.0
  %v2399 = vand.u32 %v1670, 4294901760
  %2400 = vmatpush1.msra.mxu0 %v2399
  %2401 = vmatprep.subr.mxu0 0.0
  %v2402 = vand.u32 %v1671, 4294901760
  %2403 = vmatpush1.msra.mxu0 %v2402
  %2404 = vmatprep.subr.mxu0 0.0
  %v2405 = vand.u32 %v1672, 4294901760
  %2406 = vmatpush1.msra.mxu0 %v2405
  %2407 = vmatprep.subr.mxu0 0.0
  %v2408 = vand.u32 %v1673, 4294901760
  %2409 = vmatpush1.msra.mxu0 %v2408
  %2410 = vmatprep.subr.mxu0 0.0
  %v2411 = vand.u32 %v1674, 4294901760
  %2412 = vmatpush1.msra.mxu0 %v2411
  %2413 = vmatprep.subr.mxu0 0.0
  %v2414 = vand.u32 %v1675, 4294901760
  %2415 = vmatpush1.msra.mxu0 %v2414
  %2416 = vmatprep.subr.mxu0 0.0
  %v2417 = vand.u32 %v1676, 4294901760
  %2418 = vmatpush1.msra.mxu0 %v2417
  %2419 = vmatprep.subr.mxu0 0.0
  %v2420 = vand.u32 %v1677, 4294901760
  %2421 = vmatpush1.msra.mxu0 %v2420
  %2422 = vmatprep.subr.mxu0 0.0
  %v2423 = vand.u32 %v1678, 4294901760
  %2424 = vmatpush1.msra.mxu0 %v2423
  %2425 = vmatprep.subr.mxu0 0.0
  %v2426 = vand.u32 %v1679, 4294901760
  %2427 = vmatpush1.msra.mxu0 %v2426
  %2428 = vmatprep.subr.mxu0 0.0
  %v2429 = vand.u32 %v1680, 4294901760
  %2430 = vmatpush1.msra.mxu0 %v2429
  %2431 = vmatprep.subr.mxu0 0.0
  %v2432 = vand.u32 %v1681, 4294901760
  %2433 = vmatpush1.msra.mxu0 %v2432
  %2434 = vmatprep.subr.mxu0 0.0
  %v2435 = vand.u32 %v1682, 4294901760
  %2436 = vmatpush1.msra.mxu0 %v2435
  %2437 = vmatprep.subr.mxu0 0.0
  %2438 = vmatpush1.msra.mxu0 0.0
  %2439 = vmatprep.subr.mxu0 0.0
  %2440 = vmatpush1.msra.mxu0 0.0
  %2441 = vmatprep.subr.mxu0 0.0
  %2442 = vmatpush1.msra.mxu0 0.0
  %2443 = vmatprep.subr.mxu0 0.0
  %2444 = vmatpush1.msra.mxu0 0.0
  %2445 = vmatprep.subr.mxu0 0.0
  %2446 = vmatpush1.msra.mxu0 0.0
  %2447 = vmatprep.subr.mxu0 0.0
  %2448 = vmatpush1.msra.mxu0 0.0
  %2449 = vmatprep.subr.mxu0 0.0
  %2450 = vmatpush1.msra.mxu0 0.0
  %2451 = vmatprep.subr.mxu0 0.0
  %2452 = vmatpush1.msra.mxu0 0.0
  %2453 = vmatprep.subr.mxu0 0.0
  %2454 = vmatpush1.msra.mxu0 0.0
  %2455 = vmatprep.subr.mxu0 0.0
  %2456 = vmatpush1.msra.mxu0 0.0
  %2457 = vmatprep.subr.mxu0 0.0
  %2458 = vmatpush1.msra.mxu0 0.0
  %2459 = vmatprep.subr.mxu0 0.0
  %2460 = vmatpush1.msra.mxu0 0.0
  %2461 = vmatprep.subr.mxu0 0.0
  %2462 = vmatpush1.msra.mxu0 0.0
  %2463 = vmatprep.subr.mxu0 0.0
  %2464 = vmatpush1.msra.mxu0 0.0
  %2465 = vmatprep.subr.mxu0 0.0
  %2466 = vmatpush1.msra.mxu0 0.0
  %2467 = vmatprep.subr.mxu0 0.0
  %2468 = vmatpush1.msra.mxu0 0.0
  %2469 = vmatprep.mubr.f32.mxu0 0.0
  %v2470 = vand.u32 %v1651, 4294901760
  %v2471 = vsub.f32 %v1651, %v2470
  %v2472 = vand.u32 %v2471, 4294901760
  %2473 = vmatmul.mubr.f32.gmra.mrb[0].mxu0 %v2472
  %v2474 = vpop.f32.mrb[0].mxu0
  %v2475 = vadd.f32 %v2281, %v2474
  %v2476 = vpop.f32.mrb[0].mxu0
  %2477 = vmatprep.mubr.f32.mxu0 0.0
  %v2478 = vand.u32 %v1652, 4294901760
  %v2479 = vsub.f32 %v1652, %v2478
  %v2480 = vand.u32 %v2479, 4294901760
  %2481 = vmatmul.mubr.f32.gmra.mrb[0].mxu0 %v2480
  %v2482 = vpop.f32.mrb[0].mxu0
  %v2483 = vadd.f32 %v2288, %v2482
  %v2484 = vpop.f32.mrb[0].mxu0
  %2485 = vmatprep.mubr.f32.mxu0 0.0
  %v2486 = vand.u32 %v1653, 4294901760
  %v2487 = vsub.f32 %v1653, %v2486
  %v2488 = vand.u32 %v2487, 4294901760
  %2489 = vmatmul.mubr.f32.gmra.mrb[0].mxu0 %v2488
  %v2490 = vpop.f32.mrb[0].mxu0
  %v2491 = vadd.f32 %v2295, %v2490
  %v2492 = vpop.f32.mrb[0].mxu0
  %2493 = vmatprep.mubr.f32.mxu0 0.0
  %v2494 = vand.u32 %v1654, 4294901760
  %v2495 = vsub.f32 %v1654, %v2494
  %v2496 = vand.u32 %v2495, 4294901760
  %2497 = vmatmul.mubr.f32.gmra.mrb[0].mxu0 %v2496
  %v2498 = vpop.f32.mrb[0].mxu0
  %v2499 = vadd.f32 %v2302, %v2498
  %v2500 = vpop.f32.mrb[0].mxu0
  %2501 = vmatprep.mubr.f32.mxu0 0.0
  %v2502 = vand.u32 %v1655, 4294901760
  %v2503 = vsub.f32 %v1655, %v2502
  %v2504 = vand.u32 %v2503, 4294901760
  %2505 = vmatmul.mubr.f32.gmra.mrb[0].mxu0 %v2504
  %v2506 = vpop.f32.mrb[0].mxu0
  %v2507 = vadd.f32 %v2309, %v2506
  %v2508 = vpop.f32.mrb[0].mxu0
  %2509 = vmatprep.mubr.f32.mxu0 0.0
  %v2510 = vand.u32 %v1656, 4294901760
  %v2511 = vsub.f32 %v1656, %v2510
  %v2512 = vand.u32 %v2511, 4294901760
  %2513 = vmatmul.mubr.f32.gmra.mrb[0].mxu0 %v2512
  %v2514 = vpop.f32.mrb[0].mxu0
  %v2515 = vadd.f32 %v2316, %v2514
  %v2516 = vpop.f32.mrb[0].mxu0
  %2517 = vmatprep.mubr.f32.mxu0 0.0
  %v2518 = vand.u32 %v1657, 4294901760
  %v2519 = vsub.f32 %v1657, %v2518
  %v2520 = vand.u32 %v2519, 4294901760
  %2521 = vmatmul.mubr.f32.gmra.mrb[0].mxu0 %v2520
  %v2522 = vpop.f32.mrb[0].mxu0
  %v2523 = vadd.f32 %v2323, %v2522
  %v2524 = vpop.f32.mrb[0].mxu0
  %2525 = vmatprep.mubr.f32.mxu0 0.0
  %v2526 = vand.u32 %v1658, 4294901760
  %v2527 = vsub.f32 %v1658, %v2526
  %v2528 = vand.u32 %v2527, 4294901760
  %2529 = vmatmul.mubr.f32.gmra.mrb[0].mxu0 %v2528
  %v2530 = vpop.f32.mrb[0].mxu0
  %v2531 = vadd.f32 %v2330, %v2530
  %v2532 = vpop.f32.mrb[0].mxu0
  %2533 = vmatprep.mubr.f32.mxu0 0.0
  %v2534 = vand.u32 %v1659, 4294901760
  %v2535 = vsub.f32 %v1659, %v2534
  %v2536 = vand.u32 %v2535, 4294901760
  %2537 = vmatmul.mubr.f32.gmra.mrb[0].mxu0 %v2536
  %v2538 = vpop.f32.mrb[0].mxu0
  %v2539 = vadd.f32 %v2337, %v2538
  %v2540 = vpop.f32.mrb[0].mxu0
  %2541 = vmatprep.mubr.f32.mxu0 0.0
  %v2542 = vand.u32 %v1660, 4294901760
  %v2543 = vsub.f32 %v1660, %v2542
  %v2544 = vand.u32 %v2543, 4294901760
  %2545 = vmatmul.mubr.f32.gmra.mrb[0].mxu0 %v2544
  %v2546 = vpop.f32.mrb[0].mxu0
  %v2547 = vadd.f32 %v2344, %v2546
  %v2548 = vpop.f32.mrb[0].mxu0
  %2549 = vmatprep.mubr.f32.mxu0 0.0
  %v2550 = vand.u32 %v1661, 4294901760
  %v2551 = vsub.f32 %v1661, %v2550
  %v2552 = vand.u32 %v2551, 4294901760
  %2553 = vmatmul.mubr.f32.gmra.mrb[0].mxu0 %v2552
  %v2554 = vpop.f32.mrb[0].mxu0
  %v2555 = vadd.f32 %v2351, %v2554
  %v2556 = vpop.f32.mrb[0].mxu0
  %2557 = vmatprep.mubr.f32.mxu0 0.0
  %v2558 = vand.u32 %v1662, 4294901760
  %v2559 = vsub.f32 %v1662, %v2558
  %v2560 = vand.u32 %v2559, 4294901760
  %2561 = vmatmul.mubr.f32.gmra.mrb[0].mxu0 %v2560
  %v2562 = vpop.f32.mrb[0].mxu0
  %v2563 = vadd.f32 %v2358, %v2562
  %v2564 = vpop.f32.mrb[0].mxu0
  %2565 = vmatprep.mubr.f32.mxu0 0.0
  %v2566 = vand.u32 %v1663, 4294901760
  %v2567 = vsub.f32 %v1663, %v2566
  %v2568 = vand.u32 %v2567, 4294901760
  %2569 = vmatmul.mubr.f32.gmra.mrb[0].mxu0 %v2568
  %v2570 = vpop.f32.mrb[0].mxu0
  %v2571 = vadd.f32 %v2365, %v2570
  %v2572 = vpop.f32.mrb[0].mxu0
  %2573 = vmatprep.mubr.f32.mxu0 0.0
  %v2574 = vand.u32 %v1664, 4294901760
  %v2575 = vsub.f32 %v1664, %v2574
  %v2576 = vand.u32 %v2575, 4294901760
  %2577 = vmatmul.mubr.f32.gmra.mrb[0].mxu0 %v2576
  %v2578 = vpop.f32.mrb[0].mxu0
  %v2579 = vadd.f32 %v2372, %v2578
  %v2580 = vpop.f32.mrb[0].mxu0
  %2581 = vmatprep.mubr.f32.mxu0 0.0
  %v2582 = vand.u32 %v1665, 4294901760
  %v2583 = vsub.f32 %v1665, %v2582
  %v2584 = vand.u32 %v2583, 4294901760
  %2585 = vmatmul.mubr.f32.gmra.mrb[0].mxu0 %v2584
  %v2586 = vpop.f32.mrb[0].mxu0
  %v2587 = vadd.f32 %v2379, %v2586
  %v2588 = vpop.f32.mrb[0].mxu0
  %2589 = vmatprep.mubr.f32.mxu0 0.0
  %v2590 = vand.u32 %v1666, 4294901760
  %v2591 = vsub.f32 %v1666, %v2590
  %v2592 = vand.u32 %v2591, 4294901760
  %2593 = vmatmul.mubr.f32.gmra.mrb[0].mxu0 %v2592
  %v2594 = vpop.f32.mrb[0].mxu0
  %v2595 = vadd.f32 %v2386, %v2594
  %v2596 = vpop.f32.mrb[0].mxu0
  %2597 = vdwg.mxu0
  %2598 = vmatprep.subr.mxu0 0.0
  %v2599 = vand.u32 %v1667, 4294901760
  %v2600 = vsub.f32 %v1667, %v2599
  %v2601 = vand.u32 %v2600, 4294901760
  %2602 = vmatpush1.msra.mxu0 %v2601
  %2603 = vmatprep.subr.mxu0 0.0
  %v2604 = vand.u32 %v1668, 4294901760
  %v2605 = vsub.f32 %v1668, %v2604
  %v2606 = vand.u32 %v2605, 4294901760
  %2607 = vmatpush1.msra.mxu0 %v2606
  %2608 = vmatprep.subr.mxu0 0.0
  %v2609 = vand.u32 %v1669, 4294901760
  %v2610 = vsub.f32 %v1669, %v2609
  %v2611 = vand.u32 %v2610, 4294901760
  %2612 = vmatpush1.msra.mxu0 %v2611
  %2613 = vmatprep.subr.mxu0 0.0
  %v2614 = vand.u32 %v1670, 4294901760
  %v2615 = vsub.f32 %v1670, %v2614
  %v2616 = vand.u32 %v2615, 4294901760
  %2617 = vmatpush1.msra.mxu0 %v2616
  %2618 = vmatprep.subr.mxu0 0.0
  %v2619 = vand.u32 %v1671, 4294901760
  %v2620 = vsub.f32 %v1671, %v2619
  %v2621 = vand.u32 %v2620, 4294901760
  %2622 = vmatpush1.msra.mxu0 %v2621
  %2623 = vmatprep.subr.mxu0 0.0
  %v2624 = vand.u32 %v1672, 4294901760
  %v2625 = vsub.f32 %v1672, %v2624
  %v2626 = vand.u32 %v2625, 4294901760
  %2627 = vmatpush1.msra.mxu0 %v2626
  %2628 = vmatprep.subr.mxu0 0.0
  %v2629 = vand.u32 %v1673, 4294901760
  %v2630 = vsub.f32 %v1673, %v2629
  %v2631 = vand.u32 %v2630, 4294901760
  %2632 = vmatpush1.msra.mxu0 %v2631
  %2633 = vmatprep.subr.mxu0 0.0
  %v2634 = vand.u32 %v1674, 4294901760
  %v2635 = vsub.f32 %v1674, %v2634
  %v2636 = vand.u32 %v2635, 4294901760
  %2637 = vmatpush1.msra.mxu0 %v2636
  %2638 = vmatprep.subr.mxu0 0.0
  %v2639 = vand.u32 %v1675, 4294901760
  %v2640 = vsub.f32 %v1675, %v2639
  %v2641 = vand.u32 %v2640, 4294901760
  %2642 = vmatpush1.msra.mxu0 %v2641
  %2643 = vmatprep.subr.mxu0 0.0
  %v2644 = vand.u32 %v1676, 4294901760
  %v2645 = vsub.f32 %v1676, %v2644
  %v2646 = vand.u32 %v2645, 4294901760
  %2647 = vmatpush1.msra.mxu0 %v2646
  %2648 = vmatprep.subr.mxu0 0.0
  %v2649 = vand.u32 %v1677, 4294901760
  %v2650 = vsub.f32 %v1677, %v2649
  %v2651 = vand.u32 %v2650, 4294901760
  %2652 = vmatpush1.msra.mxu0 %v2651
  %2653 = vmatprep.subr.mxu0 0.0
  %v2654 = vand.u32 %v1678, 4294901760
  %v2655 = vsub.f32 %v1678, %v2654
  %v2656 = vand.u32 %v2655, 4294901760
  %2657 = vmatpush1.msra.mxu0 %v2656
  %2658 = vmatprep.subr.mxu0 0.0
  %v2659 = vand.u32 %v1679, 4294901760
  %v2660 = vsub.f32 %v1679, %v2659
  %v2661 = vand.u32 %v2660, 4294901760
  %2662 = vmatpush1.msra.mxu0 %v2661
  %2663 = vmatprep.subr.mxu0 0.0
  %v2664 = vand.u32 %v1680, 4294901760
  %v2665 = vsub.f32 %v1680, %v2664
  %v2666 = vand.u32 %v2665, 4294901760
  %2667 = vmatpush1.msra.mxu0 %v2666
  %2668 = vmatprep.subr.mxu0 0.0
  %v2669 = vand.u32 %v1681, 4294901760
  %v2670 = vsub.f32 %v1681, %v2669
  %v2671 = vand.u32 %v2670, 4294901760
  %2672 = vmatpush1.msra.mxu0 %v2671
  %2673 = vmatprep.subr.mxu0 0.0
  %v2674 = vand.u32 %v1682, 4294901760
  %v2675 = vsub.f32 %v1682, %v2674
  %v2676 = vand.u32 %v2675, 4294901760
  %2677 = vmatpush1.msra.mxu0 %v2676
  %2678 = vmatprep.subr.mxu0 0.0
  %2679 = vmatpush1.msra.mxu0 0.0
  %2680 = vmatprep.subr.mxu0 0.0
  %2681 = vmatpush1.msra.mxu0 0.0
  %2682 = vmatprep.subr.mxu0 0.0
  %2683 = vmatpush1.msra.mxu0 0.0
  %2684 = vmatprep.subr.mxu0 0.0
  %2685 = vmatpush1.msra.mxu0 0.0
  %2686 = vmatprep.subr.mxu0 0.0
  %2687 = vmatpush1.msra.mxu0 0.0
  %2688 = vmatprep.subr.mxu0 0.0
  %2689 = vmatpush1.msra.mxu0 0.0
  %2690 = vmatprep.subr.mxu0 0.0
  %2691 = vmatpush1.msra.mxu0 0.0
  %2692 = vmatprep.subr.mxu0 0.0
  %2693 = vmatpush1.msra.mxu0 0.0
  %2694 = vmatprep.subr.mxu0 0.0
  %2695 = vmatpush1.msra.mxu0 0.0
  %2696 = vmatprep.subr.mxu0 0.0
  %2697 = vmatpush1.msra.mxu0 0.0
  %2698 = vmatprep.subr.mxu0 0.0
  %2699 = vmatpush1.msra.mxu0 0.0
  %2700 = vmatprep.subr.mxu0 0.0
  %2701 = vmatpush1.msra.mxu0 0.0
  %2702 = vmatprep.subr.mxu0 0.0
  %2703 = vmatpush1.msra.mxu0 0.0
  %2704 = vmatprep.subr.mxu0 0.0
  %2705 = vmatpush1.msra.mxu0 0.0
  %2706 = vmatprep.subr.mxu0 0.0
  %2707 = vmatpush1.msra.mxu0 0.0
  %2708 = vmatprep.subr.mxu0 0.0
  %2709 = vmatpush1.msra.mxu0 0.0
  %2710 = vmatprep.mubr.f32.mxu0 0.0
  %v2711 = vand.u32 %v1651, 4294901760
  %2712 = vmatmul.mubr.f32.gmra.mrb[0].mxu0 %v2711
  %v2713 = vpop.f32.mrb[0].mxu0
  %v2714 = vadd.f32 %v2475, %v2713
  %v2715 = vpop.f32.mrb[0].mxu0
  %2716 = vmatprep.mubr.f32.mxu0 0.0
  %v2717 = vand.u32 %v1652, 4294901760
  %2718 = vmatmul.mubr.f32.gmra.mrb[0].mxu0 %v2717
  %v2719 = vpop.f32.mrb[0].mxu0
  %v2720 = vadd.f32 %v2483, %v2719
  %v2721 = vpop.f32.mrb[0].mxu0
  %2722 = vmatprep.mubr.f32.mxu0 0.0
  %v2723 = vand.u32 %v1653, 4294901760
  %2724 = vmatmul.mubr.f32.gmra.mrb[0].mxu0 %v2723
  %v2725 = vpop.f32.mrb[0].mxu0
  %v2726 = vadd.f32 %v2491, %v2725
  %v2727 = vpop.f32.mrb[0].mxu0
  %2728 = vmatprep.mubr.f32.mxu0 0.0
  %v2729 = vand.u32 %v1654, 4294901760
  %2730 = vmatmul.mubr.f32.gmra.mrb[0].mxu0 %v2729
  %v2731 = vpop.f32.mrb[0].mxu0
  %v2732 = vadd.f32 %v2499, %v2731
  %v2733 = vpop.f32.mrb[0].mxu0
  %2734 = vmatprep.mubr.f32.mxu0 0.0
  %v2735 = vand.u32 %v1655, 4294901760
  %2736 = vmatmul.mubr.f32.gmra.mrb[0].mxu0 %v2735
  %v2737 = vpop.f32.mrb[0].mxu0
  %v2738 = vadd.f32 %v2507, %v2737
  %v2739 = vpop.f32.mrb[0].mxu0
  %2740 = vmatprep.mubr.f32.mxu0 0.0
  %v2741 = vand.u32 %v1656, 4294901760
  %2742 = vmatmul.mubr.f32.gmra.mrb[0].mxu0 %v2741
  %v2743 = vpop.f32.mrb[0].mxu0
  %v2744 = vadd.f32 %v2515, %v2743
  %v2745 = vpop.f32.mrb[0].mxu0
  %2746 = vmatprep.mubr.f32.mxu0 0.0
  %v2747 = vand.u32 %v1657, 4294901760
  %2748 = vmatmul.mubr.f32.gmra.mrb[0].mxu0 %v2747
  %v2749 = vpop.f32.mrb[0].mxu0
  %v2750 = vadd.f32 %v2523, %v2749
  %v2751 = vpop.f32.mrb[0].mxu0
  %2752 = vmatprep.mubr.f32.mxu0 0.0
  %v2753 = vand.u32 %v1658, 4294901760
  %2754 = vmatmul.mubr.f32.gmra.mrb[0].mxu0 %v2753
  %v2755 = vpop.f32.mrb[0].mxu0
  %v2756 = vadd.f32 %v2531, %v2755
  %v2757 = vpop.f32.mrb[0].mxu0
  %2758 = vmatprep.mubr.f32.mxu0 0.0
  %v2759 = vand.u32 %v1659, 4294901760
  %2760 = vmatmul.mubr.f32.gmra.mrb[0].mxu0 %v2759
  %v2761 = vpop.f32.mrb[0].mxu0
  %v2762 = vadd.f32 %v2539, %v2761
  %v2763 = vpop.f32.mrb[0].mxu0
  %2764 = vmatprep.mubr.f32.mxu0 0.0
  %v2765 = vand.u32 %v1660, 4294901760
  %2766 = vmatmul.mubr.f32.gmra.mrb[0].mxu0 %v2765
  %v2767 = vpop.f32.mrb[0].mxu0
  %v2768 = vadd.f32 %v2547, %v2767
  %v2769 = vpop.f32.mrb[0].mxu0
  %2770 = vmatprep.mubr.f32.mxu0 0.0
  %v2771 = vand.u32 %v1661, 4294901760
  %2772 = vmatmul.mubr.f32.gmra.mrb[0].mxu0 %v2771
  %v2773 = vpop.f32.mrb[0].mxu0
  %v2774 = vadd.f32 %v2555, %v2773
  %v2775 = vpop.f32.mrb[0].mxu0
  %2776 = vmatprep.mubr.f32.mxu0 0.0
  %v2777 = vand.u32 %v1662, 4294901760
  %2778 = vmatmul.mubr.f32.gmra.mrb[0].mxu0 %v2777
  %v2779 = vpop.f32.mrb[0].mxu0
  %v2780 = vadd.f32 %v2563, %v2779
  %v2781 = vpop.f32.mrb[0].mxu0
  %2782 = vmatprep.mubr.f32.mxu0 0.0
  %v2783 = vand.u32 %v1663, 4294901760
  %2784 = vmatmul.mubr.f32.gmra.mrb[0].mxu0 %v2783
  %v2785 = vpop.f32.mrb[0].mxu0
  %v2786 = vadd.f32 %v2571, %v2785
  %v2787 = vpop.f32.mrb[0].mxu0
  %2788 = vmatprep.mubr.f32.mxu0 0.0
  %v2789 = vand.u32 %v1664, 4294901760
  %2790 = vmatmul.mubr.f32.gmra.mrb[0].mxu0 %v2789
  %v2791 = vpop.f32.mrb[0].mxu0
  %v2792 = vadd.f32 %v2579, %v2791
  %v2793 = vpop.f32.mrb[0].mxu0
  %2794 = vmatprep.mubr.f32.mxu0 0.0
  %v2795 = vand.u32 %v1665, 4294901760
  %2796 = vmatmul.mubr.f32.gmra.mrb[0].mxu0 %v2795
  %v2797 = vpop.f32.mrb[0].mxu0
  %v2798 = vadd.f32 %v2587, %v2797
  %v2799 = vpop.f32.mrb[0].mxu0
  %2800 = vmatprep.mubr.f32.mxu0 0.0
  %v2801 = vand.u32 %v1666, 4294901760
  %2802 = vmatmul.mubr.f32.gmra.mrb[0].mxu0 %v2801
  %v2803 = vpop.f32.mrb[0].mxu0
  %v2804 = vadd.f32 %v2595, %v2803
  %v2805 = vpop.f32.mrb[0].mxu0
  %2806 = vdwg.mxu0
  %2807 = vmatprep.subr.mxu0 0.0
  %v2808 = vand.u32 %v1667, 4294901760
  %2809 = vmatpush1.msra.mxu0 %v2808
  %2810 = vmatprep.subr.mxu0 0.0
  %v2811 = vand.u32 %v1668, 4294901760
  %2812 = vmatpush1.msra.mxu0 %v2811
  %2813 = vmatprep.subr.mxu0 0.0
  %v2814 = vand.u32 %v1669, 4294901760
  %2815 = vmatpush1.msra.mxu0 %v2814
  %2816 = vmatprep.subr.mxu0 0.0
  %v2817 = vand.u32 %v1670, 4294901760
  %2818 = vmatpush1.msra.mxu0 %v2817
  %2819 = vmatprep.subr.mxu0 0.0
  %v2820 = vand.u32 %v1671, 4294901760
  %2821 = vmatpush1.msra.mxu0 %v2820
  %2822 = vmatprep.subr.mxu0 0.0
  %v2823 = vand.u32 %v1672, 4294901760
  %2824 = vmatpush1.msra.mxu0 %v2823
  %2825 = vmatprep.subr.mxu0 0.0
  %v2826 = vand.u32 %v1673, 4294901760
  %2827 = vmatpush1.msra.mxu0 %v2826
  %2828 = vmatprep.subr.mxu0 0.0
  %v2829 = vand.u32 %v1674, 4294901760
  %2830 = vmatpush1.msra.mxu0 %v2829
  %2831 = vmatprep.subr.mxu0 0.0
  %v2832 = vand.u32 %v1675, 4294901760
  %2833 = vmatpush1.msra.mxu0 %v2832
  %2834 = vmatprep.subr.mxu0 0.0
  %v2835 = vand.u32 %v1676, 4294901760
  %2836 = vmatpush1.msra.mxu0 %v2835
  %2837 = vmatprep.subr.mxu0 0.0
  %v2838 = vand.u32 %v1677, 4294901760
  %2839 = vmatpush1.msra.mxu0 %v2838
  %2840 = vmatprep.subr.mxu0 0.0
  %v2841 = vand.u32 %v1678, 4294901760
  %2842 = vmatpush1.msra.mxu0 %v2841
  %2843 = vmatprep.subr.mxu0 0.0
  %v2844 = vand.u32 %v1679, 4294901760
  %2845 = vmatpush1.msra.mxu0 %v2844
  %2846 = vmatprep.subr.mxu0 0.0
  %v2847 = vand.u32 %v1680, 4294901760
  %2848 = vmatpush1.msra.mxu0 %v2847
  %2849 = vmatprep.subr.mxu0 0.0
  %v2850 = vand.u32 %v1681, 4294901760
  %2851 = vmatpush1.msra.mxu0 %v2850
  %2852 = vmatprep.subr.mxu0 0.0
  %v2853 = vand.u32 %v1682, 4294901760
  %2854 = vmatpush1.msra.mxu0 %v2853
  %2855 = vmatprep.subr.mxu0 0.0
  %2856 = vmatpush1.msra.mxu0 0.0
  %2857 = vmatprep.subr.mxu0 0.0
  %2858 = vmatpush1.msra.mxu0 0.0
  %2859 = vmatprep.subr.mxu0 0.0
  %2860 = vmatpush1.msra.mxu0 0.0
  %2861 = vmatprep.subr.mxu0 0.0
  %2862 = vmatpush1.msra.mxu0 0.0
  %2863 = vmatprep.subr.mxu0 0.0
  %2864 = vmatpush1.msra.mxu0 0.0
  %2865 = vmatprep.subr.mxu0 0.0
  %2866 = vmatpush1.msra.mxu0 0.0
  %2867 = vmatprep.subr.mxu0 0.0
  %2868 = vmatpush1.msra.mxu0 0.0
  %2869 = vmatprep.subr.mxu0 0.0
  %2870 = vmatpush1.msra.mxu0 0.0
  %2871 = vmatprep.subr.mxu0 0.0
  %2872 = vmatpush1.msra.mxu0 0.0
  %2873 = vmatprep.subr.mxu0 0.0
  %2874 = vmatpush1.msra.mxu0 0.0
  %2875 = vmatprep.subr.mxu0 0.0
  %2876 = vmatpush1.msra.mxu0 0.0
  %2877 = vmatprep.subr.mxu0 0.0
  %2878 = vmatpush1.msra.mxu0 0.0
  %2879 = vmatprep.subr.mxu0 0.0
  %2880 = vmatpush1.msra.mxu0 0.0
  %2881 = vmatprep.subr.mxu0 0.0
  %2882 = vmatpush1.msra.mxu0 0.0
  %2883 = vmatprep.subr.mxu0 0.0
  %2884 = vmatpush1.msra.mxu0 0.0
  %2885 = vmatprep.subr.mxu0 0.0
  %2886 = vmatpush1.msra.mxu0 0.0
  %2887 = vmatprep.mubr.f32.mxu0 0.0
  %v2888 = vand.u32 %v1651, 4294901760
  %2889 = vmatmul.mubr.f32.gmra.mrb[0].mxu0 %v2888
  %v2890 = vpop.f32.mrb[0].mxu0
  %v2891 = vadd.f32 %v2714, %v2890
  %v2892 = vpop.f32.mrb[0].mxu0
  %2893 = vmatprep.mubr.f32.mxu0 0.0
  %v2894 = vand.u32 %v1652, 4294901760
  %2895 = vmatmul.mubr.f32.gmra.mrb[0].mxu0 %v2894
  %v2896 = vpop.f32.mrb[0].mxu0
  %v2897 = vadd.f32 %v2720, %v2896
  %v2898 = vpop.f32.mrb[0].mxu0
  %2899 = vmatprep.mubr.f32.mxu0 0.0
  %v2900 = vand.u32 %v1653, 4294901760
  %2901 = vmatmul.mubr.f32.gmra.mrb[0].mxu0 %v2900
  %v2902 = vpop.f32.mrb[0].mxu0
  %v2903 = vadd.f32 %v2726, %v2902
  %v2904 = vpop.f32.mrb[0].mxu0
  %2905 = vmatprep.mubr.f32.mxu0 0.0
  %v2906 = vand.u32 %v1654, 4294901760
  %2907 = vmatmul.mubr.f32.gmra.mrb[0].mxu0 %v2906
  %v2908 = vpop.f32.mrb[0].mxu0
  %v2909 = vadd.f32 %v2732, %v2908
  %v2910 = vpop.f32.mrb[0].mxu0
  %2911 = vmatprep.mubr.f32.mxu0 0.0
  %v2912 = vand.u32 %v1655, 4294901760
  %2913 = vmatmul.mubr.f32.gmra.mrb[0].mxu0 %v2912
  %v2914 = vpop.f32.mrb[0].mxu0
  %v2915 = vadd.f32 %v2738, %v2914
  %v2916 = vpop.f32.mrb[0].mxu0
  %2917 = vmatprep.mubr.f32.mxu0 0.0
  %v2918 = vand.u32 %v1656, 4294901760
  %2919 = vmatmul.mubr.f32.gmra.mrb[0].mxu0 %v2918
  %v2920 = vpop.f32.mrb[0].mxu0
  %v2921 = vadd.f32 %v2744, %v2920
  %v2922 = vpop.f32.mrb[0].mxu0
  %2923 = vmatprep.mubr.f32.mxu0 0.0
  %v2924 = vand.u32 %v1657, 4294901760
  %2925 = vmatmul.mubr.f32.gmra.mrb[0].mxu0 %v2924
  %v2926 = vpop.f32.mrb[0].mxu0
  %v2927 = vadd.f32 %v2750, %v2926
  %v2928 = vpop.f32.mrb[0].mxu0
  %2929 = vmatprep.mubr.f32.mxu0 0.0
  %v2930 = vand.u32 %v1658, 4294901760
  %2931 = vmatmul.mubr.f32.gmra.mrb[0].mxu0 %v2930
  %v2932 = vpop.f32.mrb[0].mxu0
  %v2933 = vadd.f32 %v2756, %v2932
  %v2934 = vpop.f32.mrb[0].mxu0
  %2935 = vmatprep.mubr.f32.mxu0 0.0
  %v2936 = vand.u32 %v1659, 4294901760
  %2937 = vmatmul.mubr.f32.gmra.mrb[0].mxu0 %v2936
  %v2938 = vpop.f32.mrb[0].mxu0
  %v2939 = vadd.f32 %v2762, %v2938
  %v2940 = vpop.f32.mrb[0].mxu0
  %2941 = vmatprep.mubr.f32.mxu0 0.0
  %v2942 = vand.u32 %v1660, 4294901760
  %2943 = vmatmul.mubr.f32.gmra.mrb[0].mxu0 %v2942
  %v2944 = vpop.f32.mrb[0].mxu0
  %v2945 = vadd.f32 %v2768, %v2944
  %v2946 = vpop.f32.mrb[0].mxu0
  %2947 = vmatprep.mubr.f32.mxu0 0.0
  %v2948 = vand.u32 %v1661, 4294901760
  %2949 = vmatmul.mubr.f32.gmra.mrb[0].mxu0 %v2948
  %v2950 = vpop.f32.mrb[0].mxu0
  %v2951 = vadd.f32 %v2774, %v2950
  %v2952 = vpop.f32.mrb[0].mxu0
  %2953 = vmatprep.mubr.f32.mxu0 0.0
  %v2954 = vand.u32 %v1662, 4294901760
  %2955 = vmatmul.mubr.f32.gmra.mrb[0].mxu0 %v2954
  %v2956 = vpop.f32.mrb[0].mxu0
  %v2957 = vadd.f32 %v2780, %v2956
  %v2958 = vpop.f32.mrb[0].mxu0
  %2959 = vmatprep.mubr.f32.mxu0 0.0
  %v2960 = vand.u32 %v1663, 4294901760
  %2961 = vmatmul.mubr.f32.gmra.mrb[0].mxu0 %v2960
  %v2962 = vpop.f32.mrb[0].mxu0
  %v2963 = vadd.f32 %v2786, %v2962
  %v2964 = vpop.f32.mrb[0].mxu0
  %2965 = vmatprep.mubr.f32.mxu0 0.0
  %v2966 = vand.u32 %v1664, 4294901760
  %2967 = vmatmul.mubr.f32.gmra.mrb[0].mxu0 %v2966
  %v2968 = vpop.f32.mrb[0].mxu0
  %v2969 = vadd.f32 %v2792, %v2968
  %v2970 = vpop.f32.mrb[0].mxu0
  %2971 = vmatprep.mubr.f32.mxu0 0.0
  %v2972 = vand.u32 %v1665, 4294901760
  %2973 = vmatmul.mubr.f32.gmra.mrb[0].mxu0 %v2972
  %v2974 = vpop.f32.mrb[0].mxu0
  %v2975 = vadd.f32 %v2798, %v2974
  %v2976 = vpop.f32.mrb[0].mxu0
  %2977 = vmatprep.mubr.f32.mxu0 0.0
  %v2978 = vand.u32 %v1666, 4294901760
  %2979 = vmatmul.mubr.f32.gmra.mrb[0].mxu0 %v2978
  %v2980 = vpop.f32.mrb[0].mxu0
  %v2981 = vadd.f32 %v2804, %v2980
  %v2982 = vpop.f32.mrb[0].mxu0
  %2983 = vdwg.mxu0
  %v2984 = vrsqrt.pop %v2891
  %v2985 = vmul.f32 %v2891, %v2984
  %vm2986 = vcmp.eq.f32.partialorder %v2891, inf
  %v2987 = vsel %vm2986, %v2891, %v2985
  %vm2988 = vcmp.eq.f32.partialorder %v2891, 0.0
  %v2989 = vand.u32 %v2891, 2147483648
  %v2990 = vsel %vm2988, %v2989, %v2987
  %v2991 = vrsqrt.pop %v2897
  %v2992 = vmul.f32 %v2897, %v2991
  %vm2993 = vcmp.eq.f32.partialorder %v2897, inf
  %v2994 = vsel %vm2993, %v2897, %v2992
  %vm2995 = vcmp.eq.f32.partialorder %v2897, 0.0
  %v2996 = vand.u32 %v2897, 2147483648
  %v2997 = vsel %vm2995, %v2996, %v2994
  %v2998 = vrsqrt.pop %v2903
  %v2999 = vmul.f32 %v2903, %v2998
  %vm3000 = vcmp.eq.f32.partialorder %v2903, inf
  %v3001 = vsel %vm3000, %v2903, %v2999
  %vm3002 = vcmp.eq.f32.partialorder %v2903, 0.0
  %v3003 = vand.u32 %v2903, 2147483648
  %v3004 = vsel %vm3002, %v3003, %v3001
  %v3005 = vrsqrt.pop %v2909
  %v3006 = vmul.f32 %v2909, %v3005
  %vm3007 = vcmp.eq.f32.partialorder %v2909, inf
  %v3008 = vsel %vm3007, %v2909, %v3006
  %vm3009 = vcmp.eq.f32.partialorder %v2909, 0.0
  %v3010 = vand.u32 %v2909, 2147483648
  %v3011 = vsel %vm3009, %v3010, %v3008
  %v3012 = vrsqrt.pop %v2915
  %v3013 = vmul.f32 %v2915, %v3012
  %vm3014 = vcmp.eq.f32.partialorder %v2915, inf
  %v3015 = vsel %vm3014, %v2915, %v3013
  %vm3016 = vcmp.eq.f32.partialorder %v2915, 0.0
  %v3017 = vand.u32 %v2915, 2147483648
  %v3018 = vsel %vm3016, %v3017, %v3015
  %v3019 = vrsqrt.pop %v2921
  %v3020 = vmul.f32 %v2921, %v3019
  %vm3021 = vcmp.eq.f32.partialorder %v2921, inf
  %v3022 = vsel %vm3021, %v2921, %v3020
  %vm3023 = vcmp.eq.f32.partialorder %v2921, 0.0
  %v3024 = vand.u32 %v2921, 2147483648
  %v3025 = vsel %vm3023, %v3024, %v3022
  %v3026 = vrsqrt.pop %v2927
  %v3027 = vmul.f32 %v2927, %v3026
  %vm3028 = vcmp.eq.f32.partialorder %v2927, inf
  %v3029 = vsel %vm3028, %v2927, %v3027
  %vm3030 = vcmp.eq.f32.partialorder %v2927, 0.0
  %v3031 = vand.u32 %v2927, 2147483648
  %v3032 = vsel %vm3030, %v3031, %v3029
  %v3033 = vrsqrt.pop %v2933
  %v3034 = vmul.f32 %v2933, %v3033
  %vm3035 = vcmp.eq.f32.partialorder %v2933, inf
  %v3036 = vsel %vm3035, %v2933, %v3034
  %vm3037 = vcmp.eq.f32.partialorder %v2933, 0.0
  %v3038 = vand.u32 %v2933, 2147483648
  %v3039 = vsel %vm3037, %v3038, %v3036
  %v3040 = vrsqrt.pop %v2939
  %v3041 = vmul.f32 %v2939, %v3040
  %vm3042 = vcmp.eq.f32.partialorder %v2939, inf
  %v3043 = vsel %vm3042, %v2939, %v3041
  %vm3044 = vcmp.eq.f32.partialorder %v2939, 0.0
  %v3045 = vand.u32 %v2939, 2147483648
  %v3046 = vsel %vm3044, %v3045, %v3043
  %v3047 = vrsqrt.pop %v2945
  %v3048 = vmul.f32 %v2945, %v3047
  %vm3049 = vcmp.eq.f32.partialorder %v2945, inf
  %v3050 = vsel %vm3049, %v2945, %v3048
  %vm3051 = vcmp.eq.f32.partialorder %v2945, 0.0
  %v3052 = vand.u32 %v2945, 2147483648
  %v3053 = vsel %vm3051, %v3052, %v3050
  %v3054 = vrsqrt.pop %v2951
  %v3055 = vmul.f32 %v2951, %v3054
  %vm3056 = vcmp.eq.f32.partialorder %v2951, inf
  %v3057 = vsel %vm3056, %v2951, %v3055
  %vm3058 = vcmp.eq.f32.partialorder %v2951, 0.0
  %v3059 = vand.u32 %v2951, 2147483648
  %v3060 = vsel %vm3058, %v3059, %v3057
  %v3061 = vrsqrt.pop %v2957
  %v3062 = vmul.f32 %v2957, %v3061
  %vm3063 = vcmp.eq.f32.partialorder %v2957, inf
  %v3064 = vsel %vm3063, %v2957, %v3062
  %vm3065 = vcmp.eq.f32.partialorder %v2957, 0.0
  %v3066 = vand.u32 %v2957, 2147483648
  %v3067 = vsel %vm3065, %v3066, %v3064
  %v3068 = vrsqrt.pop %v2963
  %v3069 = vmul.f32 %v2963, %v3068
  %vm3070 = vcmp.eq.f32.partialorder %v2963, inf
  %v3071 = vsel %vm3070, %v2963, %v3069
  %vm3072 = vcmp.eq.f32.partialorder %v2963, 0.0
  %v3073 = vand.u32 %v2963, 2147483648
  %v3074 = vsel %vm3072, %v3073, %v3071
  %v3075 = vrsqrt.pop %v2969
  %v3076 = vmul.f32 %v2969, %v3075
  %vm3077 = vcmp.eq.f32.partialorder %v2969, inf
  %v3078 = vsel %vm3077, %v2969, %v3076
  %vm3079 = vcmp.eq.f32.partialorder %v2969, 0.0
  %v3080 = vand.u32 %v2969, 2147483648
  %v3081 = vsel %vm3079, %v3080, %v3078
  %v3082 = vrsqrt.pop %v2975
  %v3083 = vmul.f32 %v2975, %v3082
  %vm3084 = vcmp.eq.f32.partialorder %v2975, inf
  %v3085 = vsel %vm3084, %v2975, %v3083
  %vm3086 = vcmp.eq.f32.partialorder %v2975, 0.0
  %v3087 = vand.u32 %v2975, 2147483648
  %v3088 = vsel %vm3086, %v3087, %v3085
  %v3089 = vrsqrt.pop %v2981
  %v3090 = vmul.f32 %v2981, %v3089
  %vm3091 = vcmp.eq.f32.partialorder %v2981, inf
  %v3092 = vsel %vm3091, %v2981, %v3090
  %vm3093 = vcmp.eq.f32.partialorder %v2981, 0.0
  %v3094 = vand.u32 %v2981, 2147483648
  %v3095 = vsel %vm3093, %v3094, %v3092
  %v3096 = vsel %vm1697, 1, 0
  %vm3097 = vcmp.eq.s32.totalorder %v3096, 1
  %v3098 = vsel %vm3097, %v2990, %v1543
  %v3099 = vsel %vm3097, %v2997, %v1550
  %v3100 = vsel %vm3097, %v3004, %v1557
  %v3101 = vsel %vm3097, %v3011, %v1564
  %v3102 = vsel %vm3097, %v3018, %v1571
  %v3103 = vsel %vm3097, %v3025, %v1578
  %v3104 = vsel %vm3097, %v3032, %v1585
  %v3105 = vsel %vm3097, %v3039, %v1592
  %v3106 = vsel %vm3097, %v3046, %v1599
  %v3107 = vsel %vm3097, %v3053, %v1606
  %v3108 = vsel %vm3097, %v3060, %v1613
  %v3109 = vsel %vm3097, %v3067, %v1620
  %v3110 = vsel %vm3097, %v3074, %v1627
  %v3111 = vsel %vm3097, %v3081, %v1634
  %v3112 = vsel %vm3097, %v3088, %v1641
  %v3113 = vsel %vm3097, %v3095, %v1648
  %3114 = vst [vmem:[%s3] sm:$0xff] %v3098
  %3115 = vst [vmem:[%s3 + $0x8] sm:$0xff] %v3099
  %3116 = vst [vmem:[%s3 + $0x10] sm:$0xff] %v3100
  %3117 = vst [vmem:[%s3 + $0x18] sm:$0xff] %v3101
  %3118 = vst [vmem:[%s3 + $0x20] sm:$0xff] %v3102
  %3119 = vst [vmem:[%s3 + $0x28] sm:$0xff] %v3103
  %3120 = vst [vmem:[%s3 + $0x30] sm:$0xff] %v3104
  %3121 = vst [vmem:[%s3 + $0x38] sm:$0xff] %v3105
  %3122 = vst [vmem:[%s3 + $0x40] sm:$0xff] %v3106
  %3123 = vst [vmem:[%s3 + $0x48] sm:$0xff] %v3107
  %3124 = vst [vmem:[%s3 + $0x50] sm:$0xff] %v3108
  %3125 = vst [vmem:[%s3 + $0x58] sm:$0xff] %v3109
  %3126 = vst [vmem:[%s3 + $0x60] sm:$0xff] %v3110
  %3127 = vst [vmem:[%s3 + $0x68] sm:$0xff] %v3111
  %3128 = vst [vmem:[%s3 + $0x70] sm:$0xff] %v3112
  %3129 = vst [vmem:[%s3 + $0x78] sm:$0xff] %v3113
  // Predicated region
  $region14: #{_lambda_.1} parent=0 // pred_check
    _
  $region15: #{_lambda_.1} parent=0 // pred_check_branch
    %3131 = sbr.rel (0) target = $region17
  $region16: #{_lambda_.1} parent=0 // pred_region
    _
  $region17: #{_lambda_.1} parent=0 // pred_fallthru
    _
  // Predicated region
  $region18: #{_lambda_.1} parent=0 // pred_check
    _
  $region19: #{_lambda_.1} parent=0 // pred_check_branch
    %3133 = sbr.rel (0) target = $region21
  $region20: #{_lambda_.1} parent=0 // pred_region
    _
  $region21: #{_lambda_.1} parent=0 // pred_fallthru
    _

</llo_original>
